<compile_context>
chip_gen: v7x
topology: tpu7x:2x2x1
jax: 0.10.0
libtpu: 0.0.40
codegen_flags: <defaults>
</compile_context>

<pallas_src>
import functools
import math

import jax
import jax.numpy as jnp
from jax.experimental import pallas as pl
from jax.experimental.pallas import tpu as pltpu

# ----------------------- scaled-down configuration -------------------------
HIDDEN = 32        # stands in for 768
N_HEADS = 4
HEAD_DIM = HIDDEN // N_HEADS
N_LAYERS = 2       # stands in for 12
FFN = 64           # stands in for 3072
VOCAB = 64
MAX_POS = 64
TYPE_VOCAB = 2
LN_EPS = 1e-12
BN_EPS = 1e-5

C_FEAT = 16
C_IMG = 64         # stands in for the 2048 ResNet-50 channels
N_CAT1, N_CAT2, N_CAT3 = 4, 8, 16
H_C1, H_C2, H_F = 64, 96, 128   # stand in for 256 / 512 / 1024 head widths

CLS_ID, SEP_ID = 2, 3
IMG_TOKENS = 5     # [CLS] + 3 image tokens + [SEP]
L_PAD = 16         # 5 + 8 text tokens = 13, padded (and masked) to 16


# ------------------------------ shared helpers ------------------------------
def _ln(x, g, b, eps=LN_EPS):
    mean = jnp.mean(x, axis=-1, keepdims=True)
    var = jnp.mean((x - mean) ** 2, axis=-1, keepdims=True)
    return (x - mean) * jax.lax.rsqrt(var + eps) * g + b


def _full2d(a):
    # full-array 2D block, resident across all grid steps
    return pl.BlockSpec(a.shape, lambda *_: (0, 0))


# ------------------------------ Pallas kernels ------------------------------
def _matmul_kernel(x_ref, w_ref, b_ref, o_ref, *, act):
    y = jnp.dot(x_ref[...], w_ref[...], preferred_element_type=jnp.float32)
    y = y + b_ref[...]
    if act == "relu":
        y = jnp.maximum(y, 0.0)
    o_ref[...] = y


def pallas_linear(x, w, b, act="none"):
    M, K = x.shape
    N = w.shape[1]
    return pl.pallas_call(
        functools.partial(_matmul_kernel, act=act),
        out_shape=jax.ShapeDtypeStruct((M, N), jnp.float32),
        grid=(1,),
        in_specs=[pl.BlockSpec((M, K), lambda i: (0, 0)),
                  pl.BlockSpec((K, N), lambda i: (0, 0)),
                  pl.BlockSpec((1, N), lambda i: (0, 0))],
        out_specs=pl.BlockSpec((M, N), lambda i: (0, 0)),
    )(x, w, b.reshape(1, N))


def _layernorm_kernel(x_ref, g_ref, b_ref, o_ref):
    o_ref[...] = _ln(x_ref[...], g_ref[...], b_ref[...])


def pallas_layernorm(x, gamma, beta):
    M, H = x.shape
    return pl.pallas_call(
        _layernorm_kernel,
        out_shape=jax.ShapeDtypeStruct((M, H), jnp.float32),
        grid=(1,),
        in_specs=[pl.BlockSpec((M, H), lambda i: (0, 0)),
                  pl.BlockSpec((1, H), lambda i: (0, 0)),
                  pl.BlockSpec((1, H), lambda i: (0, 0))],
        out_specs=pl.BlockSpec((M, H), lambda i: (0, 0)),
    )(x, gamma.reshape(1, H), beta.reshape(1, H))


# ---- fused BERT encoder layer: QKV -> MHA -> out-proj -> LN1 -> FFN -> LN2 ----
def _bert_layer_kernel(x_ref, m_ref,
                       qkv_w_ref, qkv_b_ref, o_w_ref, o_b_ref,
                       ln1_g_ref, ln1_b_ref,
                       f1_w_ref, f1_b_ref, f2_w_ref, f2_b_ref,
                       ln2_g_ref, ln2_b_ref,
                       o_ref):
    x = x_ref[0]                                   # (L, H)
    m = m_ref[0]                                   # (1, L) additive mask
    # fused Q|K|V projection: one (L,H) @ (H,3H) MXU pass
    qkv = jnp.dot(x, qkv_w_ref[...], preferred_element_type=jnp.float32)
    qkv = qkv + qkv_b_ref[...]
    scale = 1.0 / math.sqrt(HEAD_DIM)
    ctx_parts = []
    for h in range(N_HEADS):                       # static unroll over 4 heads
        lo = h * HEAD_DIM
        qh = qkv[:, lo:lo + HEAD_DIM]
        kh = qkv[:, HIDDEN + lo:HIDDEN + lo + HEAD_DIM]
        vh = qkv[:, 2 * HIDDEN + lo:2 * HIDDEN + lo + HEAD_DIM]
        s = jax.lax.dot_general(qh, kh, (((1,), (1,)), ((), ())),
                                preferred_element_type=jnp.float32) * scale + m
        s = s - jnp.max(s, axis=-1, keepdims=True)
        p = jnp.exp(s)
        p = p / jnp.sum(p, axis=-1, keepdims=True)
        ctx_parts.append(jnp.dot(p, vh, preferred_element_type=jnp.float32))
    ctx = jnp.concatenate(ctx_parts, axis=-1)      # (L, H)
    attn_out = jnp.dot(ctx, o_w_ref[...], preferred_element_type=jnp.float32)
    attn_out = attn_out + o_b_ref[...]
    x1 = _ln(attn_out + x, ln1_g_ref[...], ln1_b_ref[...])
    h1 = jnp.dot(x1, f1_w_ref[...], preferred_element_type=jnp.float32) + f1_b_ref[...]
    # TODO(synk): BERT uses exact erf GELU; tanh-approx GELU used here (tiny deviation).
    h1 = jax.nn.gelu(h1, approximate=True)
    h2 = jnp.dot(h1, f2_w_ref[...], preferred_element_type=jnp.float32) + f2_b_ref[...]
    o_ref[0] = _ln(h2 + x1, ln2_g_ref[...], ln2_b_ref[...])


def bert_layer_fused(x, ext_mask, lp):
    B, L, H = x.shape
    args = [x, ext_mask,
            lp["qkv_w"], lp["qkv_b"], lp["o_w"], lp["o_b"],
            lp["ln1_g"], lp["ln1_b"],
            lp["f1_w"], lp["f1_b"], lp["f2_w"], lp["f2_b"],
            lp["ln2_g"], lp["ln2_b"]]
    in_specs = ([pl.BlockSpec((1, L, H), lambda b: (b, 0, 0)),
                 pl.BlockSpec((1, 1, L), lambda b: (b, 0, 0))]
                + [_full2d(a) for a in args[2:]])
    return pl.pallas_call(
        _bert_layer_kernel,
        out_shape=jax.ShapeDtypeStruct((B, L, H), jnp.float32),
        grid=(B,),
        in_specs=in_specs,
        out_specs=pl.BlockSpec((1, L, H), lambda b: (b, 0, 0)),
        compiler_params=pltpu.CompilerParams(
            dimension_semantics=("parallel",),
            vmem_limit_bytes=16 * 1024 * 1024),
    )(*args)


# ---- fused pooler + all classification heads + hierarchy gating ----
def _heads_kernel(cls_ref, pw_ref, pb_ref, w1_ref, b1_ref,
                  c1w2_ref, c1b2_ref, c1w3_ref, c1b3_ref,
                  c2w2_ref, c2b2_ref, c2w3_ref, c2b3_ref,
                  fw2_ref, fb2_ref, fw3_ref, fb3_ref,
                  e12w1_ref, e12b1_ref, e12w2_ref, e12b2_ref,
                  e2fw1_ref, e2fb1_ref, e2fw2_ref, e2fb2_ref,
                  c1_out_ref, c2_out_ref, f_out_ref):
    def lin(x, w_ref, b_ref):
        return jnp.dot(x, w_ref[...], preferred_element_type=jnp.float32) + b_ref[...]

    pooled = jnp.tanh(lin(cls_ref[...], pw_ref, pb_ref))          # pooler
    # lane-dense fused first layer of the three heads: (B,32) @ (32,288)
    h1 = lin(pooled, w1_ref, b1_ref)
    h_c1 = h1[:, :H_C1]
    h_c2 = h1[:, H_C1:H_C1 + H_C2]
    h_f = h1[:, H_C1 + H_C2:H_C1 + H_C2 + H_F]
    # coarse1_pred  (BN folded into the linears; dropout(eval) = identity)
    coarse1 = lin(lin(h_c1, c1w2_ref, c1b2_ref), c1w3_ref, c1b3_ref)
    # expand_1_2: Linear->BN->ReLU->Linear->BN->ReLU
    w12 = jnp.maximum(lin(jnp.maximum(lin(coarse1, e12w1_ref, e12b1_ref), 0.0),
                          e12w2_ref, e12b2_ref), 0.0)
    # coarse2_pred and gating
    coarse2 = lin(lin(h_c2, c2w2_ref, c2b2_ref), c2w3_ref, c2b3_ref)
    coarse2_att = coarse2 * w12
    # expand_2_f
    w2f = jnp.maximum(lin(jnp.maximum(lin(coarse2_att, e2fw1_ref, e2fb1_ref), 0.0),
                          e2fw2_ref, e2fb2_ref), 0.0)
    # fine_pred and gating
    fine = lin(lin(h_f, fw2_ref, fb2_ref), fw3_ref, fb3_ref) * w2f
    c1_out_ref[...] = coarse1
    c2_out_ref[...] = coarse2
    f_out_ref[...] = fine


def heads_fused(cls_vec, params):
    hp = params["heads"]
    B = cls_vec.shape[0]
    args = [cls_vec,
            hp["pool_w"], hp["pool_b"], hp["w1cat"], hp["b1cat"],
            hp["c1_w2"], hp["c1_b2"], hp["c1_w3"], hp["c1_b3"],
            hp["c2_w2"], hp["c2_b2"], hp["c2_w3"], hp["c2_b3"],
            hp["f_w2"], hp["f_b2"], hp["f_w3"], hp["f_b3"],
            hp["e12_w1"], hp["e12_b1"], hp["e12_w2"], hp["e12_b2"],
            hp["e2f_w1"], hp["e2f_b1"], hp["e2f_w2"], hp["e2f_b2"]]
    return pl.pallas_call(
        _heads_kernel,
        out_shape=(jax.ShapeDtypeStruct((B, N_CAT1), jnp.float32),
                   jax.ShapeDtypeStruct((B, N_CAT2), jnp.float32),
                   jax.ShapeDtypeStruct((B, N_CAT3), jnp.float32)),
        grid=(1,),
        in_specs=[_full2d(a) for a in args],
        out_specs=(pl.BlockSpec((B, N_CAT1), lambda i: (0, 0)),
                   pl.BlockSpec((B, N_CAT2), lambda i: (0, 0)),
                   pl.BlockSpec((B, N_CAT3), lambda i: (0, 0))),
        compiler_params=pltpu.CompilerParams(
            vmem_limit_bytes=16 * 1024 * 1024),
    )(*args)


# ----------------------------- glue / sub-modules ----------------------------
def conv2d_relu(x_nhwc, w, b, stride, pad):
    """Conv2d (+ReLU) via im2col (glue) + one Pallas matmul (hot path)."""
    B, H, W, Cin = x_nhwc.shape
    kh, kw, _, Cout = w.shape
    xp = jnp.pad(x_nhwc, ((0, 0), (pad, pad), (pad, pad), (0, 0)))
    Ho = (H + 2 * pad - kh) // stride + 1
    Wo = (W + 2 * pad - kw) // stride + 1
    patches = []
    for i in range(kh):
        for j in range(kw):
            patches.append(xp[:, i:i + stride * Ho:stride, j:j + stride * Wo:stride, :])
    pat = jnp.concatenate(patches, axis=-1)                # (B, Ho, Wo, kh*kw*Cin)
    K = kh * kw * Cin
    Kp = ((K + 7) // 8) * 8                                # pad contraction dim
    mat = pat.reshape(B * Ho * Wo, K)
    wmat = w.reshape(K, Cout)
    if Kp != K:
        mat = jnp.pad(mat, ((0, 0), (0, Kp - K)))
        wmat = jnp.pad(wmat, ((0, Kp - K), (0, 0)))
    y = pallas_linear(mat, wmat, b, act="relu")
    return y.reshape(B, Ho, Wo, Cout)


def adaptive_avg_pool_3x1(x_nhwc):
    """AdaptiveAvgPool2d((3,1)) over H,W (matches PyTorch window arithmetic)."""
    B, H, W, C = x_nhwc.shape
    rows = []
    for i in range(3):
        s = (i * H) // 3
        e = -(-((i + 1) * H) // 3)  # ceil
        rows.append(jnp.mean(x_nhwc[:, s:e, :, :], axis=(1, 2)))
    return jnp.stack(rows, axis=1)        # (B, 3, C) == flatten+transpose of NCHW


def embed_image_raw(img_nchw, params):
    """Image token embeddings BEFORE the shared LayerNorm (applied jointly later)."""
    p = params["img"]
    e = params["emb"]
    x = jnp.transpose(img_nchw, (0, 2, 3, 1))              # NCHW -> NHWC
    # TODO(synk): full ResNet-50 bottleneck stack [3,4,6,3] replaced by a
    # 2-conv stride-2 stand-in producing C_IMG feature channels.
    x = conv2d_relu(x, p["conv1_w"], p["conv1_b"], stride=2, pad=1)
    x = conv2d_relu(x, p["conv2_w"], p["conv2_b"], stride=2, pad=1)
    x = adaptive_avg_pool_3x1(x)                           # (B, 3, C_IMG)
    B = x.shape[0]
    tok = pallas_linear(x.reshape(B * 3, C_IMG), p["proj_w"], p["proj_b"])
    tok = tok.reshape(B, 3, HIDDEN)
    cls_e = jnp.broadcast_to(e["word"][CLS_ID], (B, 1, HIDDEN))
    sep_e = jnp.broadcast_to(e["word"][SEP_ID], (B, 1, HIDDEN))
    tok = jnp.concatenate([cls_e, tok, sep_e], axis=1)     # (B, 5, H)
    L = tok.shape[1]
    pos = e["pos"][:L][None, :, :]
    typ = e["type"][0][None, None, :]                      # token_type_ids = 0
    return tok + pos + typ                                 # dropout(0.4): eval -> id


def embed_text_raw(text_ids, params):
    """Text token embeddings BEFORE the shared LayerNorm."""
    e = params["emb"]
    B, S = text_ids.shape
    tok = jnp.take(e["word"], text_ids, axis=0)            # (B, S, H)
    pos = e["pos"][:S][None, :, :]
    typ = e["type"][1][None, None, :]                      # token_type_ids = 1
    return tok + pos + typ


def custom_model_forward(params, img, text, mask):
    img_emb = embed_image_raw(img, params)                 # (B, 5, H)
    txt_emb = embed_text_raw(text, params)                 # (B, S, H)
    emb = jnp.concatenate([img_emb, txt_emb], axis=1)      # (B, 13, H)
    B, L0, H = emb.shape
    # Shared embeddings LayerNorm is per-token, so LN(concat) == concat(LN, LN).
    emb = pallas_layernorm(emb.reshape(B * L0, H),
                           params["emb"]["ln_g"], params["emb"]["ln_b"])
    emb = emb.reshape(B, L0, H)
    # pad sequence 13 -> 16; padded key positions are masked out below.
    x = jnp.pad(emb, ((0, 0), (0, L_PAD - L0), (0, 0)))
    attn_mask = jnp.concatenate(
        [jnp.ones((B, img_emb.shape[1]), jnp.float32),
         mask.astype(jnp.float32),
         jnp.zeros((B, L_PAD - L0), jnp.float32)], axis=1)
    ext = ((1.0 - attn_mask) * jnp.finfo(jnp.float32).min)[:, None, :]  # (B,1,L)
    for lp in params["layers"]:
        x = bert_layer_fused(x, ext, lp)
    cls = x[:, 0, :]                                       # [CLS] token
    return heads_fused(cls, params)                        # (coarse1, coarse2, fine)


# ------------------------------ parameter init ------------------------------
def _dense(key, fan_in, fan_out, scale=0.02):
    kw, kb = jax.random.split(key)
    w = scale * jax.random.normal(kw, (fan_in, fan_out), jnp.float32)
    b = scale * jax.random.normal(kb, (fan_out,), jnp.float32)
    return w, b


def _bn_fold(w, b, n):
    # BatchNorm1d(eval) after a Linear:  (x@w + b)*s + t  ==  x@(w*s) + (b*s + t)
    gamma = jnp.ones((n,), jnp.float32)
    beta = jnp.zeros((n,), jnp.float32)
    mean = jnp.zeros((n,), jnp.float32)
    var = jnp.ones((n,), jnp.float32)
    s = gamma / jnp.sqrt(var + BN_EPS)
    t = beta - mean * s
    return w * s[None, :], b * s + t


def _head3_folded(key, d_in, d_hid, d_out):
    # Linear -> BN -> Dropout -> Linear -> BN -> Dropout -> Linear  (eval mode)
    k1, k2, k3 = jax.random.split(key, 3)
    w1, b1 = _dense(k1, d_in, d_hid)
    w1, b1 = _bn_fold(w1, b1, d_hid)
    w2, b2 = _dense(k2, d_hid, d_hid)
    w2, b2 = _bn_fold(w2, b2, d_hid)
    w3, b3 = _dense(k3, d_hid, d_out)
    return w1, b1, w2, b2, w3, b3


def _head2_folded(key, d_in, d_hid, d_out):
    # Linear -> BN -> ReLU -> Linear -> BN -> ReLU  (eval mode; ReLU kept in-kernel)
    k1, k2 = jax.random.split(key, 2)
    w1, b1 = _dense(k1, d_in, d_hid)
    w1, b1 = _bn_fold(w1, b1, d_hid)
    w2, b2 = _dense(k2, d_hid, d_out)
    w2, b2 = _bn_fold(w2, b2, d_out)
    return w1, b1, w2, b2


def build_params(key):
    keys = jax.random.split(key, 32)
    ki = iter(keys)
    nxt = lambda: next(ki)
    params = {}
    params["emb"] = {
        "word": 0.02 * jax.random.normal(nxt(), (VOCAB, HIDDEN), jnp.float32),
        "pos": 0.02 * jax.random.normal(nxt(), (MAX_POS, HIDDEN), jnp.float32),
        "type": 0.02 * jax.random.normal(nxt(), (TYPE_VOCAB, HIDDEN), jnp.float32),
        "ln_g": jnp.ones((HIDDEN,), jnp.float32),
        "ln_b": jnp.zeros((HIDDEN,), jnp.float32),
    }
    pw, pb = _dense(nxt(), C_IMG, HIDDEN)
    params["img"] = {
        "conv1_w": 0.05 * jax.random.normal(nxt(), (3, 3, 3, C_FEAT), jnp.float32),
        "conv1_b": jnp.zeros((C_FEAT,), jnp.float32),
        "conv2_w": 0.05 * jax.random.normal(nxt(), (3, 3, C_FEAT, C_IMG), jnp.float32),
        "conv2_b": jnp.zeros((C_IMG,), jnp.float32),
        "proj_w": pw, "proj_b": pb,
    }
    layers = []
    for _ in range(N_LAYERS):
        qw, qb = _dense(nxt(), HIDDEN, HIDDEN)
        kw_, kb = _dense(nxt(), HIDDEN, HIDDEN)
        vw, vb = _dense(nxt(), HIDDEN, HIDDEN)
        ow, ob = _dense(nxt(), HIDDEN, HIDDEN)
        f1w, f1b = _dense(nxt(), HIDDEN, FFN)
        f2w, f2b = _dense(nxt(), FFN, HIDDEN)
        layers.append({
            "qkv_w": jnp.concatenate([qw, kw_, vw], axis=1),        # fused (H, 3H)
            "qkv_b": jnp.concatenate([qb, kb, vb]).reshape(1, 3 * HIDDEN),
            "o_w": ow, "o_b": ob.reshape(1, HIDDEN),
            "ln1_g": jnp.ones((1, HIDDEN), jnp.float32),
            "ln1_b": jnp.zeros((1, HIDDEN), jnp.float32),
            "f1_w": f1w, "f1_b": f1b.reshape(1, FFN),
            "f2_w": f2w, "f2_b": f2b.reshape(1, HIDDEN),
            "ln2_g": jnp.ones((1, HIDDEN), jnp.float32),
            "ln2_b": jnp.zeros((1, HIDDEN), jnp.float32),
        })
    params["layers"] = layers

    pool_w, pool_b = _dense(nxt(), HIDDEN, HIDDEN)
    c1 = _head3_folded(nxt(), HIDDEN, H_C1, N_CAT1)
    c2 = _head3_folded(nxt(), HIDDEN, H_C2, N_CAT2)
    fi = _head3_folded(nxt(), HIDDEN, H_F, N_CAT3)
    e12 = _head2_folded(nxt(), N_CAT1, H_C1, N_CAT2)
    e2f = _head2_folded(nxt(), N_CAT2, H_C2, N_CAT3)
    params["heads"] = {
        "pool_w": pool_w, "pool_b": pool_b.reshape(1, HIDDEN),
        # lane-dense fused first layers of the three heads: (32, 64+96+128)
        "w1cat": jnp.concatenate([c1[0], c2[0], fi[0]], axis=1),
        "b1cat": jnp.concatenate([c1[1], c2[1], fi[1]]).reshape(1, H_C1 + H_C2 + H_F),
        "c1_w2": c1[2], "c1_b2": c1[3].reshape(1, H_C1),
        "c1_w3": c1[4], "c1_b3": c1[5].reshape(1, N_CAT1),
        "c2_w2": c2[2], "c2_b2": c2[3].reshape(1, H_C2),
        "c2_w3": c2[4], "c2_b3": c2[5].reshape(1, N_CAT2),
        "f_w2": fi[2], "f_b2": fi[3].reshape(1, H_F),
        "f_w3": fi[4], "f_b3": fi[5].reshape(1, N_CAT3),
        "e12_w1": e12[0], "e12_b1": e12[1].reshape(1, H_C1),
        "e12_w2": e12[2], "e12_b2": e12[3].reshape(1, N_CAT2),
        "e2f_w1": e2f[0], "e2f_b1": e2f[1].reshape(1, H_C2),
        "e2f_w2": e2f[2], "e2f_b2": e2f[3].reshape(1, N_CAT3),
    }
    return params


# ------------------------------------ main -----------------------------------
if __name__ == "__main__":
    key = jax.random.PRNGKey(0)
    pkey, ikey, tkey = jax.random.split(key, 3)
    params = build_params(pkey)

    B, S = 2, 8
    img = jax.random.normal(ikey, (B, 3, 16, 16), jnp.float32)   # NCHW like PyTorch
    text = jax.random.randint(tkey, (B, S), 5, VOCAB).astype(jnp.int32)
    mask = jnp.array([[1, 1, 1, 1, 1, 1, 1, 1],
                      [1, 1, 1, 1, 1, 1, 0, 0]], jnp.int32)

    fwd = jax.jit(custom_model_forward)
    c1, c2, fine = fwd(params, img, text, mask)
    jax.block_until_ready((c1, c2, fine))

    assert c1.shape == (B, N_CAT1)
    assert c2.shape == (B, N_CAT2)
    assert fine.shape == (B, N_CAT3)
    assert bool(jnp.all(jnp.isfinite(c1)) & jnp.all(jnp.isfinite(c2))
                & jnp.all(jnp.isfinite(fine)))
    print("KERNEL_OK")
</pallas_src>

<mosaic_0001>
module attributes {stable_mosaic.version = 11 : i64} {
  func.func @_matmul_kernel(%arg0: i32, %arg1: memref<128x32xf32, #tpu.memory_space<vmem>>, %arg2: memref<32x16xf32, #tpu.memory_space<vmem>>, %arg3: memref<1x16xf32, #tpu.memory_space<vmem>>, %arg4: memref<128x16xf32, #tpu.memory_space<vmem>>) attributes {dimension_semantics = [#tpu.dimension_semantics<arbitrary>], iteration_bounds = array<i64: 1>, scalar_prefetch = 0 : i64, scratch_operands = 0 : i64, tpu.core_type = #tpu.core_type<tc>, window_params = [{pipeline_mode = #tpu.pipeline_mode<synchronous>, transform_indices = @transform_0, window_bounds = array<i64: 128, 32>}, {pipeline_mode = #tpu.pipeline_mode<synchronous>, transform_indices = @transform_1, window_bounds = array<i64: 32, 16>}, {pipeline_mode = #tpu.pipeline_mode<synchronous>, transform_indices = @transform_2, window_bounds = array<i64: 1, 16>}, {pipeline_mode = #tpu.pipeline_mode<synchronous>, transform_indices = @transform_3, window_bounds = array<i64: 128, 16>}]} {
    %c0 = arith.constant 0 : index
    %c0_0 = arith.constant 0 : index
    %0 = vector.load %arg1[%c0, %c0_0] : memref<128x32xf32, #tpu.memory_space<vmem>>, vector<128x32xf32>
    %c0_1 = arith.constant 0 : index
    %c0_2 = arith.constant 0 : index
    %1 = vector.load %arg2[%c0_1, %c0_2] : memref<32x16xf32, #tpu.memory_space<vmem>>, vector<32x16xf32>
    %cst = arith.constant dense<0.000000e+00> : vector<128x16xf32>
    %2 = tpu.matmul %0, %1, %cst {dimension_numbers = #tpu.dot_dimension_numbers<[1], [0], [0], [1], [0, 0, 1, 1], [], []>} : vector<128x32xf32>, vector<32x16xf32>, vector<128x16xf32> -> vector<128x16xf32>
    %c0_3 = arith.constant 0 : index
    %c0_4 = arith.constant 0 : index
    %3 = vector.load %arg3[%c0_3, %c0_4] : memref<1x16xf32, #tpu.memory_space<vmem>>, vector<1x16xf32>
    %4 = vector.broadcast %3 : vector<1x16xf32> to vector<128x16xf32>
    %5 = arith.addf %2, %4 : vector<128x16xf32>
    %cst_5 = arith.constant 0.000000e+00 : f32
    %6 = vector.broadcast %cst_5 : f32 to vector<128x16xf32>
    %7 = arith.maximumf %5, %6 : vector<128x16xf32>
    %c0_6 = arith.constant 0 : index
    %c0_7 = arith.constant 0 : index
    %8 = vector.load %arg4[%c0_6, %c0_7] : memref<128x16xf32, #tpu.memory_space<vmem>>, vector<128x16xf32>
    tpu.vector_store %arg4[%c0_6, %c0_7], %7 {strides = array<i32>} : memref<128x16xf32, #tpu.memory_space<vmem>>, vector<128x16xf32>,
    return
  }
  func.func @transform_0(%arg0: i32) -> (i32, i32) {
    %c0_i32 = arith.constant 0 : i32
    %c0_i32_0 = arith.constant 0 : i32
    %c0_i32_1 = arith.constant 0 : i32
    return %c0_i32, %c0_i32_0 : i32, i32
  }
  func.func @transform_1(%arg0: i32) -> (i32, i32) {
    %c0_i32 = arith.constant 0 : i32
    %c0_i32_0 = arith.constant 0 : i32
    %c0_i32_1 = arith.constant 0 : i32
    return %c0_i32, %c0_i32_0 : i32, i32
  }
  func.func @transform_2(%arg0: i32) -> (i32, i32) {
    %c0_i32 = arith.constant 0 : i32
    %c0_i32_0 = arith.constant 0 : i32
    %c0_i32_1 = arith.constant 0 : i32
    return %c0_i32, %c0_i32_0 : i32, i32
  }
  func.func @transform_3(%arg0: i32) -> (i32, i32) {
    %c0_i32 = arith.constant 0 : i32
    %c0_i32_0 = arith.constant 0 : i32
    %c0_i32_1 = arith.constant 0 : i32
    return %c0_i32, %c0_i32_0 : i32, i32
  }
}

module attributes {stable_mosaic.version = 11 : i64} {
  func.func @_matmul_kernel(%arg0: i32, %arg1: memref<32x144xf32, #tpu.memory_space<vmem>>, %arg2: memref<144x64xf32, #tpu.memory_space<vmem>>, %arg3: memref<1x64xf32, #tpu.memory_space<vmem>>, %arg4: memref<32x64xf32, #tpu.memory_space<vmem>>) attributes {dimension_semantics = [#tpu.dimension_semantics<arbitrary>], iteration_bounds = array<i64: 1>, scalar_prefetch = 0 : i64, scratch_operands = 0 : i64, tpu.core_type = #tpu.core_type<tc>, window_params = [{pipeline_mode = #tpu.pipeline_mode<synchronous>, transform_indices = @transform_0, window_bounds = array<i64: 32, 144>}, {pipeline_mode = #tpu.pipeline_mode<synchronous>, transform_indices = @transform_1, window_bounds = array<i64: 144, 64>}, {pipeline_mode = #tpu.pipeline_mode<synchronous>, transform_indices = @transform_2, window_bounds = array<i64: 1, 64>}, {pipeline_mode = #tpu.pipeline_mode<synchronous>, transform_indices = @transform_3, window_bounds = array<i64: 32, 64>}]} {
    %c0 = arith.constant 0 : index
    %c0_0 = arith.constant 0 : index
    %0 = vector.load %arg1[%c0, %c0_0] : memref<32x144xf32, #tpu.memory_space<vmem>>, vector<32x144xf32>
    %c0_1 = arith.constant 0 : index
    %c0_2 = arith.constant 0 : index
    %1 = vector.load %arg2[%c0_1, %c0_2] : memref<144x64xf32, #tpu.memory_space<vmem>>, vector<144x64xf32>
    %cst = arith.constant dense<0.000000e+00> : vector<32x64xf32>
    %2 = tpu.matmul %0, %1, %cst {dimension_numbers = #tpu.dot_dimension_numbers<[1], [0], [0], [1], [0, 0, 1, 1], [], []>} : vector<32x144xf32>, vector<144x64xf32>, vector<32x64xf32> -> vector<32x64xf32>
    %c0_3 = arith.constant 0 : index
    %c0_4 = arith.constant 0 : index
    %3 = vector.load %arg3[%c0_3, %c0_4] : memref<1x64xf32, #tpu.memory_space<vmem>>, vector<1x64xf32>
    %4 = vector.broadcast %3 : vector<1x64xf32> to vector<32x64xf32>
    %5 = arith.addf %2, %4 : vector<32x64xf32>
    %cst_5 = arith.constant 0.000000e+00 : f32
    %6 = vector.broadcast %cst_5 : f32 to vector<32x64xf32>
    %7 = arith.maximumf %5, %6 : vector<32x64xf32>
    %c0_6 = arith.constant 0 : index
    %c0_7 = arith.constant 0 : index
    %8 = vector.load %arg4[%c0_6, %c0_7] : memref<32x64xf32, #tpu.memory_space<vmem>>, vector<32x64xf32>
    tpu.vector_store %arg4[%c0_6, %c0_7], %7 {strides = array<i32>} : memref<32x64xf32, #tpu.memory_space<vmem>>, vector<32x64xf32>,
    return
  }
  func.func @transform_0(%arg0: i32) -> (i32, i32) {
    %c0_i32 = arith.constant 0 : i32
    %c0_i32_0 = arith.constant 0 : i32
    %c0_i32_1 = arith.constant 0 : i32
    return %c0_i32, %c0_i32_0 : i32, i32
  }
  func.func @transform_1(%arg0: i32) -> (i32, i32) {
    %c0_i32 = arith.constant 0 : i32
    %c0_i32_0 = arith.constant 0 : i32
    %c0_i32_1 = arith.constant 0 : i32
    return %c0_i32, %c0_i32_0 : i32, i32
  }
  func.func @transform_2(%arg0: i32) -> (i32, i32) {
    %c0_i32 = arith.constant 0 : i32
    %c0_i32_0 = arith.constant 0 : i32
    %c0_i32_1 = arith.constant 0 : i32
    return %c0_i32, %c0_i32_0 : i32, i32
  }
  func.func @transform_3(%arg0: i32) -> (i32, i32) {
    %c0_i32 = arith.constant 0 : i32
    %c0_i32_0 = arith.constant 0 : i32
    %c0_i32_1 = arith.constant 0 : i32
    return %c0_i32, %c0_i32_0 : i32, i32
  }
}

module attributes {stable_mosaic.version = 11 : i64} {
  func.func @_matmul_kernel(%arg0: i32, %arg1: memref<6x64xf32, #tpu.memory_space<vmem>>, %arg2: memref<64x32xf32, #tpu.memory_space<vmem>>, %arg3: memref<1x32xf32, #tpu.memory_space<vmem>>, %arg4: memref<6x32xf32, #tpu.memory_space<vmem>>) attributes {dimension_semantics = [#tpu.dimension_semantics<arbitrary>], iteration_bounds = array<i64: 1>, scalar_prefetch = 0 : i64, scratch_operands = 0 : i64, tpu.core_type = #tpu.core_type<tc>, window_params = [{pipeline_mode = #tpu.pipeline_mode<synchronous>, transform_indices = @transform_0, window_bounds = array<i64: 6, 64>}, {pipeline_mode = #tpu.pipeline_mode<synchronous>, transform_indices = @transform_1, window_bounds = array<i64: 64, 32>}, {pipeline_mode = #tpu.pipeline_mode<synchronous>, transform_indices = @transform_2, window_bounds = array<i64: 1, 32>}, {pipeline_mode = #tpu.pipeline_mode<synchronous>, transform_indices = @transform_3, window_bounds = array<i64: 6, 32>}]} {
    %c0 = arith.constant 0 : index
    %c0_0 = arith.constant 0 : index
    %0 = vector.load %arg1[%c0, %c0_0] : memref<6x64xf32, #tpu.memory_space<vmem>>, vector<6x64xf32>
    %c0_1 = arith.constant 0 : index
    %c0_2 = arith.constant 0 : index
    %1 = vector.load %arg2[%c0_1, %c0_2] : memref<64x32xf32, #tpu.memory_space<vmem>>, vector<64x32xf32>
    %cst = arith.constant dense<0.000000e+00> : vector<6x32xf32>
    %2 = tpu.matmul %0, %1, %cst {dimension_numbers = #tpu.dot_dimension_numbers<[1], [0], [0], [1], [0, 0, 1, 1], [], []>} : vector<6x64xf32>, vector<64x32xf32>, vector<6x32xf32> -> vector<6x32xf32>
    %c0_3 = arith.constant 0 : index
    %c0_4 = arith.constant 0 : index
    %3 = vector.load %arg3[%c0_3, %c0_4] : memref<1x32xf32, #tpu.memory_space<vmem>>, vector<1x32xf32>
    %4 = vector.broadcast %3 : vector<1x32xf32> to vector<6x32xf32>
    %5 = arith.addf %2, %4 : vector<6x32xf32>
    %c0_5 = arith.constant 0 : index
    %c0_6 = arith.constant 0 : index
    %6 = vector.load %arg4[%c0_5, %c0_6] : memref<6x32xf32, #tpu.memory_space<vmem>>, vector<6x32xf32>
    tpu.vector_store %arg4[%c0_5, %c0_6], %5 {strides = array<i32>} : memref<6x32xf32, #tpu.memory_space<vmem>>, vector<6x32xf32>,
    return
  }
  func.func @transform_0(%arg0: i32) -> (i32, i32) {
    %c0_i32 = arith.constant 0 : i32
    %c0_i32_0 = arith.constant 0 : i32
    %c0_i32_1 = arith.constant 0 : i32
    return %c0_i32, %c0_i32_0 : i32, i32
  }
  func.func @transform_1(%arg0: i32) -> (i32, i32) {
    %c0_i32 = arith.constant 0 : i32
    %c0_i32_0 = arith.constant 0 : i32
    %c0_i32_1 = arith.constant 0 : i32
    return %c0_i32, %c0_i32_0 : i32, i32
  }
  func.func @transform_2(%arg0: i32) -> (i32, i32) {
    %c0_i32 = arith.constant 0 : i32
    %c0_i32_0 = arith.constant 0 : i32
    %c0_i32_1 = arith.constant 0 : i32
    return %c0_i32, %c0_i32_0 : i32, i32
  }
  func.func @transform_3(%arg0: i32) -> (i32, i32) {
    %c0_i32 = arith.constant 0 : i32
    %c0_i32_0 = arith.constant 0 : i32
    %c0_i32_1 = arith.constant 0 : i32
    return %c0_i32, %c0_i32_0 : i32, i32
  }
}

module attributes {stable_mosaic.version = 11 : i64} {
  func.func @_layernorm_kernel(%arg0: i32, %arg1: memref<26x32xf32, #tpu.memory_space<vmem>>, %arg2: memref<1x32xf32, #tpu.memory_space<vmem>>, %arg3: memref<1x32xf32, #tpu.memory_space<vmem>>, %arg4: memref<26x32xf32, #tpu.memory_space<vmem>>) attributes {dimension_semantics = [#tpu.dimension_semantics<arbitrary>], iteration_bounds = array<i64: 1>, scalar_prefetch = 0 : i64, scratch_operands = 0 : i64, tpu.core_type = #tpu.core_type<tc>, window_params = [{pipeline_mode = #tpu.pipeline_mode<synchronous>, transform_indices = @transform_0, window_bounds = array<i64: 26, 32>}, {pipeline_mode = #tpu.pipeline_mode<synchronous>, transform_indices = @transform_1, window_bounds = array<i64: 1, 32>}, {pipeline_mode = #tpu.pipeline_mode<synchronous>, transform_indices = @transform_2, window_bounds = array<i64: 1, 32>}, {pipeline_mode = #tpu.pipeline_mode<synchronous>, transform_indices = @transform_3, window_bounds = array<i64: 26, 32>}]} {
    %c0 = arith.constant 0 : index
    %c0_0 = arith.constant 0 : index
    %0 = vector.load %arg1[%c0, %c0_0] : memref<26x32xf32, #tpu.memory_space<vmem>>, vector<26x32xf32>
    %c0_1 = arith.constant 0 : index
    %c0_2 = arith.constant 0 : index
    %1 = vector.load %arg2[%c0_1, %c0_2] : memref<1x32xf32, #tpu.memory_space<vmem>>, vector<1x32xf32>
    %c0_3 = arith.constant 0 : index
    %c0_4 = arith.constant 0 : index
    %2 = vector.load %arg3[%c0_3, %c0_4] : memref<1x32xf32, #tpu.memory_space<vmem>>, vector<1x32xf32>
    %cst = arith.constant dense<0.000000e+00> : vector<26xf32>
    %3 = vector.multi_reduction <add>, %0, %cst [1] : vector<26x32xf32> to vector<26xf32>
    %4 = vector.shape_cast %3 : vector<26xf32> to vector<26x1xf32>
    %cst_5 = arith.constant 3.200000e+01 : f32
    %5 = vector.broadcast %cst_5 : f32 to vector<26x1xf32>
    %6 = arith.divf %4, %5 : vector<26x1xf32>
    %7 = vector.broadcast %6 : vector<26x1xf32> to vector<26x32xf32>
    %8 = arith.subf %0, %7 : vector<26x32xf32>
    %9 = arith.mulf %8, %8 : vector<26x32xf32>
    %cst_6 = arith.constant dense<0.000000e+00> : vector<26xf32>
    %10 = vector.multi_reduction <add>, %9, %cst_6 [1] : vector<26x32xf32> to vector<26xf32>
    %11 = vector.shape_cast %10 : vector<26xf32> to vector<26x1xf32>
    %cst_7 = arith.constant 3.200000e+01 : f32
    %12 = vector.broadcast %cst_7 : f32 to vector<26x1xf32>
    %13 = arith.divf %11, %12 : vector<26x1xf32>
    %14 = vector.broadcast %6 : vector<26x1xf32> to vector<26x32xf32>
    %15 = arith.subf %0, %14 : vector<26x32xf32>
    %cst_8 = arith.constant 9.99999996E-13 : f32
    %16 = vector.broadcast %cst_8 : f32 to vector<26x1xf32>
    %17 = arith.addf %13, %16 : vector<26x1xf32>
    %18 = math.rsqrt %17 : vector<26x1xf32>
    %19 = vector.broadcast %18 : vector<26x1xf32> to vector<26x32xf32>
    %20 = arith.mulf %15, %19 : vector<26x32xf32>
    %21 = vector.broadcast %1 : vector<1x32xf32> to vector<26x32xf32>
    %22 = arith.mulf %20, %21 : vector<26x32xf32>
    %23 = vector.broadcast %2 : vector<1x32xf32> to vector<26x32xf32>
    %24 = arith.addf %22, %23 : vector<26x32xf32>
    %c0_9 = arith.constant 0 : index
    %c0_10 = arith.constant 0 : index
    %25 = vector.load %arg4[%c0_9, %c0_10] : memref<26x32xf32, #tpu.memory_space<vmem>>, vector<26x32xf32>
    tpu.vector_store %arg4[%c0_9, %c0_10], %24 {strides = array<i32>} : memref<26x32xf32, #tpu.memory_space<vmem>>, vector<26x32xf32>,
    return
  }
  func.func @transform_0(%arg0: i32) -> (i32, i32) {
    %c0_i32 = arith.constant 0 : i32
    %c0_i32_0 = arith.constant 0 : i32
    %c0_i32_1 = arith.constant 0 : i32
    return %c0_i32, %c0_i32_0 : i32, i32
  }
  func.func @transform_1(%arg0: i32) -> (i32, i32) {
    %c0_i32 = arith.constant 0 : i32
    %c0_i32_0 = arith.constant 0 : i32
    %c0_i32_1 = arith.constant 0 : i32
    return %c0_i32, %c0_i32_0 : i32, i32
  }
  func.func @transform_2(%arg0: i32) -> (i32, i32) {
    %c0_i32 = arith.constant 0 : i32
    %c0_i32_0 = arith.constant 0 : i32
    %c0_i32_1 = arith.constant 0 : i32
    return %c0_i32, %c0_i32_0 : i32, i32
  }
  func.func @transform_3(%arg0: i32) -> (i32, i32) {
    %c0_i32 = arith.constant 0 : i32
    %c0_i32_0 = arith.constant 0 : i32
    %c0_i32_1 = arith.constant 0 : i32
    return %c0_i32, %c0_i32_0 : i32, i32
  }
}

module attributes {stable_mosaic.version = 11 : i64} {
  func.func @_bert_layer_kernel(%arg0: i32, %arg1: memref<1x16x32xf32, #tpu.memory_space<vmem>>, %arg2: memref<1x1x16xf32, #tpu.memory_space<vmem>>, %arg3: memref<32x96xf32, #tpu.memory_space<vmem>>, %arg4: memref<1x96xf32, #tpu.memory_space<vmem>>, %arg5: memref<32x32xf32, #tpu.memory_space<vmem>>, %arg6: memref<1x32xf32, #tpu.memory_space<vmem>>, %arg7: memref<1x32xf32, #tpu.memory_space<vmem>>, %arg8: memref<1x32xf32, #tpu.memory_space<vmem>>, %arg9: memref<32x64xf32, #tpu.memory_space<vmem>>, %arg10: memref<1x64xf32, #tpu.memory_space<vmem>>, %arg11: memref<64x32xf32, #tpu.memory_space<vmem>>, %arg12: memref<1x32xf32, #tpu.memory_space<vmem>>, %arg13: memref<1x32xf32, #tpu.memory_space<vmem>>, %arg14: memref<1x32xf32, #tpu.memory_space<vmem>>, %arg15: memref<1x16x32xf32, #tpu.memory_space<vmem>>) attributes {dimension_semantics = [#tpu.dimension_semantics<parallel>], iteration_bounds = array<i64: 2>, scalar_prefetch = 0 : i64, scratch_operands = 0 : i64, tpu.core_type = #tpu.core_type<tc>, window_params = [{transform_indices = @transform_0, window_bounds = array<i64: 1, 16, 32>}, {transform_indices = @transform_1, window_bounds = array<i64: 1, 1, 16>}, {pipeline_mode = #tpu.pipeline_mode<synchronous>, transform_indices = @transform_2, window_bounds = array<i64: 32, 96>}, {pipeline_mode = #tpu.pipeline_mode<synchronous>, transform_indices = @transform_3, window_bounds = array<i64: 1, 96>}, {pipeline_mode = #tpu.pipeline_mode<synchronous>, transform_indices = @transform_4, window_bounds = array<i64: 32, 32>}, {pipeline_mode = #tpu.pipeline_mode<synchronous>, transform_indices = @transform_5, window_bounds = array<i64: 1, 32>}, {pipeline_mode = #tpu.pipeline_mode<synchronous>, transform_indices = @transform_6, window_bounds = array<i64: 1, 32>}, {pipeline_mode = #tpu.pipeline_mode<synchronous>, transform_indices = @transform_7, window_bounds = array<i64: 1, 32>}, {pipeline_mode = #tpu.pipeline_mode<synchronous>, transform_indices = @transform_8, window_bounds = array<i64: 32, 64>}, {pipeline_mode = #tpu.pipeline_mode<synchronous>, transform_indices = @transform_9, window_bounds = array<i64: 1, 64>}, {pipeline_mode = #tpu.pipeline_mode<synchronous>, transform_indices = @transform_10, window_bounds = array<i64: 64, 32>}, {pipeline_mode = #tpu.pipeline_mode<synchronous>, transform_indices = @transform_11, window_bounds = array<i64: 1, 32>}, {pipeline_mode = #tpu.pipeline_mode<synchronous>, transform_indices = @transform_12, window_bounds = array<i64: 1, 32>}, {pipeline_mode = #tpu.pipeline_mode<synchronous>, transform_indices = @transform_13, window_bounds = array<i64: 1, 32>}, {transform_indices = @transform_14, window_bounds = array<i64: 1, 16, 32>}]} {
    %c0 = arith.constant 0 : index
    %c0_0 = arith.constant 0 : index
    %c0_1 = arith.constant 0 : index
    %0 = vector.load %arg1[%c0, %c0_0, %c0_1] : memref<1x16x32xf32, #tpu.memory_space<vmem>>, vector<1x16x32xf32>
    %1 = vector.shape_cast %0 : vector<1x16x32xf32> to vector<16x32xf32>
    %c0_2 = arith.constant 0 : index
    %c0_3 = arith.constant 0 : index
    %c0_4 = arith.constant 0 : index
    %2 = vector.load %arg2[%c0_2, %c0_3, %c0_4] : memref<1x1x16xf32, #tpu.memory_space<vmem>>, vector<1x1x16xf32>
    %3 = vector.shape_cast %2 : vector<1x1x16xf32> to vector<1x16xf32>
    %c0_5 = arith.constant 0 : index
    %c0_6 = arith.constant 0 : index
    %4 = vector.load %arg3[%c0_5, %c0_6] : memref<32x96xf32, #tpu.memory_space<vmem>>, vector<32x96xf32>
    %cst = arith.constant dense<0.000000e+00> : vector<16x96xf32>
    %5 = tpu.matmul %1, %4, %cst {dimension_numbers = #tpu.dot_dimension_numbers<[1], [0], [0], [1], [0, 0, 1, 1], [], []>} : vector<16x32xf32>, vector<32x96xf32>, vector<16x96xf32> -> vector<16x96xf32>
    %c0_7 = arith.constant 0 : index
    %c0_8 = arith.constant 0 : index
    %6 = vector.load %arg4[%c0_7, %c0_8] : memref<1x96xf32, #tpu.memory_space<vmem>>, vector<1x96xf32>
    %7 = vector.broadcast %6 : vector<1x96xf32> to vector<16x96xf32>
    %8 = arith.addf %5, %7 : vector<16x96xf32>
    %9 = vector.extract_strided_slice %8 {offsets = [0, 0], sizes = [16, 8], strides = [1, 1]} : vector<16x96xf32> to vector<16x8xf32>
    %10 = vector.extract_strided_slice %8 {offsets = [0, 32], sizes = [16, 8], strides = [1, 1]} : vector<16x96xf32> to vector<16x8xf32>
    %11 = vector.extract_strided_slice %8 {offsets = [0, 64], sizes = [16, 8], strides = [1, 1]} : vector<16x96xf32> to vector<16x8xf32>
    %cst_9 = arith.constant dense<0.000000e+00> : vector<16x16xf32>
    %12 = tpu.matmul %9, %10, %cst_9 {dimension_numbers = #tpu.dot_dimension_numbers<[1], [1], [0], [0], [0, 0, 1, 0], [], []>} : vector<16x8xf32>, vector<16x8xf32>, vector<16x16xf32> -> vector<16x16xf32>
    %cst_10 = arith.constant 0.353553385 : f32
    %13 = vector.broadcast %cst_10 : f32 to vector<16x16xf32>
    %14 = arith.mulf %12, %13 : vector<16x16xf32>
    %15 = vector.broadcast %3 : vector<1x16xf32> to vector<16x16xf32>
    %16 = arith.addf %14, %15 : vector<16x16xf32>
    %cst_11 = arith.constant dense<0xFF800000> : vector<16xf32>
    %17 = vector.multi_reduction <maximumf>, %16, %cst_11 [1] : vector<16x16xf32> to vector<16xf32>
    %18 = vector.shape_cast %17 : vector<16xf32> to vector<16x1xf32>
    %19 = vector.broadcast %18 : vector<16x1xf32> to vector<16x16xf32>
    %20 = arith.subf %16, %19 : vector<16x16xf32>
    %21 = math.exp %20 : vector<16x16xf32>
    %cst_12 = arith.constant dense<0.000000e+00> : vector<16xf32>
    %22 = vector.multi_reduction <add>, %21, %cst_12 [1] : vector<16x16xf32> to vector<16xf32>
    %23 = vector.shape_cast %22 : vector<16xf32> to vector<16x1xf32>
    %24 = vector.broadcast %23 : vector<16x1xf32> to vector<16x16xf32>
    %25 = arith.divf %21, %24 : vector<16x16xf32>
    %cst_13 = arith.constant dense<0.000000e+00> : vector<16x8xf32>
    %26 = tpu.matmul %25, %11, %cst_13 {dimension_numbers = #tpu.dot_dimension_numbers<[1], [0], [0], [1], [0, 0, 1, 1], [], []>} : vector<16x16xf32>, vector<16x8xf32>, vector<16x8xf32> -> vector<16x8xf32>
    %27 = vector.extract_strided_slice %8 {offsets = [0, 8], sizes = [16, 8], strides = [1, 1]} : vector<16x96xf32> to vector<16x8xf32>
    %28 = vector.extract_strided_slice %8 {offsets = [0, 40], sizes = [16, 8], strides = [1, 1]} : vector<16x96xf32> to vector<16x8xf32>
    %29 = vector.extract_strided_slice %8 {offsets = [0, 72], sizes = [16, 8], strides = [1, 1]} : vector<16x96xf32> to vector<16x8xf32>
    %cst_14 = arith.constant dense<0.000000e+00> : vector<16x16xf32>
    %30 = tpu.matmul %27, %28, %cst_14 {dimension_numbers = #tpu.dot_dimension_numbers<[1], [1], [0], [0], [0, 0, 1, 0], [], []>} : vector<16x8xf32>, vector<16x8xf32>, vector<16x16xf32> -> vector<16x16xf32>
    %cst_15 = arith.constant 0.353553385 : f32
    %31 = vector.broadcast %cst_15 : f32 to vector<16x16xf32>
    %32 = arith.mulf %30, %31 : vector<16x16xf32>
    %33 = vector.broadcast %3 : vector<1x16xf32> to vector<16x16xf32>
    %34 = arith.addf %32, %33 : vector<16x16xf32>
    %cst_16 = arith.constant dense<0xFF800000> : vector<16xf32>
    %35 = vector.multi_reduction <maximumf>, %34, %cst_16 [1] : vector<16x16xf32> to vector<16xf32>
    %36 = vector.shape_cast %35 : vector<16xf32> to vector<16x1xf32>
    %37 = vector.broadcast %36 : vector<16x1xf32> to vector<16x16xf32>
    %38 = arith.subf %34, %37 : vector<16x16xf32>
    %39 = math.exp %38 : vector<16x16xf32>
    %cst_17 = arith.constant dense<0.000000e+00> : vector<16xf32>
    %40 = vector.multi_reduction <add>, %39, %cst_17 [1] : vector<16x16xf32> to vector<16xf32>
    %41 = vector.shape_cast %40 : vector<16xf32> to vector<16x1xf32>
    %42 = vector.broadcast %41 : vector<16x1xf32> to vector<16x16xf32>
    %43 = arith.divf %39, %42 : vector<16x16xf32>
    %cst_18 = arith.constant dense<0.000000e+00> : vector<16x8xf32>
    %44 = tpu.matmul %43, %29, %cst_18 {dimension_numbers = #tpu.dot_dimension_numbers<[1], [0], [0], [1], [0, 0, 1, 1], [], []>} : vector<16x16xf32>, vector<16x8xf32>, vector<16x8xf32> -> vector<16x8xf32>
    %45 = vector.extract_strided_slice %8 {offsets = [0, 16], sizes = [16, 8], strides = [1, 1]} : vector<16x96xf32> to vector<16x8xf32>
    %46 = vector.extract_strided_slice %8 {offsets = [0, 48], sizes = [16, 8], strides = [1, 1]} : vector<16x96xf32> to vector<16x8xf32>
    %47 = vector.extract_strided_slice %8 {offsets = [0, 80], sizes = [16, 8], strides = [1, 1]} : vector<16x96xf32> to vector<16x8xf32>
    %cst_19 = arith.constant dense<0.000000e+00> : vector<16x16xf32>
    %48 = tpu.matmul %45, %46, %cst_19 {dimension_numbers = #tpu.dot_dimension_numbers<[1], [1], [0], [0], [0, 0, 1, 0], [], []>} : vector<16x8xf32>, vector<16x8xf32>, vector<16x16xf32> -> vector<16x16xf32>
    %cst_20 = arith.constant 0.353553385 : f32
    %49 = vector.broadcast %cst_20 : f32 to vector<16x16xf32>
    %50 = arith.mulf %48, %49 : vector<16x16xf32>
    %51 = vector.broadcast %3 : vector<1x16xf32> to vector<16x16xf32>
    %52 = arith.addf %50, %51 : vector<16x16xf32>
    %cst_21 = arith.constant dense<0xFF800000> : vector<16xf32>
    %53 = vector.multi_reduction <maximumf>, %52, %cst_21 [1] : vector<16x16xf32> to vector<16xf32>
    %54 = vector.shape_cast %53 : vector<16xf32> to vector<16x1xf32>
    %55 = vector.broadcast %54 : vector<16x1xf32> to vector<16x16xf32>
    %56 = arith.subf %52, %55 : vector<16x16xf32>
    %57 = math.exp %56 : vector<16x16xf32>
    %cst_22 = arith.constant dense<0.000000e+00> : vector<16xf32>
    %58 = vector.multi_reduction <add>, %57, %cst_22 [1] : vector<16x16xf32> to vector<16xf32>
    %59 = vector.shape_cast %58 : vector<16xf32> to vector<16x1xf32>
    %60 = vector.broadcast %59 : vector<16x1xf32> to vector<16x16xf32>
    %61 = arith.divf %57, %60 : vector<16x16xf32>
    %cst_23 = arith.constant dense<0.000000e+00> : vector<16x8xf32>
    %62 = tpu.matmul %61, %47, %cst_23 {dimension_numbers = #tpu.dot_dimension_numbers<[1], [0], [0], [1], [0, 0, 1, 1], [], []>} : vector<16x16xf32>, vector<16x8xf32>, vector<16x8xf32> -> vector<16x8xf32>
    %63 = vector.extract_strided_slice %8 {offsets = [0, 24], sizes = [16, 8], strides = [1, 1]} : vector<16x96xf32> to vector<16x8xf32>
    %64 = vector.extract_strided_slice %8 {offsets = [0, 56], sizes = [16, 8], strides = [1, 1]} : vector<16x96xf32> to vector<16x8xf32>
    %65 = vector.extract_strided_slice %8 {offsets = [0, 88], sizes = [16, 8], strides = [1, 1]} : vector<16x96xf32> to vector<16x8xf32>
    %cst_24 = arith.constant dense<0.000000e+00> : vector<16x16xf32>
    %66 = tpu.matmul %63, %64, %cst_24 {dimension_numbers = #tpu.dot_dimension_numbers<[1], [1], [0], [0], [0, 0, 1, 0], [], []>} : vector<16x8xf32>, vector<16x8xf32>, vector<16x16xf32> -> vector<16x16xf32>
    %cst_25 = arith.constant 0.353553385 : f32
    %67 = vector.broadcast %cst_25 : f32 to vector<16x16xf32>
    %68 = arith.mulf %66, %67 : vector<16x16xf32>
    %69 = vector.broadcast %3 : vector<1x16xf32> to vector<16x16xf32>
    %70 = arith.addf %68, %69 : vector<16x16xf32>
    %cst_26 = arith.constant dense<0xFF800000> : vector<16xf32>
    %71 = vector.multi_reduction <maximumf>, %70, %cst_26 [1] : vector<16x16xf32> to vector<16xf32>
    %72 = vector.shape_cast %71 : vector<16xf32> to vector<16x1xf32>
    %73 = vector.broadcast %72 : vector<16x1xf32> to vector<16x16xf32>
    %74 = arith.subf %70, %73 : vector<16x16xf32>
    %75 = math.exp %74 : vector<16x16xf32>
    %cst_27 = arith.constant dense<0.000000e+00> : vector<16xf32>
    %76 = vector.multi_reduction <add>, %75, %cst_27 [1] : vector<16x16xf32> to vector<16xf32>
    %77 = vector.shape_cast %76 : vector<16xf32> to vector<16x1xf32>
    %78 = vector.broadcast %77 : vector<16x1xf32> to vector<16x16xf32>
    %79 = arith.divf %75, %78 : vector<16x16xf32>
    %cst_28 = arith.constant dense<0.000000e+00> : vector<16x8xf32>
    %80 = tpu.matmul %79, %65, %cst_28 {dimension_numbers = #tpu.dot_dimension_numbers<[1], [0], [0], [1], [0, 0, 1, 1], [], []>} : vector<16x16xf32>, vector<16x8xf32>, vector<16x8xf32> -> vector<16x8xf32>
    %81 = tpu.concatenate %26, %44, %62, %80 in 1 : vector<16x8xf32>, vector<16x8xf32>, vector<16x8xf32>, vector<16x8xf32> -> vector<16x32xf32>
    %c0_29 = arith.constant 0 : index
    %c0_30 = arith.constant 0 : index
    %82 = vector.load %arg5[%c0_29, %c0_30] : memref<32x32xf32, #tpu.memory_space<vmem>>, vector<32x32xf32>
    %cst_31 = arith.constant dense<0.000000e+00> : vector<16x32xf32>
    %83 = tpu.matmul %81, %82, %cst_31 {dimension_numbers = #tpu.dot_dimension_numbers<[1], [0], [0], [1], [0, 0, 1, 1], [], []>} : vector<16x32xf32>, vector<32x32xf32>, vector<16x32xf32> -> vector<16x32xf32>
    %c0_32 = arith.constant 0 : index
    %c0_33 = arith.constant 0 : index
    %84 = vector.load %arg6[%c0_32, %c0_33] : memref<1x32xf32, #tpu.memory_space<vmem>>, vector<1x32xf32>
    %85 = vector.broadcast %84 : vector<1x32xf32> to vector<16x32xf32>
    %86 = arith.addf %83, %85 : vector<16x32xf32>
    %87 = arith.addf %86, %1 : vector<16x32xf32>
    %c0_34 = arith.constant 0 : index
    %c0_35 = arith.constant 0 : index
    %88 = vector.load %arg7[%c0_34, %c0_35] : memref<1x32xf32, #tpu.memory_space<vmem>>, vector<1x32xf32>
    %c0_36 = arith.constant 0 : index
    %c0_37 = arith.constant 0 : index
    %89 = vector.load %arg8[%c0_36, %c0_37] : memref<1x32xf32, #tpu.memory_space<vmem>>, vector<1x32xf32>
    %cst_38 = arith.constant dense<0.000000e+00> : vector<16xf32>
    %90 = vector.multi_reduction <add>, %87, %cst_38 [1] : vector<16x32xf32> to vector<16xf32>
    %91 = vector.shape_cast %90 : vector<16xf32> to vector<16x1xf32>
    %cst_39 = arith.constant 3.200000e+01 : f32
    %92 = vector.broadcast %cst_39 : f32 to vector<16x1xf32>
    %93 = arith.divf %91, %92 : vector<16x1xf32>
    %94 = vector.broadcast %93 : vector<16x1xf32> to vector<16x32xf32>
    %95 = arith.subf %87, %94 : vector<16x32xf32>
    %96 = arith.mulf %95, %95 : vector<16x32xf32>
    %cst_40 = arith.constant dense<0.000000e+00> : vector<16xf32>
    %97 = vector.multi_reduction <add>, %96, %cst_40 [1] : vector<16x32xf32> to vector<16xf32>
    %98 = vector.shape_cast %97 : vector<16xf32> to vector<16x1xf32>
    %cst_41 = arith.constant 3.200000e+01 : f32
    %99 = vector.broadcast %cst_41 : f32 to vector<16x1xf32>
    %100 = arith.divf %98, %99 : vector<16x1xf32>
    %101 = vector.broadcast %93 : vector<16x1xf32> to vector<16x32xf32>
    %102 = arith.subf %87, %101 : vector<16x32xf32>
    %cst_42 = arith.constant 9.99999996E-13 : f32
    %103 = vector.broadcast %cst_42 : f32 to vector<16x1xf32>
    %104 = arith.addf %100, %103 : vector<16x1xf32>
    %105 = math.rsqrt %104 : vector<16x1xf32>
    %106 = vector.broadcast %105 : vector<16x1xf32> to vector<16x32xf32>
    %107 = arith.mulf %102, %106 : vector<16x32xf32>
    %108 = vector.broadcast %88 : vector<1x32xf32> to vector<16x32xf32>
    %109 = arith.mulf %107, %108 : vector<16x32xf32>
    %110 = vector.broadcast %89 : vector<1x32xf32> to vector<16x32xf32>
    %111 = arith.addf %109, %110 : vector<16x32xf32>
    %c0_43 = arith.constant 0 : index
    %c0_44 = arith.constant 0 : index
    %112 = vector.load %arg9[%c0_43, %c0_44] : memref<32x64xf32, #tpu.memory_space<vmem>>, vector<32x64xf32>
    %cst_45 = arith.constant dense<0.000000e+00> : vector<16x64xf32>
    %113 = tpu.matmul %111, %112, %cst_45 {dimension_numbers = #tpu.dot_dimension_numbers<[1], [0], [0], [1], [0, 0, 1, 1], [], []>} : vector<16x32xf32>, vector<32x64xf32>, vector<16x64xf32> -> vector<16x64xf32>
    %c0_46 = arith.constant 0 : index
    %c0_47 = arith.constant 0 : index
    %114 = vector.load %arg10[%c0_46, %c0_47] : memref<1x64xf32, #tpu.memory_space<vmem>>, vector<1x64xf32>
    %115 = vector.broadcast %114 : vector<1x64xf32> to vector<16x64xf32>
    %116 = arith.addf %113, %115 : vector<16x64xf32>
    %117 = arith.mulf %116, %116 : vector<16x64xf32>
    %118 = arith.mulf %116, %117 : vector<16x64xf32>
    %cst_48 = arith.constant 4.471500e-02 : f32
    %119 = vector.broadcast %cst_48 : f32 to vector<16x64xf32>
    %120 = arith.mulf %119, %118 : vector<16x64xf32>
    %121 = arith.addf %116, %120 : vector<16x64xf32>
    %cst_49 = arith.constant 0.797884583 : f32
    %122 = vector.broadcast %cst_49 : f32 to vector<16x64xf32>
    %123 = arith.mulf %122, %121 : vector<16x64xf32>
    %124 = math.tanh %123 : vector<16x64xf32>
    %cst_50 = arith.constant 1.000000e+00 : f32
    %125 = vector.broadcast %cst_50 : f32 to vector<16x64xf32>
    %126 = arith.addf %125, %124 : vector<16x64xf32>
    %cst_51 = arith.constant 5.000000e-01 : f32
    %127 = vector.broadcast %cst_51 : f32 to vector<16x64xf32>
    %128 = arith.mulf %127, %126 : vector<16x64xf32>
    %129 = arith.mulf %116, %128 : vector<16x64xf32>
    %c0_52 = arith.constant 0 : index
    %c0_53 = arith.constant 0 : index
    %130 = vector.load %arg11[%c0_52, %c0_53] : memref<64x32xf32, #tpu.memory_space<vmem>>, vector<64x32xf32>
    %cst_54 = arith.constant dense<0.000000e+00> : vector<16x32xf32>
    %131 = tpu.matmul %129, %130, %cst_54 {dimension_numbers = #tpu.dot_dimension_numbers<[1], [0], [0], [1], [0, 0, 1, 1], [], []>} : vector<16x64xf32>, vector<64x32xf32>, vector<16x32xf32> -> vector<16x32xf32>
    %c0_55 = arith.constant 0 : index
    %c0_56 = arith.constant 0 : index
    %132 = vector.load %arg12[%c0_55, %c0_56] : memref<1x32xf32, #tpu.memory_space<vmem>>, vector<1x32xf32>
    %133 = vector.broadcast %132 : vector<1x32xf32> to vector<16x32xf32>
    %134 = arith.addf %131, %133 : vector<16x32xf32>
    %135 = arith.addf %134, %111 : vector<16x32xf32>
    %c0_57 = arith.constant 0 : index
    %c0_58 = arith.constant 0 : index
    %136 = vector.load %arg13[%c0_57, %c0_58] : memref<1x32xf32, #tpu.memory_space<vmem>>, vector<1x32xf32>
    %c0_59 = arith.constant 0 : index
    %c0_60 = arith.constant 0 : index
    %137 = vector.load %arg14[%c0_59, %c0_60] : memref<1x32xf32, #tpu.memory_space<vmem>>, vector<1x32xf32>
    %cst_61 = arith.constant dense<0.000000e+00> : vector<16xf32>
    %138 = vector.multi_reduction <add>, %135, %cst_61 [1] : vector<16x32xf32> to vector<16xf32>
    %139 = vector.shape_cast %138 : vector<16xf32> to vector<16x1xf32>
    %cst_62 = arith.constant 3.200000e+01 : f32
    %140 = vector.broadcast %cst_62 : f32 to vector<16x1xf32>
    %141 = arith.divf %139, %140 : vector<16x1xf32>
    %142 = vector.broadcast %141 : vector<16x1xf32> to vector<16x32xf32>
    %143 = arith.subf %135, %142 : vector<16x32xf32>
    %144 = arith.mulf %143, %143 : vector<16x32xf32>
    %cst_63 = arith.constant dense<0.000000e+00> : vector<16xf32>
    %145 = vector.multi_reduction <add>, %144, %cst_63 [1] : vector<16x32xf32> to vector<16xf32>
    %146 = vector.shape_cast %145 : vector<16xf32> to vector<16x1xf32>
    %cst_64 = arith.constant 3.200000e+01 : f32
    %147 = vector.broadcast %cst_64 : f32 to vector<16x1xf32>
    %148 = arith.divf %146, %147 : vector<16x1xf32>
    %149 = vector.broadcast %141 : vector<16x1xf32> to vector<16x32xf32>
    %150 = arith.subf %135, %149 : vector<16x32xf32>
    %cst_65 = arith.constant 9.99999996E-13 : f32
    %151 = vector.broadcast %cst_65 : f32 to vector<16x1xf32>
    %152 = arith.addf %148, %151 : vector<16x1xf32>
    %153 = math.rsqrt %152 : vector<16x1xf32>
    %154 = vector.broadcast %153 : vector<16x1xf32> to vector<16x32xf32>
    %155 = arith.mulf %150, %154 : vector<16x32xf32>
    %156 = vector.broadcast %136 : vector<1x32xf32> to vector<16x32xf32>
    %157 = arith.mulf %155, %156 : vector<16x32xf32>
    %158 = vector.broadcast %137 : vector<1x32xf32> to vector<16x32xf32>
    %159 = arith.addf %157, %158 : vector<16x32xf32>
    %c0_66 = arith.constant 0 : index
    %c0_67 = arith.constant 0 : index
    %c0_68 = arith.constant 0 : index
    %160 = vector.load %arg15[%c0_66, %c0_67, %c0_68] : memref<1x16x32xf32, #tpu.memory_space<vmem>>, vector<1x16x32xf32>
    %161 = vector.shape_cast %160 : vector<1x16x32xf32> to vector<16x32xf32>
    %162 = vector.shape_cast %159 : vector<16x32xf32> to vector<1x16x32xf32>
    tpu.vector_store %arg15[%c0_66, %c0_67, %c0_68], %162 {strides = array<i32>} : memref<1x16x32xf32, #tpu.memory_space<vmem>>, vector<1x16x32xf32>,
    return
  }
  func.func @transform_0(%arg0: i32) -> (i32, i32, i32) {
    %c0_i32 = arith.constant 0 : i32
    %c0_i32_0 = arith.constant 0 : i32
    %c0_i32_1 = arith.constant 0 : i32
    return %arg0, %c0_i32, %c0_i32_0 : i32, i32, i32
  }
  func.func @transform_1(%arg0: i32) -> (i32, i32, i32) {
    %c0_i32 = arith.constant 0 : i32
    %c0_i32_0 = arith.constant 0 : i32
    %c0_i32_1 = arith.constant 0 : i32
    return %arg0, %c0_i32, %c0_i32_0 : i32, i32, i32
  }
  func.func @transform_2(%arg0: i32) -> (i32, i32) {
    %c0_i32 = arith.constant 0 : i32
    %c0_i32_0 = arith.constant 0 : i32
    %c0_i32_1 = arith.constant 0 : i32
    return %c0_i32, %c0_i32_0 : i32, i32
  }
  func.func @transform_3(%arg0: i32) -> (i32, i32) {
    %c0_i32 = arith.constant 0 : i32
    %c0_i32_0 = arith.constant 0 : i32
    %c0_i32_1 = arith.constant 0 : i32
    return %c0_i32, %c0_i32_0 : i32, i32
  }
  func.func @transform_4(%arg0: i32) -> (i32, i32) {
    %c0_i32 = arith.constant 0 : i32
    %c0_i32_0 = arith.constant 0 : i32
    %c0_i32_1 = arith.constant 0 : i32
    return %c0_i32, %c0_i32_0 : i32, i32
  }
  func.func @transform_5(%arg0: i32) -> (i32, i32) {
    %c0_i32 = arith.constant 0 : i32
    %c0_i32_0 = arith.constant 0 : i32
    %c0_i32_1 = arith.constant 0 : i32
    return %c0_i32, %c0_i32_0 : i32, i32
  }
  func.func @transform_6(%arg0: i32) -> (i32, i32) {
    %c0_i32 = arith.constant 0 : i32
    %c0_i32_0 = arith.constant 0 : i32
    %c0_i32_1 = arith.constant 0 : i32
    return %c0_i32, %c0_i32_0 : i32, i32
  }
  func.func @transform_7(%arg0: i32) -> (i32, i32) {
    %c0_i32 = arith.constant 0 : i32
    %c0_i32_0 = arith.constant 0 : i32
    %c0_i32_1 = arith.constant 0 : i32
    return %c0_i32, %c0_i32_0 : i32, i32
  }
  func.func @transform_8(%arg0: i32) -> (i32, i32) {
    %c0_i32 = arith.constant 0 : i32
    %c0_i32_0 = arith.constant 0 : i32
    %c0_i32_1 = arith.constant 0 : i32
    return %c0_i32, %c0_i32_0 : i32, i32
  }
  func.func @transform_9(%arg0: i32) -> (i32, i32) {
    %c0_i32 = arith.constant 0 : i32
    %c0_i32_0 = arith.constant 0 : i32
    %c0_i32_1 = arith.constant 0 : i32
    return %c0_i32, %c0_i32_0 : i32, i32
  }
  func.func @transform_10(%arg0: i32) -> (i32, i32) {
    %c0_i32 = arith.constant 0 : i32
    %c0_i32_0 = arith.constant 0 : i32
    %c0_i32_1 = arith.constant 0 : i32
    return %c0_i32, %c0_i32_0 : i32, i32
  }
  func.func @transform_11(%arg0: i32) -> (i32, i32) {
    %c0_i32 = arith.constant 0 : i32
    %c0_i32_0 = arith.constant 0 : i32
    %c0_i32_1 = arith.constant 0 : i32
    return %c0_i32, %c0_i32_0 : i32, i32
  }
  func.func @transform_12(%arg0: i32) -> (i32, i32) {
    %c0_i32 = arith.constant 0 : i32
    %c0_i32_0 = arith.constant 0 : i32
    %c0_i32_1 = arith.constant 0 : i32
    return %c0_i32, %c0_i32_0 : i32, i32
  }
  func.func @transform_13(%arg0: i32) -> (i32, i32) {
    %c0_i32 = arith.constant 0 : i32
    %c0_i32_0 = arith.constant 0 : i32
    %c0_i32_1 = arith.constant 0 : i32
    return %c0_i32, %c0_i32_0 : i32, i32
  }
  func.func @transform_14(%arg0: i32) -> (i32, i32, i32) {
    %c0_i32 = arith.constant 0 : i32
    %c0_i32_0 = arith.constant 0 : i32
    %c0_i32_1 = arith.constant 0 : i32
    return %arg0, %c0_i32, %c0_i32_0 : i32, i32, i32
  }
}

module attributes {stable_mosaic.version = 11 : i64} {
  func.func @_heads_kernel(%arg0: i32, %arg1: memref<2x32xf32, #tpu.memory_space<vmem>>, %arg2: memref<32x32xf32, #tpu.memory_space<vmem>>, %arg3: memref<1x32xf32, #tpu.memory_space<vmem>>, %arg4: memref<32x288xf32, #tpu.memory_space<vmem>>, %arg5: memref<1x288xf32, #tpu.memory_space<vmem>>, %arg6: memref<64x64xf32, #tpu.memory_space<vmem>>, %arg7: memref<1x64xf32, #tpu.memory_space<vmem>>, %arg8: memref<64x4xf32, #tpu.memory_space<vmem>>, %arg9: memref<1x4xf32, #tpu.memory_space<vmem>>, %arg10: memref<96x96xf32, #tpu.memory_space<vmem>>, %arg11: memref<1x96xf32, #tpu.memory_space<vmem>>, %arg12: memref<96x8xf32, #tpu.memory_space<vmem>>, %arg13: memref<1x8xf32, #tpu.memory_space<vmem>>, %arg14: memref<128x128xf32, #tpu.memory_space<vmem>>, %arg15: memref<1x128xf32, #tpu.memory_space<vmem>>, %arg16: memref<128x16xf32, #tpu.memory_space<vmem>>, %arg17: memref<1x16xf32, #tpu.memory_space<vmem>>, %arg18: memref<4x64xf32, #tpu.memory_space<vmem>>, %arg19: memref<1x64xf32, #tpu.memory_space<vmem>>, %arg20: memref<64x8xf32, #tpu.memory_space<vmem>>, %arg21: memref<1x8xf32, #tpu.memory_space<vmem>>, %arg22: memref<8x96xf32, #tpu.memory_space<vmem>>, %arg23: memref<1x96xf32, #tpu.memory_space<vmem>>, %arg24: memref<96x16xf32, #tpu.memory_space<vmem>>, %arg25: memref<1x16xf32, #tpu.memory_space<vmem>>, %arg26: memref<2x4xf32, #tpu.memory_space<vmem>>, %arg27: memref<2x8xf32, #tpu.memory_space<vmem>>, %arg28: memref<2x16xf32, #tpu.memory_space<vmem>>) attributes {dimension_semantics = [#tpu.dimension_semantics<arbitrary>], iteration_bounds = array<i64: 1>, scalar_prefetch = 0 : i64, scratch_operands = 0 : i64, tpu.core_type = #tpu.core_type<tc>, window_params = [{pipeline_mode = #tpu.pipeline_mode<synchronous>, transform_indices = @transform_0, window_bounds = array<i64: 2, 32>}, {pipeline_mode = #tpu.pipeline_mode<synchronous>, transform_indices = @transform_1, window_bounds = array<i64: 32, 32>}, {pipeline_mode = #tpu.pipeline_mode<synchronous>, transform_indices = @transform_2, window_bounds = array<i64: 1, 32>}, {pipeline_mode = #tpu.pipeline_mode<synchronous>, transform_indices = @transform_3, window_bounds = array<i64: 32, 288>}, {pipeline_mode = #tpu.pipeline_mode<synchronous>, transform_indices = @transform_4, window_bounds = array<i64: 1, 288>}, {pipeline_mode = #tpu.pipeline_mode<synchronous>, transform_indices = @transform_5, window_bounds = array<i64: 64, 64>}, {pipeline_mode = #tpu.pipeline_mode<synchronous>, transform_indices = @transform_6, window_bounds = array<i64: 1, 64>}, {pipeline_mode = #tpu.pipeline_mode<synchronous>, transform_indices = @transform_7, window_bounds = array<i64: 64, 4>}, {pipeline_mode = #tpu.pipeline_mode<synchronous>, transform_indices = @transform_8, window_bounds = array<i64: 1, 4>}, {pipeline_mode = #tpu.pipeline_mode<synchronous>, transform_indices = @transform_9, window_bounds = array<i64: 96, 96>}, {pipeline_mode = #tpu.pipeline_mode<synchronous>, transform_indices = @transform_10, window_bounds = array<i64: 1, 96>}, {pipeline_mode = #tpu.pipeline_mode<synchronous>, transform_indices = @transform_11, window_bounds = array<i64: 96, 8>}, {pipeline_mode = #tpu.pipeline_mode<synchronous>, transform_indices = @transform_12, window_bounds = array<i64: 1, 8>}, {pipeline_mode = #tpu.pipeline_mode<synchronous>, transform_indices = @transform_13, window_bounds = array<i64: 128, 128>}, {pipeline_mode = #tpu.pipeline_mode<synchronous>, transform_indices = @transform_14, window_bounds = array<i64: 1, 128>}, {pipeline_mode = #tpu.pipeline_mode<synchronous>, transform_indices = @transform_15, window_bounds = array<i64: 128, 16>}, {pipeline_mode = #tpu.pipeline_mode<synchronous>, transform_indices = @transform_16, window_bounds = array<i64: 1, 16>}, {pipeline_mode = #tpu.pipeline_mode<synchronous>, transform_indices = @transform_17, window_bounds = array<i64: 4, 64>}, {pipeline_mode = #tpu.pipeline_mode<synchronous>, transform_indices = @transform_18, window_bounds = array<i64: 1, 64>}, {pipeline_mode = #tpu.pipeline_mode<synchronous>, transform_indices = @transform_19, window_bounds = array<i64: 64, 8>}, {pipeline_mode = #tpu.pipeline_mode<synchronous>, transform_indices = @transform_20, window_bounds = array<i64: 1, 8>}, {pipeline_mode = #tpu.pipeline_mode<synchronous>, transform_indices = @transform_21, window_bounds = array<i64: 8, 96>}, {pipeline_mode = #tpu.pipeline_mode<synchronous>, transform_indices = @transform_22, window_bounds = array<i64: 1, 96>}, {pipeline_mode = #tpu.pipeline_mode<synchronous>, transform_indices = @transform_23, window_bounds = array<i64: 96, 16>}, {pipeline_mode = #tpu.pipeline_mode<synchronous>, transform_indices = @transform_24, window_bounds = array<i64: 1, 16>}, {pipeline_mode = #tpu.pipeline_mode<synchronous>, transform_indices = @transform_25, window_bounds = array<i64: 2, 4>}, {pipeline_mode = #tpu.pipeline_mode<synchronous>, transform_indices = @transform_26, window_bounds = array<i64: 2, 8>}, {pipeline_mode = #tpu.pipeline_mode<synchronous>, transform_indices = @transform_27, window_bounds = array<i64: 2, 16>}]} {
    %c0 = arith.constant 0 : index
    %c0_0 = arith.constant 0 : index
    %0 = vector.load %arg1[%c0, %c0_0] : memref<2x32xf32, #tpu.memory_space<vmem>>, vector<2x32xf32>
    %c0_1 = arith.constant 0 : index
    %c0_2 = arith.constant 0 : index
    %1 = vector.load %arg2[%c0_1, %c0_2] : memref<32x32xf32, #tpu.memory_space<vmem>>, vector<32x32xf32>
    %cst = arith.constant dense<0.000000e+00> : vector<2x32xf32>
    %2 = tpu.matmul %0, %1, %cst {dimension_numbers = #tpu.dot_dimension_numbers<[1], [0], [0], [1], [0, 0, 1, 1], [], []>} : vector<2x32xf32>, vector<32x32xf32>, vector<2x32xf32> -> vector<2x32xf32>
    %c0_3 = arith.constant 0 : index
    %c0_4 = arith.constant 0 : index
    %3 = vector.load %arg3[%c0_3, %c0_4] : memref<1x32xf32, #tpu.memory_space<vmem>>, vector<1x32xf32>
    %4 = vector.broadcast %3 : vector<1x32xf32> to vector<2x32xf32>
    %5 = arith.addf %2, %4 : vector<2x32xf32>
    %6 = math.tanh %5 : vector<2x32xf32>
    %c0_5 = arith.constant 0 : index
    %c0_6 = arith.constant 0 : index
    %7 = vector.load %arg4[%c0_5, %c0_6] : memref<32x288xf32, #tpu.memory_space<vmem>>, vector<32x288xf32>
    %cst_7 = arith.constant dense<0.000000e+00> : vector<2x288xf32>
    %8 = tpu.matmul %6, %7, %cst_7 {dimension_numbers = #tpu.dot_dimension_numbers<[1], [0], [0], [1], [0, 0, 1, 1], [], []>} : vector<2x32xf32>, vector<32x288xf32>, vector<2x288xf32> -> vector<2x288xf32>
    %c0_8 = arith.constant 0 : index
    %c0_9 = arith.constant 0 : index
    %9 = vector.load %arg5[%c0_8, %c0_9] : memref<1x288xf32, #tpu.memory_space<vmem>>, vector<1x288xf32>
    %10 = vector.broadcast %9 : vector<1x288xf32> to vector<2x288xf32>
    %11 = arith.addf %8, %10 : vector<2x288xf32>
    %12 = vector.extract_strided_slice %11 {offsets = [0, 0], sizes = [2, 64], strides = [1, 1]} : vector<2x288xf32> to vector<2x64xf32>
    %13 = vector.extract_strided_slice %11 {offsets = [0, 64], sizes = [2, 96], strides = [1, 1]} : vector<2x288xf32> to vector<2x96xf32>
    %14 = vector.extract_strided_slice %11 {offsets = [0, 160], sizes = [2, 128], strides = [1, 1]} : vector<2x288xf32> to vector<2x128xf32>
    %c0_10 = arith.constant 0 : index
    %c0_11 = arith.constant 0 : index
    %15 = vector.load %arg6[%c0_10, %c0_11] : memref<64x64xf32, #tpu.memory_space<vmem>>, vector<64x64xf32>
    %cst_12 = arith.constant dense<0.000000e+00> : vector<2x64xf32>
    %16 = tpu.matmul %12, %15, %cst_12 {dimension_numbers = #tpu.dot_dimension_numbers<[1], [0], [0], [1], [0, 0, 1, 1], [], []>} : vector<2x64xf32>, vector<64x64xf32>, vector<2x64xf32> -> vector<2x64xf32>
    %c0_13 = arith.constant 0 : index
    %c0_14 = arith.constant 0 : index
    %17 = vector.load %arg7[%c0_13, %c0_14] : memref<1x64xf32, #tpu.memory_space<vmem>>, vector<1x64xf32>
    %18 = vector.broadcast %17 : vector<1x64xf32> to vector<2x64xf32>
    %19 = arith.addf %16, %18 : vector<2x64xf32>
    %c0_15 = arith.constant 0 : index
    %c0_16 = arith.constant 0 : index
    %20 = vector.load %arg8[%c0_15, %c0_16] : memref<64x4xf32, #tpu.memory_space<vmem>>, vector<64x4xf32>
    %cst_17 = arith.constant dense<0.000000e+00> : vector<2x4xf32>
    %21 = tpu.matmul %19, %20, %cst_17 {dimension_numbers = #tpu.dot_dimension_numbers<[1], [0], [0], [1], [0, 0, 1, 1], [], []>} : vector<2x64xf32>, vector<64x4xf32>, vector<2x4xf32> -> vector<2x4xf32>
    %c0_18 = arith.constant 0 : index
    %c0_19 = arith.constant 0 : index
    %22 = vector.load %arg9[%c0_18, %c0_19] : memref<1x4xf32, #tpu.memory_space<vmem>>, vector<1x4xf32>
    %23 = vector.broadcast %22 : vector<1x4xf32> to vector<2x4xf32>
    %24 = arith.addf %21, %23 : vector<2x4xf32>
    %c0_20 = arith.constant 0 : index
    %c0_21 = arith.constant 0 : index
    %25 = vector.load %arg18[%c0_20, %c0_21] : memref<4x64xf32, #tpu.memory_space<vmem>>, vector<4x64xf32>
    %cst_22 = arith.constant dense<0.000000e+00> : vector<2x64xf32>
    %26 = tpu.matmul %24, %25, %cst_22 {dimension_numbers = #tpu.dot_dimension_numbers<[1], [0], [0], [1], [0, 0, 1, 1], [], []>} : vector<2x4xf32>, vector<4x64xf32>, vector<2x64xf32> -> vector<2x64xf32>
    %c0_23 = arith.constant 0 : index
    %c0_24 = arith.constant 0 : index
    %27 = vector.load %arg19[%c0_23, %c0_24] : memref<1x64xf32, #tpu.memory_space<vmem>>, vector<1x64xf32>
    %28 = vector.broadcast %27 : vector<1x64xf32> to vector<2x64xf32>
    %29 = arith.addf %26, %28 : vector<2x64xf32>
    %cst_25 = arith.constant 0.000000e+00 : f32
    %30 = vector.broadcast %cst_25 : f32 to vector<2x64xf32>
    %31 = arith.maximumf %29, %30 : vector<2x64xf32>
    %c0_26 = arith.constant 0 : index
    %c0_27 = arith.constant 0 : index
    %32 = vector.load %arg20[%c0_26, %c0_27] : memref<64x8xf32, #tpu.memory_space<vmem>>, vector<64x8xf32>
    %cst_28 = arith.constant dense<0.000000e+00> : vector<2x8xf32>
    %33 = tpu.matmul %31, %32, %cst_28 {dimension_numbers = #tpu.dot_dimension_numbers<[1], [0], [0], [1], [0, 0, 1, 1], [], []>} : vector<2x64xf32>, vector<64x8xf32>, vector<2x8xf32> -> vector<2x8xf32>
    %c0_29 = arith.constant 0 : index
    %c0_30 = arith.constant 0 : index
    %34 = vector.load %arg21[%c0_29, %c0_30] : memref<1x8xf32, #tpu.memory_space<vmem>>, vector<1x8xf32>
    %35 = vector.broadcast %34 : vector<1x8xf32> to vector<2x8xf32>
    %36 = arith.addf %33, %35 : vector<2x8xf32>
    %cst_31 = arith.constant 0.000000e+00 : f32
    %37 = vector.broadcast %cst_31 : f32 to vector<2x8xf32>
    %38 = arith.maximumf %36, %37 : vector<2x8xf32>
    %c0_32 = arith.constant 0 : index
    %c0_33 = arith.constant 0 : index
    %39 = vector.load %arg10[%c0_32, %c0_33] : memref<96x96xf32, #tpu.memory_space<vmem>>, vector<96x96xf32>
    %cst_34 = arith.constant dense<0.000000e+00> : vector<2x96xf32>
    %40 = tpu.matmul %13, %39, %cst_34 {dimension_numbers = #tpu.dot_dimension_numbers<[1], [0], [0], [1], [0, 0, 1, 1], [], []>} : vector<2x96xf32>, vector<96x96xf32>, vector<2x96xf32> -> vector<2x96xf32>
    %c0_35 = arith.constant 0 : index
    %c0_36 = arith.constant 0 : index
    %41 = vector.load %arg11[%c0_35, %c0_36] : memref<1x96xf32, #tpu.memory_space<vmem>>, vector<1x96xf32>
    %42 = vector.broadcast %41 : vector<1x96xf32> to vector<2x96xf32>
    %43 = arith.addf %40, %42 : vector<2x96xf32>
    %c0_37 = arith.constant 0 : index
    %c0_38 = arith.constant 0 : index
    %44 = vector.load %arg12[%c0_37, %c0_38] : memref<96x8xf32, #tpu.memory_space<vmem>>, vector<96x8xf32>
    %cst_39 = arith.constant dense<0.000000e+00> : vector<2x8xf32>
    %45 = tpu.matmul %43, %44, %cst_39 {dimension_numbers = #tpu.dot_dimension_numbers<[1], [0], [0], [1], [0, 0, 1, 1], [], []>} : vector<2x96xf32>, vector<96x8xf32>, vector<2x8xf32> -> vector<2x8xf32>
    %c0_40 = arith.constant 0 : index
    %c0_41 = arith.constant 0 : index
    %46 = vector.load %arg13[%c0_40, %c0_41] : memref<1x8xf32, #tpu.memory_space<vmem>>, vector<1x8xf32>
    %47 = vector.broadcast %46 : vector<1x8xf32> to vector<2x8xf32>
    %48 = arith.addf %45, %47 : vector<2x8xf32>
    %49 = arith.mulf %48, %38 : vector<2x8xf32>
    %c0_42 = arith.constant 0 : index
    %c0_43 = arith.constant 0 : index
    %50 = vector.load %arg22[%c0_42, %c0_43] : memref<8x96xf32, #tpu.memory_space<vmem>>, vector<8x96xf32>
    %cst_44 = arith.constant dense<0.000000e+00> : vector<2x96xf32>
    %51 = tpu.matmul %49, %50, %cst_44 {dimension_numbers = #tpu.dot_dimension_numbers<[1], [0], [0], [1], [0, 0, 1, 1], [], []>} : vector<2x8xf32>, vector<8x96xf32>, vector<2x96xf32> -> vector<2x96xf32>
    %c0_45 = arith.constant 0 : index
    %c0_46 = arith.constant 0 : index
    %52 = vector.load %arg23[%c0_45, %c0_46] : memref<1x96xf32, #tpu.memory_space<vmem>>, vector<1x96xf32>
    %53 = vector.broadcast %52 : vector<1x96xf32> to vector<2x96xf32>
    %54 = arith.addf %51, %53 : vector<2x96xf32>
    %cst_47 = arith.constant 0.000000e+00 : f32
    %55 = vector.broadcast %cst_47 : f32 to vector<2x96xf32>
    %56 = arith.maximumf %54, %55 : vector<2x96xf32>
    %c0_48 = arith.constant 0 : index
    %c0_49 = arith.constant 0 : index
    %57 = vector.load %arg24[%c0_48, %c0_49] : memref<96x16xf32, #tpu.memory_space<vmem>>, vector<96x16xf32>
    %cst_50 = arith.constant dense<0.000000e+00> : vector<2x16xf32>
    %58 = tpu.matmul %56, %57, %cst_50 {dimension_numbers = #tpu.dot_dimension_numbers<[1], [0], [0], [1], [0, 0, 1, 1], [], []>} : vector<2x96xf32>, vector<96x16xf32>, vector<2x16xf32> -> vector<2x16xf32>
    %c0_51 = arith.constant 0 : index
    %c0_52 = arith.constant 0 : index
    %59 = vector.load %arg25[%c0_51, %c0_52] : memref<1x16xf32, #tpu.memory_space<vmem>>, vector<1x16xf32>
    %60 = vector.broadcast %59 : vector<1x16xf32> to vector<2x16xf32>
    %61 = arith.addf %58, %60 : vector<2x16xf32>
    %cst_53 = arith.constant 0.000000e+00 : f32
    %62 = vector.broadcast %cst_53 : f32 to vector<2x16xf32>
    %63 = arith.maximumf %61, %62 : vector<2x16xf32>
    %c0_54 = arith.constant 0 : index
    %c0_55 = arith.constant 0 : index
    %64 = vector.load %arg14[%c0_54, %c0_55] : memref<128x128xf32, #tpu.memory_space<vmem>>, vector<128x128xf32>
    %cst_56 = arith.constant dense<0.000000e+00> : vector<2x128xf32>
    %65 = tpu.matmul %14, %64, %cst_56 {dimension_numbers = #tpu.dot_dimension_numbers<[1], [0], [0], [1], [0, 0, 1, 1], [], []>} : vector<2x128xf32>, vector<128x128xf32>, vector<2x128xf32> -> vector<2x128xf32>
    %c0_57 = arith.constant 0 : index
    %c0_58 = arith.constant 0 : index
    %66 = vector.load %arg15[%c0_57, %c0_58] : memref<1x128xf32, #tpu.memory_space<vmem>>, vector<1x128xf32>
    %67 = vector.broadcast %66 : vector<1x128xf32> to vector<2x128xf32>
    %68 = arith.addf %65, %67 : vector<2x128xf32>
    %c0_59 = arith.constant 0 : index
    %c0_60 = arith.constant 0 : index
    %69 = vector.load %arg16[%c0_59, %c0_60] : memref<128x16xf32, #tpu.memory_space<vmem>>, vector<128x16xf32>
    %cst_61 = arith.constant dense<0.000000e+00> : vector<2x16xf32>
    %70 = tpu.matmul %68, %69, %cst_61 {dimension_numbers = #tpu.dot_dimension_numbers<[1], [0], [0], [1], [0, 0, 1, 1], [], []>} : vector<2x128xf32>, vector<128x16xf32>, vector<2x16xf32> -> vector<2x16xf32>
    %c0_62 = arith.constant 0 : index
    %c0_63 = arith.constant 0 : index
    %71 = vector.load %arg17[%c0_62, %c0_63] : memref<1x16xf32, #tpu.memory_space<vmem>>, vector<1x16xf32>
    %72 = vector.broadcast %71 : vector<1x16xf32> to vector<2x16xf32>
    %73 = arith.addf %70, %72 : vector<2x16xf32>
    %74 = arith.mulf %73, %63 : vector<2x16xf32>
    %c0_64 = arith.constant 0 : index
    %c0_65 = arith.constant 0 : index
    %75 = vector.load %arg26[%c0_64, %c0_65] : memref<2x4xf32, #tpu.memory_space<vmem>>, vector<2x4xf32>
    tpu.vector_store %arg26[%c0_64, %c0_65], %24 {strides = array<i32>} : memref<2x4xf32, #tpu.memory_space<vmem>>, vector<2x4xf32>,
    %c0_66 = arith.constant 0 : index
    %c0_67 = arith.constant 0 : index
    %76 = vector.load %arg27[%c0_66, %c0_67] : memref<2x8xf32, #tpu.memory_space<vmem>>, vector<2x8xf32>
    tpu.vector_store %arg27[%c0_66, %c0_67], %48 {strides = array<i32>} : memref<2x8xf32, #tpu.memory_space<vmem>>, vector<2x8xf32>,
    %c0_68 = arith.constant 0 : index
    %c0_69 = arith.constant 0 : index
    %77 = vector.load %arg28[%c0_68, %c0_69] : memref<2x16xf32, #tpu.memory_space<vmem>>, vector<2x16xf32>
    tpu.vector_store %arg28[%c0_68, %c0_69], %74 {strides = array<i32>} : memref<2x16xf32, #tpu.memory_space<vmem>>, vector<2x16xf32>,
    return
  }
  func.func @transform_0(%arg0: i32) -> (i32, i32) {
    %c0_i32 = arith.constant 0 : i32
    %c0_i32_0 = arith.constant 0 : i32
    %c0_i32_1 = arith.constant 0 : i32
    return %c0_i32, %c0_i32_0 : i32, i32
  }
  func.func @transform_1(%arg0: i32) -> (i32, i32) {
    %c0_i32 = arith.constant 0 : i32
    %c0_i32_0 = arith.constant 0 : i32
    %c0_i32_1 = arith.constant 0 : i32
    return %c0_i32, %c0_i32_0 : i32, i32
  }
  func.func @transform_2(%arg0: i32) -> (i32, i32) {
    %c0_i32 = arith.constant 0 : i32
    %c0_i32_0 = arith.constant 0 : i32
    %c0_i32_1 = arith.constant 0 : i32
    return %c0_i32, %c0_i32_0 : i32, i32
  }
  func.func @transform_3(%arg0: i32) -> (i32, i32) {
    %c0_i32 = arith.constant 0 : i32
    %c0_i32_0 = arith.constant 0 : i32
    %c0_i32_1 = arith.constant 0 : i32
    return %c0_i32, %c0_i32_0 : i32, i32
  }
  func.func @transform_4(%arg0: i32) -> (i32, i32) {
    %c0_i32 = arith.constant 0 : i32
    %c0_i32_0 = arith.constant 0 : i32
    %c0_i32_1 = arith.constant 0 : i32
    return %c0_i32, %c0_i32_0 : i32, i32
  }
  func.func @transform_5(%arg0: i32) -> (i32, i32) {
    %c0_i32 = arith.constant 0 : i32
    %c0_i32_0 = arith.constant 0 : i32
    %c0_i32_1 = arith.constant 0 : i32
    return %c0_i32, %c0_i32_0 : i32, i32
  }
  func.func @transform_6(%arg0: i32) -> (i32, i32) {
    %c0_i32 = arith.constant 0 : i32
    %c0_i32_0 = arith.constant 0 : i32
    %c0_i32_1 = arith.constant 0 : i32
    return %c0_i32, %c0_i32_0 : i32, i32
  }
  func.func @transform_7(%arg0: i32) -> (i32, i32) {
    %c0_i32 = arith.constant 0 : i32
    %c0_i32_0 = arith.constant 0 : i32
    %c0_i32_1 = arith.constant 0 : i32
    return %c0_i32, %c0_i32_0 : i32, i32
  }
  func.func @transform_8(%arg0: i32) -> (i32, i32) {
    %c0_i32 = arith.constant 0 : i32
    %c0_i32_0 = arith.constant 0 : i32
    %c0_i32_1 = arith.constant 0 : i32
    return %c0_i32, %c0_i32_0 : i32, i32
  }
  func.func @transform_9(%arg0: i32) -> (i32, i32) {
    %c0_i32 = arith.constant 0 : i32
    %c0_i32_0 = arith.constant 0 : i32
    %c0_i32_1 = arith.constant 0 : i32
    return %c0_i32, %c0_i32_0 : i32, i32
  }
  func.func @transform_10(%arg0: i32) -> (i32, i32) {
    %c0_i32 = arith.constant 0 : i32
    %c0_i32_0 = arith.constant 0 : i32
    %c0_i32_1 = arith.constant 0 : i32
    return %c0_i32, %c0_i32_0 : i32, i32
  }
  func.func @transform_11(%arg0: i32) -> (i32, i32) {
    %c0_i32 = arith.constant 0 : i32
    %c0_i32_0 = arith.constant 0 : i32
    %c0_i32_1 = arith.constant 0 : i32
    return %c0_i32, %c0_i32_0 : i32, i32
  }
  func.func @transform_12(%arg0: i32) -> (i32, i32) {
    %c0_i32 = arith.constant 0 : i32
    %c0_i32_0 = arith.constant 0 : i32
    %c0_i32_1 = arith.constant 0 : i32
    return %c0_i32, %c0_i32_0 : i32, i32
  }
  func.func @transform_13(%arg0: i32) -> (i32, i32) {
    %c0_i32 = arith.constant 0 : i32
    %c0_i32_0 = arith.constant 0 : i32
    %c0_i32_1 = arith.constant 0 : i32
    return %c0_i32, %c0_i32_0 : i32, i32
  }
  func.func @transform_14(%arg0: i32) -> (i32, i32) {
    %c0_i32 = arith.constant 0 : i32
    %c0_i32_0 = arith.constant 0 : i32
    %c0_i32_1 = arith.constant 0 : i32
    return %c0_i32, %c0_i32_0 : i32, i32
  }
  func.func @transform_15(%arg0: i32) -> (i32, i32) {
    %c0_i32 = arith.constant 0 : i32
    %c0_i32_0 = arith.constant 0 : i32
    %c0_i32_1 = arith.constant 0 : i32
    return %c0_i32, %c0_i32_0 : i32, i32
  }
  func.func @transform_16(%arg0: i32) -> (i32, i32) {
    %c0_i32 = arith.constant 0 : i32
    %c0_i32_0 = arith.constant 0 : i32
    %c0_i32_1 = arith.constant 0 : i32
    return %c0_i32, %c0_i32_0 : i32, i32
  }
  func.func @transform_17(%arg0: i32) -> (i32, i32) {
    %c0_i32 = arith.constant 0 : i32
    %c0_i32_0 = arith.constant 0 : i32
    %c0_i32_1 = arith.constant 0 : i32
    return %c0_i32, %c0_i32_0 : i32, i32
  }
  func.func @transform_18(%arg0: i32) -> (i32, i32) {
    %c0_i32 = arith.constant 0 : i32
    %c0_i32_0 = arith.constant 0 : i32
    %c0_i32_1 = arith.constant 0 : i32
    return %c0_i32, %c0_i32_0 : i32, i32
  }
  func.func @transform_19(%arg0: i32) -> (i32, i32) {
    %c0_i32 = arith.constant 0 : i32
    %c0_i32_0 = arith.constant 0 : i32
    %c0_i32_1 = arith.constant 0 : i32
    return %c0_i32, %c0_i32_0 : i32, i32
  }
  func.func @transform_20(%arg0: i32) -> (i32, i32) {
    %c0_i32 = arith.constant 0 : i32
    %c0_i32_0 = arith.constant 0 : i32
    %c0_i32_1 = arith.constant 0 : i32
    return %c0_i32, %c0_i32_0 : i32, i32
  }
  func.func @transform_21(%arg0: i32) -> (i32, i32) {
    %c0_i32 = arith.constant 0 : i32
    %c0_i32_0 = arith.constant 0 : i32
    %c0_i32_1 = arith.constant 0 : i32
    return %c0_i32, %c0_i32_0 : i32, i32
  }
  func.func @transform_22(%arg0: i32) -> (i32, i32) {
    %c0_i32 = arith.constant 0 : i32
    %c0_i32_0 = arith.constant 0 : i32
    %c0_i32_1 = arith.constant 0 : i32
    return %c0_i32, %c0_i32_0 : i32, i32
  }
  func.func @transform_23(%arg0: i32) -> (i32, i32) {
    %c0_i32 = arith.constant 0 : i32
    %c0_i32_0 = arith.constant 0 : i32
    %c0_i32_1 = arith.constant 0 : i32
    return %c0_i32, %c0_i32_0 : i32, i32
  }
  func.func @transform_24(%arg0: i32) -> (i32, i32) {
    %c0_i32 = arith.constant 0 : i32
    %c0_i32_0 = arith.constant 0 : i32
    %c0_i32_1 = arith.constant 0 : i32
    return %c0_i32, %c0_i32_0 : i32, i32
  }
  func.func @transform_25(%arg0: i32) -> (i32, i32) {
    %c0_i32 = arith.constant 0 : i32
    %c0_i32_0 = arith.constant 0 : i32
    %c0_i32_1 = arith.constant 0 : i32
    return %c0_i32, %c0_i32_0 : i32, i32
  }
  func.func @transform_26(%arg0: i32) -> (i32, i32) {
    %c0_i32 = arith.constant 0 : i32
    %c0_i32_0 = arith.constant 0 : i32
    %c0_i32_1 = arith.constant 0 : i32
    return %c0_i32, %c0_i32_0 : i32, i32
  }
  func.func @transform_27(%arg0: i32) -> (i32, i32) {
    %c0_i32 = arith.constant 0 : i32
    %c0_i32_0 = arith.constant 0 : i32
    %c0_i32_1 = arith.constant 0 : i32
    return %c0_i32, %c0_i32_0 : i32, i32
  }
}

</mosaic_0001>

<llo_original>
// kernel: custom_model_forward.7
$region0: #{custom_model_forward.7}
  #allocation0 [shape = 'u32[]', space=smem, size = 0x4, offset = 0x4, fixed_abs, tag = 'smem constant byte address 0x4 - core index']
  #allocation1 [shape = 'u32[144,128]{1,0:T(1,128)}', space=vmem, size = 0x12000, scoped, tag = 'internal scratch']
  %s0 = inlined_call_operand.vmem [shape: f32[128,32], index: 0, kind: input, shape index: {}]
  %s1 = inlined_call_operand.vmem [shape: f32[32,16], index: 1, kind: input, shape index: {}]
  %s2 = inlined_call_operand.vmem [shape: f32[1,16], index: 2, kind: input, shape index: {}]
  %s3 = inlined_call_operand.vmem [shape: f32[128,16], index: 3, kind: output, shape index: {}]
  %s4 = sld [smem:[#allocation0]]
  $region22: #{custom_model_forward.7} parent=0
    _
  %s6 = ssub.s32 1, %s4
  %s7 = scalar_select 0, %s6, %s4
  // Predicated region
  $region2: #{custom_model_forward.7} parent=0 // pred_check
    _
  $region3: #{custom_model_forward.7} parent=0 // pred_check_branch
    %9 = sbr.rel (0) target = $region5
  $region4: #{custom_model_forward.7} parent=0 // pred_region
    _
  $region5: #{custom_model_forward.7} parent=0 // pred_fallthru
    _
  // Predicated region
  $region6: #{custom_model_forward.7} parent=0 // pred_check
    _
  $region7: #{custom_model_forward.7} parent=0 // pred_check_branch
    %11 = sbr.rel (0) target = $region9
  $region8: #{custom_model_forward.7} parent=0 // pred_region
    _
  $region9: #{custom_model_forward.7} parent=0 // pred_fallthru
    _
  // Predicated region
  $region10: #{custom_model_forward.7} parent=0 // pred_check
    _
  $region11: #{custom_model_forward.7} parent=0 // pred_check_branch
    %13 = sbr.rel (0) target = $region13
  $region12: #{custom_model_forward.7} parent=0 // pred_region
    _
  $region13: #{custom_model_forward.7} parent=0 // pred_fallthru
    _
  %v14 = vld [vmem:[%s0] sm:$0xff]
  %v15 = vld [vmem:[%s0 + $0x8] sm:$0xff]
  %v16 = vld [vmem:[%s0 + $0x10] sm:$0xff]
  %v17 = vld [vmem:[%s0 + $0x18] sm:$0xff]
  %v18 = vld [vmem:[%s0 + $0x20] sm:$0xff]
  %v19 = vld [vmem:[%s0 + $0x28] sm:$0xff]
  %v20 = vld [vmem:[%s0 + $0x30] sm:$0xff]
  %v21 = vld [vmem:[%s0 + $0x38] sm:$0xff]
  %v22 = vld [vmem:[%s0 + $0x40] sm:$0xff]
  %v23 = vld [vmem:[%s0 + $0x48] sm:$0xff]
  %v24 = vld [vmem:[%s0 + $0x50] sm:$0xff]
  %v25 = vld [vmem:[%s0 + $0x58] sm:$0xff]
  %v26 = vld [vmem:[%s0 + $0x60] sm:$0xff]
  %v27 = vld [vmem:[%s0 + $0x68] sm:$0xff]
  %v28 = vld [vmem:[%s0 + $0x70] sm:$0xff]
  %v29 = vld [vmem:[%s0 + $0x78] sm:$0xff]
  %v30 = vld [vmem:[%s1] sm:$0xff]
  %v31 = vld [vmem:[%s1 + $0x8] sm:$0xff]
  %v32 = vld [vmem:[%s1 + $0x10] sm:$0xff]
  %v33 = vld [vmem:[%s1 + $0x18] sm:$0xff]
  %v34 = vld [vmem:[%s2] sm:$0x1]
  %v36 = vlaneseq
  %v37 = vshrl.u32 %v36, 7
  %v38 = vsub.s32 0, %v37
  %v39 = vrot.slane %v34, %v38
  %vm41 = vcmask 261120
  %v43 = vsel %vm41, %v14, 0
  %v46 = vsel %vm41, %v15, 0
  %v49 = vsel %vm41, %v16, 0
  %v52 = vsel %vm41, %v17, 0
  %v55 = vsel %vm41, %v18, 0
  %v58 = vsel %vm41, %v19, 0
  %v61 = vsel %vm41, %v20, 0
  %v64 = vsel %vm41, %v21, 0
  %v67 = vsel %vm41, %v22, 0
  %v70 = vsel %vm41, %v23, 0
  %v73 = vsel %vm41, %v24, 0
  %v76 = vsel %vm41, %v25, 0
  %v79 = vsel %vm41, %v26, 0
  %v82 = vsel %vm41, %v27, 0
  %v85 = vsel %vm41, %v28, 0
  %v88 = vsel %vm41, %v29, 0
  %90 = vmatprep.subr.mxu0 0.0
  %91 = vmatpush1.msra.mxu0 %v30
  %92 = vmatprep.subr.mxu0 0.0
  %93 = vmatpush1.msra.mxu0 %v31
  %94 = vmatprep.subr.mxu0 0.0
  %95 = vmatpush1.msra.mxu0 %v32
  %96 = vmatprep.subr.mxu0 0.0
  %97 = vmatpush1.msra.mxu0 %v33
  %98 = vmatprep.subr.mxu0 0.0
  %99 = vmatpush1.msra.mxu0 0.0
  %100 = vmatprep.subr.mxu0 0.0
  %101 = vmatpush1.msra.mxu0 0.0
  %102 = vmatprep.subr.mxu0 0.0
  %103 = vmatpush1.msra.mxu0 0.0
  %104 = vmatprep.subr.mxu0 0.0
  %105 = vmatpush1.msra.mxu0 0.0
  %106 = vmatprep.subr.mxu0 0.0
  %107 = vmatpush1.msra.mxu0 0.0
  %108 = vmatprep.subr.mxu0 0.0
  %109 = vmatpush1.msra.mxu0 0.0
  %110 = vmatprep.subr.mxu0 0.0
  %111 = vmatpush1.msra.mxu0 0.0
  %112 = vmatprep.subr.mxu0 0.0
  %113 = vmatpush1.msra.mxu0 0.0
  %114 = vmatprep.subr.mxu0 0.0
  %115 = vmatpush1.msra.mxu0 0.0
  %116 = vmatprep.subr.mxu0 0.0
  %117 = vmatpush1.msra.mxu0 0.0
  %118 = vmatprep.subr.mxu0 0.0
  %119 = vmatpush1.msra.mxu0 0.0
  %120 = vmatprep.subr.mxu0 0.0
  %121 = vmatpush1.msra.mxu0 0.0
  %122 = vmatprep.subr.mxu0 0.0
  %123 = vmatpush1.msra.mxu0 0.0
  %124 = vmatprep.subr.mxu0 0.0
  %125 = vmatpush1.msra.mxu0 0.0
  %126 = vmatprep.subr.mxu0 0.0
  %127 = vmatpush1.msra.mxu0 0.0
  %128 = vmatprep.subr.mxu0 0.0
  %129 = vmatpush1.msra.mxu0 0.0
  %130 = vmatprep.subr.mxu0 0.0
  %131 = vmatpush1.msra.mxu0 0.0
  %132 = vmatprep.subr.mxu0 0.0
  %133 = vmatpush1.msra.mxu0 0.0
  %134 = vmatprep.subr.mxu0 0.0
  %135 = vmatpush1.msra.mxu0 0.0
  %136 = vmatprep.subr.mxu0 0.0
  %137 = vmatpush1.msra.mxu0 0.0
  %138 = vmatprep.subr.mxu0 0.0
  %139 = vmatpush1.msra.mxu0 0.0
  %140 = vmatprep.subr.mxu0 0.0
  %141 = vmatpush1.msra.mxu0 0.0
  %142 = vmatprep.subr.mxu0 0.0
  %143 = vmatpush1.msra.mxu0 0.0
  %144 = vmatprep.subr.mxu0 0.0
  %145 = vmatpush1.msra.mxu0 0.0
  %146 = vmatprep.subr.mxu0 0.0
  %147 = vmatpush1.msra.mxu0 0.0
  %148 = vmatprep.subr.mxu0 0.0
  %149 = vmatpush1.msra.mxu0 0.0
  %150 = vmatprep.subr.mxu0 0.0
  %151 = vmatpush1.msra.mxu0 0.0
  %152 = vmatprep.subr.mxu0 0.0
  %153 = vmatpush1.msra.mxu0 0.0
  %154 = vmatprep.mubr.f32.mxu0 0.0
  %155 = vmatmul.mubr.f32.gmra.mrb[0].mxu0 %v43
  %v156 = vpop.f32.mrb[0].mxu0
  %v157 = vadd.f32 %v39, %v156
  %v158 = vpop.f32.mrb[0].mxu0
  %159 = vmatprep.mubr.f32.mxu0 0.0
  %160 = vmatmul.mubr.f32.gmra.mrb[0].mxu0 %v46
  %v161 = vpop.f32.mrb[0].mxu0
  %v162 = vadd.f32 %v39, %v161
  %v163 = vpop.f32.mrb[0].mxu0
  %164 = vmatprep.mubr.f32.mxu0 0.0
  %165 = vmatmul.mubr.f32.gmra.mrb[0].mxu0 %v49
  %v166 = vpop.f32.mrb[0].mxu0
  %v167 = vadd.f32 %v39, %v166
  %v168 = vpop.f32.mrb[0].mxu0
  %169 = vmatprep.mubr.f32.mxu0 0.0
  %170 = vmatmul.mubr.f32.gmra.mrb[0].mxu0 %v52
  %v171 = vpop.f32.mrb[0].mxu0
  %v172 = vadd.f32 %v39, %v171
  %v173 = vpop.f32.mrb[0].mxu0
  %174 = vmatprep.mubr.f32.mxu0 0.0
  %175 = vmatmul.mubr.f32.gmra.mrb[0].mxu0 %v55
  %v176 = vpop.f32.mrb[0].mxu0
  %v177 = vadd.f32 %v39, %v176
  %v178 = vpop.f32.mrb[0].mxu0
  %179 = vmatprep.mubr.f32.mxu0 0.0
  %180 = vmatmul.mubr.f32.gmra.mrb[0].mxu0 %v58
  %v181 = vpop.f32.mrb[0].mxu0
  %v182 = vadd.f32 %v39, %v181
  %v183 = vpop.f32.mrb[0].mxu0
  %184 = vmatprep.mubr.f32.mxu0 0.0
  %185 = vmatmul.mubr.f32.gmra.mrb[0].mxu0 %v61
  %v186 = vpop.f32.mrb[0].mxu0
  %v187 = vadd.f32 %v39, %v186
  %v188 = vpop.f32.mrb[0].mxu0
  %189 = vmatprep.mubr.f32.mxu0 0.0
  %190 = vmatmul.mubr.f32.gmra.mrb[0].mxu0 %v64
  %v191 = vpop.f32.mrb[0].mxu0
  %v192 = vadd.f32 %v39, %v191
  %v193 = vpop.f32.mrb[0].mxu0
  %194 = vmatprep.mubr.f32.mxu0 0.0
  %195 = vmatmul.mubr.f32.gmra.mrb[0].mxu0 %v67
  %v196 = vpop.f32.mrb[0].mxu0
  %v197 = vadd.f32 %v39, %v196
  %v198 = vpop.f32.mrb[0].mxu0
  %199 = vmatprep.mubr.f32.mxu0 0.0
  %200 = vmatmul.mubr.f32.gmra.mrb[0].mxu0 %v70
  %v201 = vpop.f32.mrb[0].mxu0
  %v202 = vadd.f32 %v39, %v201
  %v203 = vpop.f32.mrb[0].mxu0
  %204 = vmatprep.mubr.f32.mxu0 0.0
  %205 = vmatmul.mubr.f32.gmra.mrb[0].mxu0 %v73
  %v206 = vpop.f32.mrb[0].mxu0
  %v207 = vadd.f32 %v39, %v206
  %v208 = vpop.f32.mrb[0].mxu0
  %209 = vmatprep.mubr.f32.mxu0 0.0
  %210 = vmatmul.mubr.f32.gmra.mrb[0].mxu0 %v76
  %v211 = vpop.f32.mrb[0].mxu0
  %v212 = vadd.f32 %v39, %v211
  %v213 = vpop.f32.mrb[0].mxu0
  %214 = vmatprep.mubr.f32.mxu0 0.0
  %215 = vmatmul.mubr.f32.gmra.mrb[0].mxu0 %v79
  %v216 = vpop.f32.mrb[0].mxu0
  %v217 = vadd.f32 %v39, %v216
  %v218 = vpop.f32.mrb[0].mxu0
  %219 = vmatprep.mubr.f32.mxu0 0.0
  %220 = vmatmul.mubr.f32.gmra.mrb[0].mxu0 %v82
  %v221 = vpop.f32.mrb[0].mxu0
  %v222 = vadd.f32 %v39, %v221
  %v223 = vpop.f32.mrb[0].mxu0
  %224 = vmatprep.mubr.f32.mxu0 0.0
  %225 = vmatmul.mubr.f32.gmra.mrb[0].mxu0 %v85
  %v226 = vpop.f32.mrb[0].mxu0
  %v227 = vadd.f32 %v39, %v226
  %v228 = vpop.f32.mrb[0].mxu0
  %229 = vmatprep.mubr.f32.mxu0 0.0
  %230 = vmatmul.mubr.f32.gmra.mrb[0].mxu0 %v88
  %v231 = vpop.f32.mrb[0].mxu0
  %v232 = vadd.f32 %v39, %v231
  %v233 = vpop.f32.mrb[0].mxu0
  %234 = vdwg.mxu0
  %v235 = vmax.f32 %v157, 0.0
  %v236 = vmax.f32 %v162, 0.0
  %v237 = vmax.f32 %v167, 0.0
  %v238 = vmax.f32 %v172, 0.0
  %v239 = vmax.f32 %v177, 0.0
  %v240 = vmax.f32 %v182, 0.0
  %v241 = vmax.f32 %v187, 0.0
  %v242 = vmax.f32 %v192, 0.0
  %v243 = vmax.f32 %v197, 0.0
  %v244 = vmax.f32 %v202, 0.0
  %v245 = vmax.f32 %v207, 0.0
  %v246 = vmax.f32 %v212, 0.0
  %v247 = vmax.f32 %v217, 0.0
  %v248 = vmax.f32 %v222, 0.0
  %v249 = vmax.f32 %v227, 0.0
  %v250 = vmax.f32 %v232, 0.0
  %vm251 = vcmask 130048
  %252 = vst.msk [vmem:[%s3] sm:$0xff] %vm251, %v235
  %253 = vst.msk [vmem:[%s3 + $0x8] sm:$0xff] %vm251, %v236
  %254 = vst.msk [vmem:[%s3 + $0x10] sm:$0xff] %vm251, %v237
  %255 = vst.msk [vmem:[%s3 + $0x18] sm:$0xff] %vm251, %v238
  %256 = vst.msk [vmem:[%s3 + $0x20] sm:$0xff] %vm251, %v239
  %257 = vst.msk [vmem:[%s3 + $0x28] sm:$0xff] %vm251, %v240
  %258 = vst.msk [vmem:[%s3 + $0x30] sm:$0xff] %vm251, %v241
  %259 = vst.msk [vmem:[%s3 + $0x38] sm:$0xff] %vm251, %v242
  %260 = vst.msk [vmem:[%s3 + $0x40] sm:$0xff] %vm251, %v243
  %261 = vst.msk [vmem:[%s3 + $0x48] sm:$0xff] %vm251, %v244
  %262 = vst.msk [vmem:[%s3 + $0x50] sm:$0xff] %vm251, %v245
  %263 = vst.msk [vmem:[%s3 + $0x58] sm:$0xff] %vm251, %v246
  %264 = vst.msk [vmem:[%s3 + $0x60] sm:$0xff] %vm251, %v247
  %265 = vst.msk [vmem:[%s3 + $0x68] sm:$0xff] %vm251, %v248
  %266 = vst.msk [vmem:[%s3 + $0x70] sm:$0xff] %vm251, %v249
  %267 = vst.msk [vmem:[%s3 + $0x78] sm:$0xff] %vm251, %v250
  // Predicated region
  $region14: #{custom_model_forward.7} parent=0 // pred_check
    _
  $region15: #{custom_model_forward.7} parent=0 // pred_check_branch
    %269 = sbr.rel (0) target = $region17
  $region16: #{custom_model_forward.7} parent=0 // pred_region
    _
  $region17: #{custom_model_forward.7} parent=0 // pred_fallthru
    _
  // Predicated region
  $region18: #{custom_model_forward.7} parent=0 // pred_check
    _
  $region19: #{custom_model_forward.7} parent=0 // pred_check_branch
    %271 = sbr.rel (0) target = $region21
  $region20: #{custom_model_forward.7} parent=0 // pred_region
    _
  $region21: #{custom_model_forward.7} parent=0 // pred_fallthru
    _

// kernel: custom_model_forward.8
$region0: #{custom_model_forward.8}
  #allocation0 [shape = 'u32[]', space=smem, size = 0x4, offset = 0x4, fixed_abs, tag = 'smem constant byte address 0x4 - core index']
  #allocation1 [shape = 'u32[144,128]{1,0:T(1,128)}', space=vmem, size = 0x12000, scoped, tag = 'internal scratch']
  %s0 = inlined_call_operand.vmem [shape: f32[32,144], index: 0, kind: input, shape index: {}]
  %s1 = inlined_call_operand.vmem [shape: f32[144,64], index: 1, kind: input, shape index: {}]
  %s2 = inlined_call_operand.vmem [shape: f32[1,64], index: 2, kind: input, shape index: {}]
  %s3 = inlined_call_operand.vmem [shape: f32[32,64], index: 3, kind: output, shape index: {}]
  %s4 = sld [smem:[#allocation0]]
  $region22: #{custom_model_forward.8} parent=0
    _
  %s6 = ssub.s32 1, %s4
  %s7 = scalar_select 0, %s6, %s4
  // Predicated region
  $region2: #{custom_model_forward.8} parent=0 // pred_check
    _
  $region3: #{custom_model_forward.8} parent=0 // pred_check_branch
    %9 = sbr.rel (0) target = $region5
  $region4: #{custom_model_forward.8} parent=0 // pred_region
    _
  $region5: #{custom_model_forward.8} parent=0 // pred_fallthru
    _
  // Predicated region
  $region6: #{custom_model_forward.8} parent=0 // pred_check
    _
  $region7: #{custom_model_forward.8} parent=0 // pred_check_branch
    %11 = sbr.rel (0) target = $region9
  $region8: #{custom_model_forward.8} parent=0 // pred_region
    _
  $region9: #{custom_model_forward.8} parent=0 // pred_fallthru
    _
  // Predicated region
  $region10: #{custom_model_forward.8} parent=0 // pred_check
    _
  $region11: #{custom_model_forward.8} parent=0 // pred_check_branch
    %13 = sbr.rel (0) target = $region13
  $region12: #{custom_model_forward.8} parent=0 // pred_region
    _
  $region13: #{custom_model_forward.8} parent=0 // pred_fallthru
    _
  %v14 = vld [vmem:[%s0] sm:$0xff]
  %v15 = vld [vmem:[%s0 + $0x8] sm:$0xff]
  %v16 = vld [vmem:[%s0 + $0x10] sm:$0xff]
  %v17 = vld [vmem:[%s0 + $0x18] sm:$0xff]
  %v18 = vld [vmem:[%s0 + $0x20] sm:$0xff]
  %v19 = vld [vmem:[%s0 + $0x28] sm:$0xff]
  %v20 = vld [vmem:[%s0 + $0x30] sm:$0xff]
  %v21 = vld [vmem:[%s0 + $0x38] sm:$0xff]
  %v22 = vld [vmem:[%s1] sm:$0xff]
  %v23 = vld [vmem:[%s1 + $0x8] sm:$0xff]
  %v24 = vld [vmem:[%s1 + $0x10] sm:$0xff]
  %v25 = vld [vmem:[%s1 + $0x18] sm:$0xff]
  %v26 = vld [vmem:[%s1 + $0x20] sm:$0xff]
  %v27 = vld [vmem:[%s1 + $0x28] sm:$0xff]
  %v28 = vld [vmem:[%s1 + $0x30] sm:$0xff]
  %v29 = vld [vmem:[%s1 + $0x38] sm:$0xff]
  %v30 = vld [vmem:[%s1 + $0x40] sm:$0xff]
  %v31 = vld [vmem:[%s1 + $0x48] sm:$0xff]
  %v32 = vld [vmem:[%s1 + $0x50] sm:$0xff]
  %v33 = vld [vmem:[%s1 + $0x58] sm:$0xff]
  %v34 = vld [vmem:[%s1 + $0x60] sm:$0xff]
  %v35 = vld [vmem:[%s1 + $0x68] sm:$0xff]
  %v36 = vld [vmem:[%s1 + $0x70] sm:$0xff]
  %v37 = vld [vmem:[%s1 + $0x78] sm:$0xff]
  %v38 = vld [vmem:[%s1 + $0x80] sm:$0xff]
  %v39 = vld [vmem:[%s1 + $0x88] sm:$0xff]
  %v40 = vld [vmem:[%s2] sm:$0x1]
  %v42 = vlaneseq
  %v43 = vshrl.u32 %v42, 7
  %v44 = vsub.s32 0, %v43
  %v45 = vrot.slane %v40, %v44
  %vm47 = vcmask 130048
  %v49 = vsel %vm47, %v15, 0
  %v52 = vsel %vm47, %v17, 0
  %v55 = vsel %vm47, %v19, 0
  %v58 = vsel %vm47, %v21, 0
  %60 = vmatprep.subr.mxu0 0.0
  %61 = vmatpush1.msra.mxu0 %v22
  %62 = vmatprep.subr.mxu0 0.0
  %63 = vmatpush1.msra.mxu0 %v23
  %64 = vmatprep.subr.mxu0 0.0
  %65 = vmatpush1.msra.mxu0 %v24
  %66 = vmatprep.subr.mxu0 0.0
  %67 = vmatpush1.msra.mxu0 %v25
  %68 = vmatprep.subr.mxu0 0.0
  %69 = vmatpush1.msra.mxu0 %v26
  %70 = vmatprep.subr.mxu0 0.0
  %71 = vmatpush1.msra.mxu0 %v27
  %72 = vmatprep.subr.mxu0 0.0
  %73 = vmatpush1.msra.mxu0 %v28
  %74 = vmatprep.subr.mxu0 0.0
  %75 = vmatpush1.msra.mxu0 %v29
  %76 = vmatprep.subr.mxu0 0.0
  %77 = vmatpush1.msra.mxu0 %v30
  %78 = vmatprep.subr.mxu0 0.0
  %79 = vmatpush1.msra.mxu0 %v31
  %80 = vmatprep.subr.mxu0 0.0
  %81 = vmatpush1.msra.mxu0 %v32
  %82 = vmatprep.subr.mxu0 0.0
  %83 = vmatpush1.msra.mxu0 %v33
  %84 = vmatprep.subr.mxu0 0.0
  %85 = vmatpush1.msra.mxu0 %v34
  %86 = vmatprep.subr.mxu0 0.0
  %87 = vmatpush1.msra.mxu0 %v35
  %88 = vmatprep.subr.mxu0 0.0
  %89 = vmatpush1.msra.mxu0 %v36
  %90 = vmatprep.subr.mxu0 0.0
  %91 = vmatpush1.msra.mxu0 %v37
  %92 = vmatprep.subr.mxu0 0.0
  %93 = vmatpush1.msra.mxu0 %v38
  %94 = vmatprep.subr.mxu0 0.0
  %95 = vmatpush1.msra.mxu0 %v39
  %96 = vmatprep.subr.mxu0 0.0
  %97 = vmatpush1.msra.mxu0 0.0
  %98 = vmatprep.subr.mxu0 0.0
  %99 = vmatpush1.msra.mxu0 0.0
  %100 = vmatprep.subr.mxu0 0.0
  %101 = vmatpush1.msra.mxu0 0.0
  %102 = vmatprep.subr.mxu0 0.0
  %103 = vmatpush1.msra.mxu0 0.0
  %104 = vmatprep.subr.mxu0 0.0
  %105 = vmatpush1.msra.mxu0 0.0
  %106 = vmatprep.subr.mxu0 0.0
  %107 = vmatpush1.msra.mxu0 0.0
  %108 = vmatprep.subr.mxu0 0.0
  %109 = vmatpush1.msra.mxu0 0.0
  %110 = vmatprep.subr.mxu0 0.0
  %111 = vmatpush1.msra.mxu0 0.0
  %112 = vmatprep.subr.mxu0 0.0
  %113 = vmatpush1.msra.mxu0 0.0
  %114 = vmatprep.subr.mxu0 0.0
  %115 = vmatpush1.msra.mxu0 0.0
  %116 = vmatprep.subr.mxu0 0.0
  %117 = vmatpush1.msra.mxu0 0.0
  %118 = vmatprep.subr.mxu0 0.0
  %119 = vmatpush1.msra.mxu0 0.0
  %120 = vmatprep.subr.mxu0 0.0
  %121 = vmatpush1.msra.mxu0 0.0
  %122 = vmatprep.subr.mxu0 0.0
  %123 = vmatpush1.msra.mxu0 0.0
  %124 = vmatprep.mubr.f32.mxu0 %v49
  %125 = vmatmul.mubr.f32.gmra.mrb[0].mxu0 %v14
  %v126 = vpop.f32.mrb[0].mxu0
  %v127 = vadd.f32 %v45, %v126
  %v128 = vpop.f32.mrb[0].mxu0
  %129 = vmatprep.mubr.f32.mxu0 %v52
  %130 = vmatmul.mubr.f32.gmra.mrb[0].mxu0 %v16
  %v131 = vpop.f32.mrb[0].mxu0
  %v132 = vadd.f32 %v45, %v131
  %v133 = vpop.f32.mrb[0].mxu0
  %134 = vmatprep.mubr.f32.mxu0 %v55
  %135 = vmatmul.mubr.f32.gmra.mrb[0].mxu0 %v18
  %v136 = vpop.f32.mrb[0].mxu0
  %v137 = vadd.f32 %v45, %v136
  %v138 = vpop.f32.mrb[0].mxu0
  %139 = vmatprep.mubr.f32.mxu0 %v58
  %140 = vmatmul.mubr.f32.gmra.mrb[0].mxu0 %v20
  %v141 = vpop.f32.mrb[0].mxu0
  %v142 = vadd.f32 %v45, %v141
  %v143 = vpop.f32.mrb[0].mxu0
  %144 = vdwg.mxu0
  %v145 = vmax.f32 %v127, 0.0
  %v146 = vmax.f32 %v132, 0.0
  %v147 = vmax.f32 %v137, 0.0
  %v148 = vmax.f32 %v142, 0.0
  %vm149 = vcmask 523264
  %150 = vst.msk [vmem:[%s3] sm:$0xff] %vm149, %v145
  %151 = vst.msk [vmem:[%s3 + $0x8] sm:$0xff] %vm149, %v146
  %152 = vst.msk [vmem:[%s3 + $0x10] sm:$0xff] %vm149, %v147
  %153 = vst.msk [vmem:[%s3 + $0x18] sm:$0xff] %vm149, %v148
  // Predicated region
  $region14: #{custom_model_forward.8} parent=0 // pred_check
    _
  $region15: #{custom_model_forward.8} parent=0 // pred_check_branch
    %155 = sbr.rel (0) target = $region17
  $region16: #{custom_model_forward.8} parent=0 // pred_region
    _
  $region17: #{custom_model_forward.8} parent=0 // pred_fallthru
    _
  // Predicated region
  $region18: #{custom_model_forward.8} parent=0 // pred_check
    _
  $region19: #{custom_model_forward.8} parent=0 // pred_check_branch
    %157 = sbr.rel (0) target = $region21
  $region20: #{custom_model_forward.8} parent=0 // pred_region
    _
  $region21: #{custom_model_forward.8} parent=0 // pred_fallthru
    _

// kernel: custom_model_forward.9
$region0: #{custom_model_forward.9}
  #allocation0 [shape = 'u32[]', space=smem, size = 0x4, offset = 0x4, fixed_abs, tag = 'smem constant byte address 0x4 - core index']
  #allocation1 [shape = 'u32[144,128]{1,0:T(1,128)}', space=vmem, size = 0x12000, scoped, tag = 'internal scratch']
  %s0 = inlined_call_operand.vmem [shape: f32[6,64], index: 0, kind: input, shape index: {}]
  %s1 = inlined_call_operand.vmem [shape: f32[64,32], index: 1, kind: input, shape index: {}]
  %s2 = inlined_call_operand.vmem [shape: f32[1,32], index: 2, kind: input, shape index: {}]
  %s3 = inlined_call_operand.vmem [shape: f32[6,32], index: 3, kind: output, shape index: {}]
  %s4 = sld [smem:[#allocation0]]
  $region22: #{custom_model_forward.9} parent=0
    _
  %s6 = ssub.s32 1, %s4
  %s7 = scalar_select 0, %s6, %s4
  // Predicated region
  $region2: #{custom_model_forward.9} parent=0 // pred_check
    _
  $region3: #{custom_model_forward.9} parent=0 // pred_check_branch
    %9 = sbr.rel (0) target = $region5
  $region4: #{custom_model_forward.9} parent=0 // pred_region
    _
  $region5: #{custom_model_forward.9} parent=0 // pred_fallthru
    _
  // Predicated region
  $region6: #{custom_model_forward.9} parent=0 // pred_check
    _
  $region7: #{custom_model_forward.9} parent=0 // pred_check_branch
    %11 = sbr.rel (0) target = $region9
  $region8: #{custom_model_forward.9} parent=0 // pred_region
    _
  $region9: #{custom_model_forward.9} parent=0 // pred_fallthru
    _
  // Predicated region
  $region10: #{custom_model_forward.9} parent=0 // pred_check
    _
  $region11: #{custom_model_forward.9} parent=0 // pred_check_branch
    %13 = sbr.rel (0) target = $region13
  $region12: #{custom_model_forward.9} parent=0 // pred_region
    _
  $region13: #{custom_model_forward.9} parent=0 // pred_fallthru
    _
  %v14 = vld [vmem:[%s0] sm:$0x3f]
  %v15 = vld [vmem:[%s1] sm:$0xff]
  %v16 = vld [vmem:[%s1 + $0x8] sm:$0xff]
  %v17 = vld [vmem:[%s1 + $0x10] sm:$0xff]
  %v18 = vld [vmem:[%s1 + $0x18] sm:$0xff]
  %v19 = vld [vmem:[%s1 + $0x20] sm:$0xff]
  %v20 = vld [vmem:[%s1 + $0x28] sm:$0xff]
  %v21 = vld [vmem:[%s1 + $0x30] sm:$0xff]
  %v22 = vld [vmem:[%s1 + $0x38] sm:$0xff]
  %v23 = vld [vmem:[%s2] sm:$0x1]
  %v25 = vlaneseq
  %v26 = vshrl.u32 %v25, 7
  %v27 = vsub.s32 0, %v26
  %v28 = vrot.slane %v23, %v27
  %vm30 = vcmask 523264
  %v32 = vsel %vm30, %v14, 0
  %34 = vmatprep.subr.mxu0 0.0
  %35 = vmatpush1.msra.mxu0 %v15
  %36 = vmatprep.subr.mxu0 0.0
  %37 = vmatpush1.msra.mxu0 %v16
  %38 = vmatprep.subr.mxu0 0.0
  %39 = vmatpush1.msra.mxu0 %v17
  %40 = vmatprep.subr.mxu0 0.0
  %41 = vmatpush1.msra.mxu0 %v18
  %42 = vmatprep.subr.mxu0 0.0
  %43 = vmatpush1.msra.mxu0 %v19
  %44 = vmatprep.subr.mxu0 0.0
  %45 = vmatpush1.msra.mxu0 %v20
  %46 = vmatprep.subr.mxu0 0.0
  %47 = vmatpush1.msra.mxu0 %v21
  %48 = vmatprep.subr.mxu0 0.0
  %49 = vmatpush1.msra.mxu0 %v22
  %50 = vmatprep.subr.mxu0 0.0
  %51 = vmatpush1.msra.mxu0 0.0
  %52 = vmatprep.subr.mxu0 0.0
  %53 = vmatpush1.msra.mxu0 0.0
  %54 = vmatprep.subr.mxu0 0.0
  %55 = vmatpush1.msra.mxu0 0.0
  %56 = vmatprep.subr.mxu0 0.0
  %57 = vmatpush1.msra.mxu0 0.0
  %58 = vmatprep.subr.mxu0 0.0
  %59 = vmatpush1.msra.mxu0 0.0
  %60 = vmatprep.subr.mxu0 0.0
  %61 = vmatpush1.msra.mxu0 0.0
  %62 = vmatprep.subr.mxu0 0.0
  %63 = vmatpush1.msra.mxu0 0.0
  %64 = vmatprep.subr.mxu0 0.0
  %65 = vmatpush1.msra.mxu0 0.0
  %66 = vmatprep.subr.mxu0 0.0
  %67 = vmatpush1.msra.mxu0 0.0
  %68 = vmatprep.subr.mxu0 0.0
  %69 = vmatpush1.msra.mxu0 0.0
  %70 = vmatprep.subr.mxu0 0.0
  %71 = vmatpush1.msra.mxu0 0.0
  %72 = vmatprep.subr.mxu0 0.0
  %73 = vmatpush1.msra.mxu0 0.0
  %74 = vmatprep.subr.mxu0 0.0
  %75 = vmatpush1.msra.mxu0 0.0
  %76 = vmatprep.subr.mxu0 0.0
  %77 = vmatpush1.msra.mxu0 0.0
  %78 = vmatprep.subr.mxu0 0.0
  %79 = vmatpush1.msra.mxu0 0.0
  %80 = vmatprep.subr.mxu0 0.0
  %81 = vmatpush1.msra.mxu0 0.0
  %82 = vmatprep.subr.mxu0 0.0
  %83 = vmatpush1.msra.mxu0 0.0
  %84 = vmatprep.subr.mxu0 0.0
  %85 = vmatpush1.msra.mxu0 0.0
  %86 = vmatprep.subr.mxu0 0.0
  %87 = vmatpush1.msra.mxu0 0.0
  %88 = vmatprep.subr.mxu0 0.0
  %89 = vmatpush1.msra.mxu0 0.0
  %90 = vmatprep.subr.mxu0 0.0
  %91 = vmatpush1.msra.mxu0 0.0
  %92 = vmatprep.subr.mxu0 0.0
  %93 = vmatpush1.msra.mxu0 0.0
  %94 = vmatprep.subr.mxu0 0.0
  %95 = vmatpush1.msra.mxu0 0.0
  %96 = vmatprep.subr.mxu0 0.0
  %97 = vmatpush1.msra.mxu0 0.0
  %98 = vmatprep.mubr.f32.mxu0 0.0
  %99 = vmatmul.mubr.f32.gmra.mrb[0].mxu0 %v32
  %v100 = vpop.f32.mrb[0].mxu0
  %v101 = vadd.f32 %v28, %v100
  %v102 = vpop.f32.mrb[0].mxu0
  %103 = vdwg.mxu0
  %vm104 = vcmask 259072
  %105 = vst.msk [vmem:[%s3] sm:$0x3f] %vm104, %v101
  // Predicated region
  $region14: #{custom_model_forward.9} parent=0 // pred_check
    _
  $region15: #{custom_model_forward.9} parent=0 // pred_check_branch
    %107 = sbr.rel (0) target = $region17
  $region16: #{custom_model_forward.9} parent=0 // pred_region
    _
  $region17: #{custom_model_forward.9} parent=0 // pred_fallthru
    _
  // Predicated region
  $region18: #{custom_model_forward.9} parent=0 // pred_check
    _
  $region19: #{custom_model_forward.9} parent=0 // pred_check_branch
    %109 = sbr.rel (0) target = $region21
  $region20: #{custom_model_forward.9} parent=0 // pred_region
    _
  $region21: #{custom_model_forward.9} parent=0 // pred_fallthru
    _

// kernel: custom_model_forward.10
$region0: #{custom_model_forward.10}
  #allocation0 [shape = 'u32[]', space=smem, size = 0x4, offset = 0x4, fixed_abs, tag = 'smem constant byte address 0x4 - core index']
  #allocation1 [shape = 'u32[144,128]{1,0:T(1,128)}', space=vmem, size = 0x12000, scoped, tag = 'internal scratch']
  %s0 = inlined_call_operand.vmem [shape: f32[26,32], index: 0, kind: input, shape index: {}]
  %s1 = inlined_call_operand.vmem [shape: f32[1,32], index: 1, kind: input, shape index: {}]
  %s2 = inlined_call_operand.vmem [shape: f32[1,32], index: 2, kind: input, shape index: {}]
  %s3 = inlined_call_operand.vmem [shape: f32[26,32], index: 3, kind: output, shape index: {}]
  %s4 = sld [smem:[#allocation0]]
  $region22: #{custom_model_forward.10} parent=0
    _
  %s6 = ssub.s32 1, %s4
  %s7 = scalar_select 0, %s6, %s4
  // Predicated region
  $region2: #{custom_model_forward.10} parent=0 // pred_check
    _
  $region3: #{custom_model_forward.10} parent=0 // pred_check_branch
    %9 = sbr.rel (0) target = $region5
  $region4: #{custom_model_forward.10} parent=0 // pred_region
    _
  $region5: #{custom_model_forward.10} parent=0 // pred_fallthru
    _
  // Predicated region
  $region6: #{custom_model_forward.10} parent=0 // pred_check
    _
  $region7: #{custom_model_forward.10} parent=0 // pred_check_branch
    %11 = sbr.rel (0) target = $region9
  $region8: #{custom_model_forward.10} parent=0 // pred_region
    _
  $region9: #{custom_model_forward.10} parent=0 // pred_fallthru
    _
  // Predicated region
  $region10: #{custom_model_forward.10} parent=0 // pred_check
    _
  $region11: #{custom_model_forward.10} parent=0 // pred_check_branch
    %13 = sbr.rel (0) target = $region13
  $region12: #{custom_model_forward.10} parent=0 // pred_region
    _
  $region13: #{custom_model_forward.10} parent=0 // pred_fallthru
    _
  %v14 = vld [vmem:[%s0] sm:$0xff]
  %v15 = vld [vmem:[%s0 + $0x8] sm:$0xff]
  %v16 = vld [vmem:[%s0 + $0x10] sm:$0xff]
  %v17 = vld [vmem:[%s0 + $0x18] sm:$0x3]
  %v18 = vld [vmem:[%s1] sm:$0x1]
  %v19 = vld [vmem:[%s2] sm:$0x1]
  %vm20 = vcmask 261120
  %v21 = vsel %vm20, %v14, 0.0
  %22 = vadd.xlane.f32.xlu0 %v21
  %v23 = vpop.xlane.xlu0 %22
  %v24 = vsel %vm20, %v15, 0.0
  %25 = vadd.xlane.f32.xlu0 %v24
  %v26 = vpop.xlane.xlu0 %25
  %v27 = vsel %vm20, %v16, 0.0
  %28 = vadd.xlane.f32.xlu0 %v27
  %v29 = vpop.xlane.xlu0 %28
  %vm30 = vcmask 254976
  %v31 = vsel %vm30, %v17, 0.0
  %32 = vadd.xlane.f32.xlu0 %v31
  %v33 = vpop.xlane.xlu0 %32
  %v34 = vrcp.pop 32.0
  %v35 = vmul.f32 %v23, %v34
  %v36 = vmul.f32 %v26, %v34
  %v37 = vmul.f32 %v29, %v34
  %v38 = vmul.f32 %v33, %v34
  %v39 = vsub.f32 %v14, %v35
  %v40 = vsub.f32 %v15, %v36
  %v41 = vsub.f32 %v16, %v37
  %v42 = vsub.f32 %v17, %v38
  %v43 = vmul.f32 %v39, %v39
  %v44 = vmul.f32 %v40, %v40
  %v45 = vmul.f32 %v41, %v41
  %v46 = vmul.f32 %v42, %v42
  %v47 = vsel %vm20, %v43, 0.0
  %48 = vadd.xlane.f32.xlu0 %v47
  %v49 = vpop.xlane.xlu0 %48
  %v50 = vsel %vm20, %v44, 0.0
  %51 = vadd.xlane.f32.xlu0 %v50
  %v52 = vpop.xlane.xlu0 %51
  %v53 = vsel %vm20, %v45, 0.0
  %54 = vadd.xlane.f32.xlu0 %v53
  %v55 = vpop.xlane.xlu0 %54
  %v56 = vsel %vm30, %v46, 0.0
  %57 = vadd.xlane.f32.xlu0 %v56
  %v58 = vpop.xlane.xlu0 %57
  %v59 = vmul.f32 %v49, %v34
  %v60 = vmul.f32 %v52, %v34
  %v61 = vmul.f32 %v55, %v34
  %v62 = vmul.f32 %v58, %v34
  %v63 = vadd.f32 %v59, 1e-12
  %v64 = vadd.f32 %v60, 1e-12
  %v65 = vadd.f32 %v61, 1e-12
  %v66 = vadd.f32 %v62, 1e-12
  %v67 = vrsqrt.pop %v63
  %v68 = vrsqrt.pop %v64
  %v69 = vrsqrt.pop %v65
  %v70 = vrsqrt.pop %v66
  %v71 = vmul.f32 %v39, %v67
  %v72 = vmul.f32 %v40, %v68
  %v73 = vmul.f32 %v41, %v69
  %v74 = vmul.f32 %v42, %v70
  %v76 = vlaneseq
  %v77 = vshrl.u32 %v76, 7
  %v78 = vsub.s32 0, %v77
  %v79 = vrot.slane %v18, %v78
  %v81 = vmul.f32 %v71, %v79
  %v82 = vmul.f32 %v72, %v79
  %v83 = vmul.f32 %v73, %v79
  %v84 = vmul.f32 %v74, %v79
  %v86 = vlaneseq
  %v87 = vshrl.u32 %v86, 7
  %v88 = vsub.s32 0, %v87
  %v89 = vrot.slane %v19, %v88
  %v91 = vadd.f32 %v81, %v89
  %v92 = vadd.f32 %v82, %v89
  %v93 = vadd.f32 %v83, %v89
  %v94 = vadd.f32 %v84, %v89
  %95 = vst.msk [vmem:[%s3] sm:$0xff] %vm20, %v91
  %96 = vst.msk [vmem:[%s3 + $0x8] sm:$0xff] %vm20, %v92
  %97 = vst.msk [vmem:[%s3 + $0x10] sm:$0xff] %vm20, %v93
  %98 = vst.msk [vmem:[%s3 + $0x18] sm:$0x3] %vm30, %v94
  // Predicated region
  $region14: #{custom_model_forward.10} parent=0 // pred_check
    _
  $region15: #{custom_model_forward.10} parent=0 // pred_check_branch
    %100 = sbr.rel (0) target = $region17
  $region16: #{custom_model_forward.10} parent=0 // pred_region
    _
  $region17: #{custom_model_forward.10} parent=0 // pred_fallthru
    _
  // Predicated region
  $region18: #{custom_model_forward.10} parent=0 // pred_check
    _
  $region19: #{custom_model_forward.10} parent=0 // pred_check_branch
    %102 = sbr.rel (0) target = $region21
  $region20: #{custom_model_forward.10} parent=0 // pred_region
    _
  $region21: #{custom_model_forward.10} parent=0 // pred_fallthru
    _

// kernel: custom_model_forward.11
$region0: #{custom_model_forward.11}
  #allocation0 [shape = 'u32[]', space=smem, size = 0x4, offset = 0x4, fixed_abs, tag = 'smem constant byte address 0x4 - core index']
  #allocation1 [shape = 'u32[144,128]{1,0:T(1,128)}', space=vmem, size = 0x12000, scoped, tag = 'internal scratch']
  %s0 = inlined_call_operand.vmem [shape: f32[2,16,32], index: 0, kind: input, shape index: {}]
  %s1 = inlined_call_operand.vmem [shape: f32[2,1,16], index: 1, kind: input, shape index: {}]
  %s2 = inlined_call_operand.vmem [shape: f32[32,96], index: 2, kind: input, shape index: {}]
  %s3 = inlined_call_operand.vmem [shape: f32[1,96], index: 3, kind: input, shape index: {}]
  %s4 = inlined_call_operand.vmem [shape: f32[32,32], index: 4, kind: input, shape index: {}]
  %s5 = inlined_call_operand.vmem [shape: f32[1,32], index: 5, kind: input, shape index: {}]
  %s6 = inlined_call_operand.vmem [shape: f32[1,32], index: 6, kind: input, shape index: {}]
  %s7 = inlined_call_operand.vmem [shape: f32[1,32], index: 7, kind: input, shape index: {}]
  %s8 = inlined_call_operand.vmem [shape: f32[32,64], index: 8, kind: input, shape index: {}]
  %s9 = inlined_call_operand.vmem [shape: f32[1,64], index: 9, kind: input, shape index: {}]
  %s10 = inlined_call_operand.vmem [shape: f32[64,32], index: 10, kind: input, shape index: {}]
  %s11 = inlined_call_operand.vmem [shape: f32[1,32], index: 11, kind: input, shape index: {}]
  %s12 = inlined_call_operand.vmem [shape: f32[1,32], index: 12, kind: input, shape index: {}]
  %s13 = inlined_call_operand.vmem [shape: f32[1,32], index: 13, kind: input, shape index: {}]
  %s14 = inlined_call_operand.vmem [shape: f32[2,16,32], index: 14, kind: output, shape index: {}]
  %s15 = sld [smem:[#allocation0]]
  $region89: #{custom_model_forward.11} parent=0
    _
  %s17 = ssub.s32 1, %s15
  %s18 = scalar_select 0, %s17, %s15
  loop: start=0, step=1, limit=4
  $region2: #{custom_model_forward.11} parent=0 // loop_pre_header
    _
  $region3: #{custom_model_forward.11} parent=0 // loop_header
    %s20 = sphi 0, %s24
    %p21 = scmp.ge.s32.totalorder %s20, 4
    %s30 = sphi 0, %s32
    %s33 = sphi 0, %s30
    %s34 = sphi 0, %s33
    %s50 = sphi 0, %s34
    %s56 = sphi 0, %s58
    %s59 = sphi 0, %s56
    %s60 = sphi 0, %s59
    %s76 = sphi 0, %s60
    %s80 = sphi 0, %s80
    %s82 = sphi 0, %s80
    %s83 = sphi 0, %s82
    %s97 = sphi 0, %s83
    %s101 = sphi 0, %s101
    %s103 = sphi 0, %s101
    %s104 = sphi 0, %s103
    %s118 = sphi 0, %s104
    %s122 = sphi 0, %s122
    %s124 = sphi 0, %s122
    %s125 = sphi 0, %s124
    %s139 = sphi 0, %s125
    %s143 = sphi 0, %s143
    %s145 = sphi 0, %s143
    %s146 = sphi 0, %s145
    %s160 = sphi 0, %s146
    %s164 = sphi 0, %s164
    %s166 = sphi 0, %s164
    %s167 = sphi 0, %s166
    %s181 = sphi 0, %s167
    %s185 = sphi 0, %s185
    %s187 = sphi 0, %s185
    %s188 = sphi 0, %s187
    %s202 = sphi 0, %s188
    %s206 = sphi 0, %s206
    %s208 = sphi 0, %s206
    %s209 = sphi 0, %s208
    %s223 = sphi 0, %s209
    %s227 = sphi 0, %s227
    %s229 = sphi 0, %s227
    %s230 = sphi 0, %s229
    %s244 = sphi 0, %s230
    %s248 = sphi 0, %s248
    %s250 = sphi 0, %s248
    %s251 = sphi 0, %s250
    %s265 = sphi 0, %s251
    %s269 = sphi 0, %s269
    %s271 = sphi 0, %s269
    %s272 = sphi 0, %s271
    %s286 = sphi 0, %s272
    %s290 = sphi 0, %s290
    %s292 = sphi 0, %s290
    %s293 = sphi 0, %s292
    %s307 = sphi 0, %s293
    %s311 = sphi 0, %s311
    %s313 = sphi 0, %s311
    %s314 = sphi 0, %s313
    %s328 = sphi 0, %s314
    %s334 = sphi 0, %s336
    %s337 = sphi 0, %s334
    %s338 = sphi 0, %s337
    %s354 = sphi 0, %s338
  $region4: #{custom_model_forward.11} parent=0 // loop_header_branch
    %23 = sbr.rel (%p21) target = $region8
  $region5: #{custom_model_forward.11} parent=0 // loop_body
    %s25 = ssub.s32 %s20, 1
    %s26 = ssub.s32 %s20, 2
    %s27 = sadd.s32 %s20, 1
    %s28 = ssub.s32 %s20, %s27
    %p29 = scmp.eq.s32.totalorder %s28, 0
    %s31 = sadd.s32 %s30, 1
    %s32 = scalar_select %p29, %s30, %s31
    %p35 = pneg %p29
    %p36 = scmp.eq.s32.totalorder %s20, 1
    %p37 = por %p35, %p36
    %p38 = scmp.ne.s32.totalorder %s30, %s33
    %p39 = scmp.eq.s32.totalorder %s20, 0
    %p40 = por %p38, %p39
    %p41 = scmp.ne.s32.totalorder %s30, %s33
    %p42 = scmp.eq.s32.totalorder %s25, 1
    %p43 = por %p41, %p42
    %p44 = scmp.ne.s32.totalorder %s33, %s34
    %p45 = scmp.eq.s32.totalorder %s25, 0
    %p46 = por %p44, %p45
    %p47 = scmp.ne.s32.totalorder %s33, %s34
    %p48 = scmp.eq.s32.totalorder %s26, 1
    %p49 = por %p47, %p48
    %p51 = scmp.ne.s32.totalorder %s34, %s50
    %p52 = scmp.eq.s32.totalorder %s26, 0
    %p53 = por %p51, %p52
    %s54 = ssub.s32 %s20, %s27
    %p55 = scmp.eq.s32.totalorder %s54, 0
    %s57 = sadd.s32 %s56, 1
    %s58 = scalar_select %p55, %s56, %s57
    %p61 = pneg %p55
    %p62 = scmp.eq.s32.totalorder %s20, 1
    %p63 = por %p61, %p62
    %p64 = scmp.ne.s32.totalorder %s56, %s59
    %p65 = scmp.eq.s32.totalorder %s20, 0
    %p66 = por %p64, %p65
    %p67 = scmp.ne.s32.totalorder %s56, %s59
    %p68 = scmp.eq.s32.totalorder %s25, 1
    %p69 = por %p67, %p68
    %p70 = scmp.ne.s32.totalorder %s59, %s60
    %p71 = scmp.eq.s32.totalorder %s25, 0
    %p72 = por %p70, %p71
    %p73 = scmp.ne.s32.totalorder %s59, %s60
    %p74 = scmp.eq.s32.totalorder %s26, 1
    %p75 = por %p73, %p74
    %p77 = scmp.ne.s32.totalorder %s60, %s76
    %p78 = scmp.eq.s32.totalorder %s26, 0
    %p79 = por %p77, %p78
    %s81 = sadd.s32 %s80, 1
    %p84 = scmp.eq.s32.totalorder %s20, 1
    %p85 = scmp.ne.s32.totalorder %s80, %s82
    %p86 = scmp.eq.s32.totalorder %s20, 0
    %p87 = por %p85, %p86
    %p88 = scmp.ne.s32.totalorder %s80, %s82
    %p89 = scmp.eq.s32.totalorder %s25, 1
    %p90 = por %p88, %p89
    %p91 = scmp.ne.s32.totalorder %s82, %s83
    %p92 = scmp.eq.s32.totalorder %s25, 0
    %p93 = por %p91, %p92
    %p94 = scmp.ne.s32.totalorder %s82, %s83
    %p95 = scmp.eq.s32.totalorder %s26, 1
    %p96 = por %p94, %p95
    %p98 = scmp.ne.s32.totalorder %s83, %s97
    %p99 = scmp.eq.s32.totalorder %s26, 0
    %p100 = por %p98, %p99
    %s102 = sadd.s32 %s101, 1
    %p105 = scmp.eq.s32.totalorder %s20, 1
    %p106 = scmp.ne.s32.totalorder %s101, %s103
    %p107 = scmp.eq.s32.totalorder %s20, 0
    %p108 = por %p106, %p107
    %p109 = scmp.ne.s32.totalorder %s101, %s103
    %p110 = scmp.eq.s32.totalorder %s25, 1
    %p111 = por %p109, %p110
    %p112 = scmp.ne.s32.totalorder %s103, %s104
    %p113 = scmp.eq.s32.totalorder %s25, 0
    %p114 = por %p112, %p113
    %p115 = scmp.ne.s32.totalorder %s103, %s104
    %p116 = scmp.eq.s32.totalorder %s26, 1
    %p117 = por %p115, %p116
    %p119 = scmp.ne.s32.totalorder %s104, %s118
    %p120 = scmp.eq.s32.totalorder %s26, 0
    %p121 = por %p119, %p120
    %s123 = sadd.s32 %s122, 1
    %p126 = scmp.eq.s32.totalorder %s20, 1
    %p127 = scmp.ne.s32.totalorder %s122, %s124
    %p128 = scmp.eq.s32.totalorder %s20, 0
    %p129 = por %p127, %p128
    %p130 = scmp.ne.s32.totalorder %s122, %s124
    %p131 = scmp.eq.s32.totalorder %s25, 1
    %p132 = por %p130, %p131
    %p133 = scmp.ne.s32.totalorder %s124, %s125
    %p134 = scmp.eq.s32.totalorder %s25, 0
    %p135 = por %p133, %p134
    %p136 = scmp.ne.s32.totalorder %s124, %s125
    %p137 = scmp.eq.s32.totalorder %s26, 1
    %p138 = por %p136, %p137
    %p140 = scmp.ne.s32.totalorder %s125, %s139
    %p141 = scmp.eq.s32.totalorder %s26, 0
    %p142 = por %p140, %p141
    %s144 = sadd.s32 %s143, 1
    %p147 = scmp.eq.s32.totalorder %s20, 1
    %p148 = scmp.ne.s32.totalorder %s143, %s145
    %p149 = scmp.eq.s32.totalorder %s20, 0
    %p150 = por %p148, %p149
    %p151 = scmp.ne.s32.totalorder %s143, %s145
    %p152 = scmp.eq.s32.totalorder %s25, 1
    %p153 = por %p151, %p152
    %p154 = scmp.ne.s32.totalorder %s145, %s146
    %p155 = scmp.eq.s32.totalorder %s25, 0
    %p156 = por %p154, %p155
    %p157 = scmp.ne.s32.totalorder %s145, %s146
    %p158 = scmp.eq.s32.totalorder %s26, 1
    %p159 = por %p157, %p158
    %p161 = scmp.ne.s32.totalorder %s146, %s160
    %p162 = scmp.eq.s32.totalorder %s26, 0
    %p163 = por %p161, %p162
    %s165 = sadd.s32 %s164, 1
    %p168 = scmp.eq.s32.totalorder %s20, 1
    %p169 = scmp.ne.s32.totalorder %s164, %s166
    %p170 = scmp.eq.s32.totalorder %s20, 0
    %p171 = por %p169, %p170
    %p172 = scmp.ne.s32.totalorder %s164, %s166
    %p173 = scmp.eq.s32.totalorder %s25, 1
    %p174 = por %p172, %p173
    %p175 = scmp.ne.s32.totalorder %s166, %s167
    %p176 = scmp.eq.s32.totalorder %s25, 0
    %p177 = por %p175, %p176
    %p178 = scmp.ne.s32.totalorder %s166, %s167
    %p179 = scmp.eq.s32.totalorder %s26, 1
    %p180 = por %p178, %p179
    %p182 = scmp.ne.s32.totalorder %s167, %s181
    %p183 = scmp.eq.s32.totalorder %s26, 0
    %p184 = por %p182, %p183
    %s186 = sadd.s32 %s185, 1
    %p189 = scmp.eq.s32.totalorder %s20, 1
    %p190 = scmp.ne.s32.totalorder %s185, %s187
    %p191 = scmp.eq.s32.totalorder %s20, 0
    %p192 = por %p190, %p191
    %p193 = scmp.ne.s32.totalorder %s185, %s187
    %p194 = scmp.eq.s32.totalorder %s25, 1
    %p195 = por %p193, %p194
    %p196 = scmp.ne.s32.totalorder %s187, %s188
    %p197 = scmp.eq.s32.totalorder %s25, 0
    %p198 = por %p196, %p197
    %p199 = scmp.ne.s32.totalorder %s187, %s188
    %p200 = scmp.eq.s32.totalorder %s26, 1
    %p201 = por %p199, %p200
    %p203 = scmp.ne.s32.totalorder %s188, %s202
    %p204 = scmp.eq.s32.totalorder %s26, 0
    %p205 = por %p203, %p204
    %s207 = sadd.s32 %s206, 1
    %p210 = scmp.eq.s32.totalorder %s20, 1
    %p211 = scmp.ne.s32.totalorder %s206, %s208
    %p212 = scmp.eq.s32.totalorder %s20, 0
    %p213 = por %p211, %p212
    %p214 = scmp.ne.s32.totalorder %s206, %s208
    %p215 = scmp.eq.s32.totalorder %s25, 1
    %p216 = por %p214, %p215
    %p217 = scmp.ne.s32.totalorder %s208, %s209
    %p218 = scmp.eq.s32.totalorder %s25, 0
    %p219 = por %p217, %p218
    %p220 = scmp.ne.s32.totalorder %s208, %s209
    %p221 = scmp.eq.s32.totalorder %s26, 1
    %p222 = por %p220, %p221
    %p224 = scmp.ne.s32.totalorder %s209, %s223
    %p225 = scmp.eq.s32.totalorder %s26, 0
    %p226 = por %p224, %p225
    %s228 = sadd.s32 %s227, 1
    %p231 = scmp.eq.s32.totalorder %s20, 1
    %p232 = scmp.ne.s32.totalorder %s227, %s229
    %p233 = scmp.eq.s32.totalorder %s20, 0
    %p234 = por %p232, %p233
    %p235 = scmp.ne.s32.totalorder %s227, %s229
    %p236 = scmp.eq.s32.totalorder %s25, 1
    %p237 = por %p235, %p236
    %p238 = scmp.ne.s32.totalorder %s229, %s230
    %p239 = scmp.eq.s32.totalorder %s25, 0
    %p240 = por %p238, %p239
    %p241 = scmp.ne.s32.totalorder %s229, %s230
    %p242 = scmp.eq.s32.totalorder %s26, 1
    %p243 = por %p241, %p242
    %p245 = scmp.ne.s32.totalorder %s230, %s244
    %p246 = scmp.eq.s32.totalorder %s26, 0
    %p247 = por %p245, %p246
    %s249 = sadd.s32 %s248, 1
    %p252 = scmp.eq.s32.totalorder %s20, 1
    %p253 = scmp.ne.s32.totalorder %s248, %s250
    %p254 = scmp.eq.s32.totalorder %s20, 0
    %p255 = por %p253, %p254
    %p256 = scmp.ne.s32.totalorder %s248, %s250
    %p257 = scmp.eq.s32.totalorder %s25, 1
    %p258 = por %p256, %p257
    %p259 = scmp.ne.s32.totalorder %s250, %s251
    %p260 = scmp.eq.s32.totalorder %s25, 0
    %p261 = por %p259, %p260
    %p262 = scmp.ne.s32.totalorder %s250, %s251
    %p263 = scmp.eq.s32.totalorder %s26, 1
    %p264 = por %p262, %p263
    %p266 = scmp.ne.s32.totalorder %s251, %s265
    %p267 = scmp.eq.s32.totalorder %s26, 0
    %p268 = por %p266, %p267
    %s270 = sadd.s32 %s269, 1
    %p273 = scmp.eq.s32.totalorder %s20, 1
    %p274 = scmp.ne.s32.totalorder %s269, %s271
    %p275 = scmp.eq.s32.totalorder %s20, 0
    %p276 = por %p274, %p275
    %p277 = scmp.ne.s32.totalorder %s269, %s271
    %p278 = scmp.eq.s32.totalorder %s25, 1
    %p279 = por %p277, %p278
    %p280 = scmp.ne.s32.totalorder %s271, %s272
    %p281 = scmp.eq.s32.totalorder %s25, 0
    %p282 = por %p280, %p281
    %p283 = scmp.ne.s32.totalorder %s271, %s272
    %p284 = scmp.eq.s32.totalorder %s26, 1
    %p285 = por %p283, %p284
    %p287 = scmp.ne.s32.totalorder %s272, %s286
    %p288 = scmp.eq.s32.totalorder %s26, 0
    %p289 = por %p287, %p288
    %s291 = sadd.s32 %s290, 1
    %p294 = scmp.eq.s32.totalorder %s20, 1
    %p295 = scmp.ne.s32.totalorder %s290, %s292
    %p296 = scmp.eq.s32.totalorder %s20, 0
    %p297 = por %p295, %p296
    %p298 = scmp.ne.s32.totalorder %s290, %s292
    %p299 = scmp.eq.s32.totalorder %s25, 1
    %p300 = por %p298, %p299
    %p301 = scmp.ne.s32.totalorder %s292, %s293
    %p302 = scmp.eq.s32.totalorder %s25, 0
    %p303 = por %p301, %p302
    %p304 = scmp.ne.s32.totalorder %s292, %s293
    %p305 = scmp.eq.s32.totalorder %s26, 1
    %p306 = por %p304, %p305
    %p308 = scmp.ne.s32.totalorder %s293, %s307
    %p309 = scmp.eq.s32.totalorder %s26, 0
    %p310 = por %p308, %p309
    %s312 = sadd.s32 %s311, 1
    %p315 = scmp.eq.s32.totalorder %s20, 1
    %p316 = scmp.ne.s32.totalorder %s311, %s313
    %p317 = scmp.eq.s32.totalorder %s20, 0
    %p318 = por %p316, %p317
    %p319 = scmp.ne.s32.totalorder %s311, %s313
    %p320 = scmp.eq.s32.totalorder %s25, 1
    %p321 = por %p319, %p320
    %p322 = scmp.ne.s32.totalorder %s313, %s314
    %p323 = scmp.eq.s32.totalorder %s25, 0
    %p324 = por %p322, %p323
    %p325 = scmp.ne.s32.totalorder %s313, %s314
    %p326 = scmp.eq.s32.totalorder %s26, 1
    %p327 = por %p325, %p326
    %p329 = scmp.ne.s32.totalorder %s314, %s328
    %p330 = scmp.eq.s32.totalorder %s26, 0
    %p331 = por %p329, %p330
    %s332 = ssub.s32 %s20, %s27
    %p333 = scmp.eq.s32.totalorder %s332, 0
    %s335 = sadd.s32 %s334, 1
    %s336 = scalar_select %p333, %s334, %s335
    %p339 = pneg %p333
    %p340 = scmp.eq.s32.totalorder %s20, 1
    %p341 = por %p339, %p340
    %p342 = scmp.ne.s32.totalorder %s334, %s337
    %p343 = scmp.eq.s32.totalorder %s20, 0
    %p344 = por %p342, %p343
    %p345 = scmp.ne.s32.totalorder %s334, %s337
    %p346 = scmp.eq.s32.totalorder %s25, 1
    %p347 = por %p345, %p346
    %p348 = scmp.ne.s32.totalorder %s337, %s338
    %p349 = scmp.eq.s32.totalorder %s25, 0
    %p350 = por %p348, %p349
    %p351 = scmp.ne.s32.totalorder %s337, %s338
    %p352 = scmp.eq.s32.totalorder %s26, 1
    %p353 = por %p351, %p352
    %p355 = scmp.ne.s32.totalorder %s338, %s354
    %p356 = scmp.eq.s32.totalorder %s26, 0
    %p357 = por %p355, %p356
    %p358 = scmp.le.s32.totalorder 1, %s20
    %p359 = scmp.lt.s32.totalorder %s20, 3
    %p360 = pnand %p358, %p359
    %p361 = pneg %p360
    // Predicated region
    $region9: #{custom_model_forward.11} parent=5 // pred_check
      _
    $region10: #{custom_model_forward.11} parent=5 // pred_check_branch
      %363 = sbr.rel (%p360) target = $region12
    $region11: #{custom_model_forward.11} parent=5 // pred_region
      %s364 = ssub.s32 %s20, 1
      // Predicated region
      $region13: #{custom_model_forward.11} parent=11 // pred_check
        %p365 = pneg %p93
      $region14: #{custom_model_forward.11} parent=11 // pred_check_branch
        %367 = sbr.rel (%p365) target = $region16
      $region15: #{custom_model_forward.11} parent=11 // pred_region
        _
      $region16: #{custom_model_forward.11} parent=11 // pred_fallthru
        _
      // Predicated region
      $region17: #{custom_model_forward.11} parent=11 // pred_check
        %p368 = pneg %p114
      $region18: #{custom_model_forward.11} parent=11 // pred_check_branch
        %370 = sbr.rel (%p368) target = $region20
      $region19: #{custom_model_forward.11} parent=11 // pred_region
        _
      $region20: #{custom_model_forward.11} parent=11 // pred_fallthru
        _
      // Predicated region
      $region21: #{custom_model_forward.11} parent=11 // pred_check
        %p371 = pneg %p135
      $region22: #{custom_model_forward.11} parent=11 // pred_check_branch
        %373 = sbr.rel (%p371) target = $region24
      $region23: #{custom_model_forward.11} parent=11 // pred_region
        _
      $region24: #{custom_model_forward.11} parent=11 // pred_fallthru
        _
      // Predicated region
      $region25: #{custom_model_forward.11} parent=11 // pred_check
        %p374 = pneg %p156
      $region26: #{custom_model_forward.11} parent=11 // pred_check_branch
        %376 = sbr.rel (%p374) target = $region28
      $region27: #{custom_model_forward.11} parent=11 // pred_region
        _
      $region28: #{custom_model_forward.11} parent=11 // pred_fallthru
        _
      // Predicated region
      $region29: #{custom_model_forward.11} parent=11 // pred_check
        %p377 = pneg %p177
      $region30: #{custom_model_forward.11} parent=11 // pred_check_branch
        %379 = sbr.rel (%p377) target = $region32
      $region31: #{custom_model_forward.11} parent=11 // pred_region
        _
      $region32: #{custom_model_forward.11} parent=11 // pred_fallthru
        _
      // Predicated region
      $region33: #{custom_model_forward.11} parent=11 // pred_check
        %p380 = pneg %p198
      $region34: #{custom_model_forward.11} parent=11 // pred_check_branch
        %382 = sbr.rel (%p380) target = $region36
      $region35: #{custom_model_forward.11} parent=11 // pred_region
        _
      $region36: #{custom_model_forward.11} parent=11 // pred_fallthru
        _
      // Predicated region
      $region37: #{custom_model_forward.11} parent=11 // pred_check
        %p383 = pneg %p219
      $region38: #{custom_model_forward.11} parent=11 // pred_check_branch
        %385 = sbr.rel (%p383) target = $region40
      $region39: #{custom_model_forward.11} parent=11 // pred_region
        _
      $region40: #{custom_model_forward.11} parent=11 // pred_fallthru
        _
      // Predicated region
      $region41: #{custom_model_forward.11} parent=11 // pred_check
        %p386 = pneg %p240
      $region42: #{custom_model_forward.11} parent=11 // pred_check_branch
        %388 = sbr.rel (%p386) target = $region44
      $region43: #{custom_model_forward.11} parent=11 // pred_region
        _
      $region44: #{custom_model_forward.11} parent=11 // pred_fallthru
        _
      // Predicated region
      $region45: #{custom_model_forward.11} parent=11 // pred_check
        %p389 = pneg %p261
      $region46: #{custom_model_forward.11} parent=11 // pred_check_branch
        %391 = sbr.rel (%p389) target = $region48
      $region47: #{custom_model_forward.11} parent=11 // pred_region
        _
      $region48: #{custom_model_forward.11} parent=11 // pred_fallthru
        _
      // Predicated region
      $region49: #{custom_model_forward.11} parent=11 // pred_check
        %p392 = pneg %p282
      $region50: #{custom_model_forward.11} parent=11 // pred_check_branch
        %394 = sbr.rel (%p392) target = $region52
      $region51: #{custom_model_forward.11} parent=11 // pred_region
        _
      $region52: #{custom_model_forward.11} parent=11 // pred_fallthru
        _
      // Predicated region
      $region53: #{custom_model_forward.11} parent=11 // pred_check
        %p395 = pneg %p303
      $region54: #{custom_model_forward.11} parent=11 // pred_check_branch
        %397 = sbr.rel (%p395) target = $region56
      $region55: #{custom_model_forward.11} parent=11 // pred_region
        _
      $region56: #{custom_model_forward.11} parent=11 // pred_fallthru
        _
      // Predicated region
      $region57: #{custom_model_forward.11} parent=11 // pred_check
        %p398 = pneg %p324
      $region58: #{custom_model_forward.11} parent=11 // pred_check_branch
        %400 = sbr.rel (%p398) target = $region60
      $region59: #{custom_model_forward.11} parent=11 // pred_region
        _
      $region60: #{custom_model_forward.11} parent=11 // pred_fallthru
        _
    $region12: #{custom_model_forward.11} parent=5 // pred_fallthru
      _
    %p401 = scmp.lt.s32.totalorder %s20, 2
    // Predicated region
    $region61: #{custom_model_forward.11} parent=5 // pred_check
      %p402 = pneg %p401
    $region62: #{custom_model_forward.11} parent=5 // pred_check_branch
      %404 = sbr.rel (%p402) target = $region64
    $region63: #{custom_model_forward.11} parent=5 // pred_region
      // Predicated region
      $region65: #{custom_model_forward.11} parent=63 // pred_check
        %p405 = pneg %p40
      $region66: #{custom_model_forward.11} parent=63 // pred_check_branch
        %407 = sbr.rel (%p405) target = $region68
      $region67: #{custom_model_forward.11} parent=63 // pred_region
        %p408 = scmp.lt.s32.totalorder %s20, 1
        %s409 = scalar_select %p408, %s20, 1
        %s410 = smul.addr %s409, 2
        %s411 = smul.addr %s410, 8
        %s412 = scalar_lea.vmem %s0, %s411
      $region68: #{custom_model_forward.11} parent=63 // pred_fallthru
        _
      // Predicated region
      $region69: #{custom_model_forward.11} parent=63 // pred_check
        %p413 = pneg %p66
      $region70: #{custom_model_forward.11} parent=63 // pred_check_branch
        %415 = sbr.rel (%p413) target = $region72
      $region71: #{custom_model_forward.11} parent=63 // pred_region
        %p416 = scmp.lt.s32.totalorder %s20, 1
        %s417 = scalar_select %p416, %s20, 1
        %s418 = scalar_lea.vmem %s1, %s417
      $region72: #{custom_model_forward.11} parent=63 // pred_fallthru
        _
    $region64: #{custom_model_forward.11} parent=5 // pred_fallthru
      _
    %p419 = scmp.le.s32.totalorder 1, %s20
    %p420 = scmp.lt.s32.totalorder %s20, 3
    %p421 = pnand %p419, %p420
    %p422 = pneg %p421
    // Predicated region
    $region73: #{custom_model_forward.11} parent=5 // pred_check
      _
    $region74: #{custom_model_forward.11} parent=5 // pred_check_branch
      %424 = sbr.rel (%p421) target = $region76
    $region75: #{custom_model_forward.11} parent=5 // pred_region
      %s425 = ssub.s32 %s20, 1
      %p426 = scmp.lt.s32.totalorder %s25, 1
      %s427 = scalar_select %p426, %s25, 1
      %s428 = smul.addr %s427, 2
      %s429 = smul.addr %s428, 8
      %s430 = scalar_lea.vmem %s0, %s429
      %p431 = pneg %p46
      %p432 = pneg %p43
      %p433 = scmp.lt.s32.totalorder %s25, 1
      %s434 = scalar_select %p433, %s25, 1
      %s435 = scalar_lea.vmem %s1, %s434
      %p436 = pneg %p72
      %p437 = pneg %p69
      %p438 = pneg %p93
      %p439 = pneg %p90
      %p440 = pneg %p114
      %p441 = pneg %p111
      %p442 = pneg %p135
      %p443 = pneg %p132
      %p444 = pneg %p156
      %p445 = pneg %p153
      %p446 = pneg %p177
      %p447 = pneg %p174
      %p448 = pneg %p198
      %p449 = pneg %p195
      %p450 = pneg %p219
      %p451 = pneg %p216
      %p452 = pneg %p240
      %p453 = pneg %p237
      %p454 = pneg %p261
      %p455 = pneg %p258
      %p456 = pneg %p282
      %p457 = pneg %p279
      %p458 = pneg %p303
      %p459 = pneg %p300
      %p460 = pneg %p324
      %p461 = pneg %p321
      %p462 = pneg %p350
      %p463 = pneg %p347
      %p464 = scmp.lt.s32.totalorder %s25, 1
      %s465 = scalar_select %p464, %s25, 1
      %s466 = smul.addr %s465, 2
      %s467 = smul.addr %s466, 8
      %s468 = scalar_lea.vmem %s14, %s467
      %p469 = scmp.lt.s32.totalorder %s25, 1
      %s470 = scalar_select %p469, %s25, 1
      %s471 = smul.addr %s470, 2
      %s472 = smul.addr %s471, 8
      %s473 = scalar_lea.vmem %s0, %s472
      %p474 = scmp.lt.s32.totalorder %s25, 1
      %s475 = scalar_select %p474, %s25, 1
      %s476 = scalar_lea.vmem %s1, %s475
      %p477 = scmp.lt.s32.totalorder %s25, 1
      %s478 = scalar_select %p477, %s25, 1
      %s479 = smul.addr %s478, 2
      %s480 = smul.addr %s479, 8
      %s481 = scalar_lea.vmem %s14, %s480
      %v482 = vld [vmem:[%s473] sm:$0xff]
      %v483 = vld [vmem:[%s473 + $0x8] sm:$0xff]
      %v484 = vld [vmem:[%s476] sm:$0x1]
      %v485 = vld [vmem:[%s2] sm:$0xff]
      %v486 = vld [vmem:[%s2 + $0x8] sm:$0xff]
      %v487 = vld [vmem:[%s2 + $0x10] sm:$0xff]
      %v488 = vld [vmem:[%s2 + $0x18] sm:$0xff]
      %v489 = vld [vmem:[%s3] sm:$0x1]
      %v491 = vlaneseq
      %v492 = vshrl.u32 %v491, 7
      %v493 = vsub.s32 0, %v492
      %v494 = vrot.slane %v489, %v493
      %vm496 = vcmask 261120
      %v498 = vsel %vm496, %v482, 0
      %v501 = vsel %vm496, %v483, 0
      %503 = vmatprep.subr.mxu0 0.0
      %504 = vmatpush1.msra.mxu0 %v485
      %505 = vmatprep.subr.mxu0 0.0
      %506 = vmatpush1.msra.mxu0 %v486
      %507 = vmatprep.subr.mxu0 0.0
      %508 = vmatpush1.msra.mxu0 %v487
      %509 = vmatprep.subr.mxu0 0.0
      %510 = vmatpush1.msra.mxu0 %v488
      %511 = vmatprep.subr.mxu0 0.0
      %512 = vmatpush1.msra.mxu0 0.0
      %513 = vmatprep.subr.mxu0 0.0
      %514 = vmatpush1.msra.mxu0 0.0
      %515 = vmatprep.subr.mxu0 0.0
      %516 = vmatpush1.msra.mxu0 0.0
      %517 = vmatprep.subr.mxu0 0.0
      %518 = vmatpush1.msra.mxu0 0.0
      %519 = vmatprep.subr.mxu0 0.0
      %520 = vmatpush1.msra.mxu0 0.0
      %521 = vmatprep.subr.mxu0 0.0
      %522 = vmatpush1.msra.mxu0 0.0
      %523 = vmatprep.subr.mxu0 0.0
      %524 = vmatpush1.msra.mxu0 0.0
      %525 = vmatprep.subr.mxu0 0.0
      %526 = vmatpush1.msra.mxu0 0.0
      %527 = vmatprep.subr.mxu0 0.0
      %528 = vmatpush1.msra.mxu0 0.0
      %529 = vmatprep.subr.mxu0 0.0
      %530 = vmatpush1.msra.mxu0 0.0
      %531 = vmatprep.subr.mxu0 0.0
      %532 = vmatpush1.msra.mxu0 0.0
      %533 = vmatprep.subr.mxu0 0.0
      %534 = vmatpush1.msra.mxu0 0.0
      %535 = vmatprep.subr.mxu0 0.0
      %536 = vmatpush1.msra.mxu0 0.0
      %537 = vmatprep.subr.mxu0 0.0
      %538 = vmatpush1.msra.mxu0 0.0
      %539 = vmatprep.subr.mxu0 0.0
      %540 = vmatpush1.msra.mxu0 0.0
      %541 = vmatprep.subr.mxu0 0.0
      %542 = vmatpush1.msra.mxu0 0.0
      %543 = vmatprep.subr.mxu0 0.0
      %544 = vmatpush1.msra.mxu0 0.0
      %545 = vmatprep.subr.mxu0 0.0
      %546 = vmatpush1.msra.mxu0 0.0
      %547 = vmatprep.subr.mxu0 0.0
      %548 = vmatpush1.msra.mxu0 0.0
      %549 = vmatprep.subr.mxu0 0.0
      %550 = vmatpush1.msra.mxu0 0.0
      %551 = vmatprep.subr.mxu0 0.0
      %552 = vmatpush1.msra.mxu0 0.0
      %553 = vmatprep.subr.mxu0 0.0
      %554 = vmatpush1.msra.mxu0 0.0
      %555 = vmatprep.subr.mxu0 0.0
      %556 = vmatpush1.msra.mxu0 0.0
      %557 = vmatprep.subr.mxu0 0.0
      %558 = vmatpush1.msra.mxu0 0.0
      %559 = vmatprep.subr.mxu0 0.0
      %560 = vmatpush1.msra.mxu0 0.0
      %561 = vmatprep.subr.mxu0 0.0
      %562 = vmatpush1.msra.mxu0 0.0
      %563 = vmatprep.subr.mxu0 0.0
      %564 = vmatpush1.msra.mxu0 0.0
      %565 = vmatprep.subr.mxu0 0.0
      %566 = vmatpush1.msra.mxu0 0.0
      %567 = vmatprep.mubr.f32.mxu0 0.0
      %568 = vmatmul.mubr.f32.gmra.mrb[0].mxu0 %v498
      %v569 = vpop.f32.mrb[0].mxu0
      %v570 = vadd.f32 %v494, %v569
      %v571 = vpop.f32.mrb[0].mxu0
      %572 = vmatprep.mubr.f32.mxu0 0.0
      %573 = vmatmul.mubr.f32.gmra.mrb[0].mxu0 %v501
      %v574 = vpop.f32.mrb[0].mxu0
      %v575 = vadd.f32 %v494, %v574
      %v576 = vpop.f32.mrb[0].mxu0
      %577 = vdwg.mxu0
      %580 = vrot.lane.b32.xlu0 %v570, 96
      %v581 = vpop.permute.xlu0 %580
      %582 = vrot.lane.b32.xlu0 %v575, 96
      %v583 = vpop.permute.xlu0 %582
      %vm584 = vcmask 64512
      %v585 = vsel %vm584, %v570, 0
      %v587 = vsel %vm584, %v575, 0
      %v589 = vsel %vm584, %v581, 0
      %v591 = vsel %vm584, %v583, 0
      %593 = vmatprep.subr.mxu0 0.0
      %594 = vmatpush1.xpose.msra.mxu0 %v589
      %595 = vmatprep.subr.mxu0 0.0
      %596 = vmatpush1.xpose.msra.mxu0 %v591
      %597 = vmatprep.subr.mxu0 0.0
      %598 = vmatpush1.xpose.msra.mxu0 0.0
      %599 = vmatprep.subr.mxu0 0.0
      %600 = vmatpush1.xpose.msra.mxu0 0.0
      %601 = vmatprep.subr.mxu0 0.0
      %602 = vmatpush1.xpose.msra.mxu0 0.0
      %603 = vmatprep.subr.mxu0 0.0
      %604 = vmatpush1.xpose.msra.mxu0 0.0
      %605 = vmatprep.subr.mxu0 0.0
      %606 = vmatpush1.xpose.msra.mxu0 0.0
      %607 = vmatprep.subr.mxu0 0.0
      %608 = vmatpush1.xpose.msra.mxu0 0.0
      %609 = vmatprep.subr.mxu0 0.0
      %610 = vmatpush1.xpose.msra.mxu0 0.0
      %611 = vmatprep.subr.mxu0 0.0
      %612 = vmatpush1.xpose.msra.mxu0 0.0
      %613 = vmatprep.subr.mxu0 0.0
      %614 = vmatpush1.xpose.msra.mxu0 0.0
      %615 = vmatprep.subr.mxu0 0.0
      %616 = vmatpush1.xpose.msra.mxu0 0.0
      %617 = vmatprep.subr.mxu0 0.0
      %618 = vmatpush1.xpose.msra.mxu0 0.0
      %619 = vmatprep.subr.mxu0 0.0
      %620 = vmatpush1.xpose.msra.mxu0 0.0
      %621 = vmatprep.subr.mxu0 0.0
      %622 = vmatpush1.xpose.msra.mxu0 0.0
      %623 = vmatprep.subr.mxu0 0.0
      %624 = vmatpush1.xpose.msra.mxu0 0.0
      %625 = vmatprep.subr.mxu0 0.0
      %626 = vmatpush1.xpose.msra.mxu0 0.0
      %627 = vmatprep.subr.mxu0 0.0
      %628 = vmatpush1.xpose.msra.mxu0 0.0
      %629 = vmatprep.subr.mxu0 0.0
      %630 = vmatpush1.xpose.msra.mxu0 0.0
      %631 = vmatprep.subr.mxu0 0.0
      %632 = vmatpush1.xpose.msra.mxu0 0.0
      %633 = vmatprep.subr.mxu0 0.0
      %634 = vmatpush1.xpose.msra.mxu0 0.0
      %635 = vmatprep.subr.mxu0 0.0
      %636 = vmatpush1.xpose.msra.mxu0 0.0
      %637 = vmatprep.subr.mxu0 0.0
      %638 = vmatpush1.xpose.msra.mxu0 0.0
      %639 = vmatprep.subr.mxu0 0.0
      %640 = vmatpush1.xpose.msra.mxu0 0.0
      %641 = vmatprep.subr.mxu0 0.0
      %642 = vmatpush1.xpose.msra.mxu0 0.0
      %643 = vmatprep.subr.mxu0 0.0
      %644 = vmatpush1.xpose.msra.mxu0 0.0
      %645 = vmatprep.subr.mxu0 0.0
      %646 = vmatpush1.xpose.msra.mxu0 0.0
      %647 = vmatprep.subr.mxu0 0.0
      %648 = vmatpush1.xpose.msra.mxu0 0.0
      %649 = vmatprep.subr.mxu0 0.0
      %650 = vmatpush1.xpose.msra.mxu0 0.0
      %651 = vmatprep.subr.mxu0 0.0
      %652 = vmatpush1.xpose.msra.mxu0 0.0
      %653 = vmatprep.subr.mxu0 0.0
      %654 = vmatpush1.xpose.msra.mxu0 0.0
      %655 = vmatprep.subr.mxu0 0.0
      %656 = vmatpush1.xpose.msra.mxu0 0.0
      %657 = vmatprep.mubr.f32.mxu0 0.0
      %658 = vmatmul.mubr.f32.gmra.mrb[0].mxu0 %v585
      %v659 = vpop.f32.mrb[0].mxu0
      %v660 = vadd.f32 0.0, %v659
      %v661 = vpop.f32.mrb[0].mxu0
      %662 = vmatprep.mubr.f32.mxu0 0.0
      %663 = vmatmul.mubr.f32.gmra.mrb[0].mxu0 %v587
      %v664 = vpop.f32.mrb[0].mxu0
      %v665 = vadd.f32 0.0, %v664
      %v666 = vpop.f32.mrb[0].mxu0
      %667 = vdwg.mxu0
      %v668 = vmul.f32 %v660, 0.35355338
      %v669 = vmul.f32 %v665, 0.35355338
      %v671 = vlaneseq
      %v672 = vshrl.u32 %v671, 7
      %v673 = vsub.s32 0, %v672
      %v674 = vrot.slane %v484, %v673
      %v676 = vadd.f32 %v668, %v674
      %v677 = vadd.f32 %v669, %v674
      %vm678 = vcmask 130048
      %v679 = vsel %vm678, %v676, -inf
      %680 = vmax.xlane.f32.xlu0 %v679
      %v681 = vpop.xlane.xlu0 %680
      %v682 = vsel %vm678, %v677, -inf
      %683 = vmax.xlane.f32.xlu0 %v682
      %v684 = vpop.xlane.xlu0 %683
      %v685 = vsub.f32 %v676, %v681
      %v686 = vsub.f32 %v677, %v684
      %v687 = vmul.f32 %v685, 1.442695
      %v688 = vpow.pop %v687
      %v689 = vmul.f32 %v686, 1.442695
      %v690 = vpow.pop %v689
      %v691 = vsel %vm678, %v688, 0.0
      %692 = vadd.xlane.f32.xlu0 %v691
      %v693 = vpop.xlane.xlu0 %692
      %v694 = vsel %vm678, %v690, 0.0
      %695 = vadd.xlane.f32.xlu0 %v694
      %v696 = vpop.xlane.xlu0 %695
      %v697 = vrcp.pop %v693
      %v698 = vmul.f32 %v688, %v697
      %v699 = vrcp.pop %v696
      %v700 = vmul.f32 %v690, %v699
      %701 = vrot.lane.b32.xlu0 %v570, 64
      %v702 = vpop.permute.xlu0 %701
      %703 = vrot.lane.b32.xlu0 %v575, 64
      %v704 = vpop.permute.xlu0 %703
      %v708 = vsel %vm678, %v698, 0
      %v711 = vsel %vm678, %v700, 0
      %713 = vmatprep.subr.mxu0 0.0
      %714 = vmatpush1.msra.mxu0 %v702
      %715 = vmatprep.subr.mxu0 0.0
      %716 = vmatpush1.msra.mxu0 %v704
      %717 = vmatprep.subr.mxu0 0.0
      %718 = vmatpush1.msra.mxu0 0.0
      %719 = vmatprep.subr.mxu0 0.0
      %720 = vmatpush1.msra.mxu0 0.0
      %721 = vmatprep.subr.mxu0 0.0
      %722 = vmatpush1.msra.mxu0 0.0
      %723 = vmatprep.subr.mxu0 0.0
      %724 = vmatpush1.msra.mxu0 0.0
      %725 = vmatprep.subr.mxu0 0.0
      %726 = vmatpush1.msra.mxu0 0.0
      %727 = vmatprep.subr.mxu0 0.0
      %728 = vmatpush1.msra.mxu0 0.0
      %729 = vmatprep.subr.mxu0 0.0
      %730 = vmatpush1.msra.mxu0 0.0
      %731 = vmatprep.subr.mxu0 0.0
      %732 = vmatpush1.msra.mxu0 0.0
      %733 = vmatprep.subr.mxu0 0.0
      %734 = vmatpush1.msra.mxu0 0.0
      %735 = vmatprep.subr.mxu0 0.0
      %736 = vmatpush1.msra.mxu0 0.0
      %737 = vmatprep.subr.mxu0 0.0
      %738 = vmatpush1.msra.mxu0 0.0
      %739 = vmatprep.subr.mxu0 0.0
      %740 = vmatpush1.msra.mxu0 0.0
      %741 = vmatprep.subr.mxu0 0.0
      %742 = vmatpush1.msra.mxu0 0.0
      %743 = vmatprep.subr.mxu0 0.0
      %744 = vmatpush1.msra.mxu0 0.0
      %745 = vmatprep.subr.mxu0 0.0
      %746 = vmatpush1.msra.mxu0 0.0
      %747 = vmatprep.subr.mxu0 0.0
      %748 = vmatpush1.msra.mxu0 0.0
      %749 = vmatprep.subr.mxu0 0.0
      %750 = vmatpush1.msra.mxu0 0.0
      %751 = vmatprep.subr.mxu0 0.0
      %752 = vmatpush1.msra.mxu0 0.0
      %753 = vmatprep.subr.mxu0 0.0
      %754 = vmatpush1.msra.mxu0 0.0
      %755 = vmatprep.subr.mxu0 0.0
      %756 = vmatpush1.msra.mxu0 0.0
      %757 = vmatprep.subr.mxu0 0.0
      %758 = vmatpush1.msra.mxu0 0.0
      %759 = vmatprep.subr.mxu0 0.0
      %760 = vmatpush1.msra.mxu0 0.0
      %761 = vmatprep.subr.mxu0 0.0
      %762 = vmatpush1.msra.mxu0 0.0
      %763 = vmatprep.subr.mxu0 0.0
      %764 = vmatpush1.msra.mxu0 0.0
      %765 = vmatprep.subr.mxu0 0.0
      %766 = vmatpush1.msra.mxu0 0.0
      %767 = vmatprep.subr.mxu0 0.0
      %768 = vmatpush1.msra.mxu0 0.0
      %769 = vmatprep.subr.mxu0 0.0
      %770 = vmatpush1.msra.mxu0 0.0
      %771 = vmatprep.subr.mxu0 0.0
      %772 = vmatpush1.msra.mxu0 0.0
      %773 = vmatprep.subr.mxu0 0.0
      %774 = vmatpush1.msra.mxu0 0.0
      %775 = vmatprep.subr.mxu0 0.0
      %776 = vmatpush1.msra.mxu0 0.0
      %777 = vmatprep.mubr.f32.mxu0 0.0
      %778 = vmatmul.mubr.f32.gmra.mrb[0].mxu0 %v708
      %v779 = vpop.f32.mrb[0].mxu0
      %v780 = vadd.f32 0.0, %v779
      %v781 = vpop.f32.mrb[0].mxu0
      %782 = vmatprep.mubr.f32.mxu0 0.0
      %783 = vmatmul.mubr.f32.gmra.mrb[0].mxu0 %v711
      %v784 = vpop.f32.mrb[0].mxu0
      %v785 = vadd.f32 0.0, %v784
      %v786 = vpop.f32.mrb[0].mxu0
      %787 = vdwg.mxu0
      %788 = vrot.lane.b32.xlu0 %v570, 120
      %v789 = vpop.permute.xlu0 %788
      %790 = vrot.lane.b32.xlu0 %v575, 120
      %v791 = vpop.permute.xlu0 %790
      %792 = vrot.lane.b32.xlu0 %v570, 88
      %v793 = vpop.permute.xlu0 %792
      %794 = vrot.lane.b32.xlu0 %v575, 88
      %v795 = vpop.permute.xlu0 %794
      %v796 = vsel %vm584, %v789, 0
      %v798 = vsel %vm584, %v791, 0
      %v800 = vsel %vm584, %v793, 0
      %v802 = vsel %vm584, %v795, 0
      %804 = vmatprep.subr.mxu0 0.0
      %805 = vmatpush1.xpose.msra.mxu0 %v800
      %806 = vmatprep.subr.mxu0 0.0
      %807 = vmatpush1.xpose.msra.mxu0 %v802
      %808 = vmatprep.subr.mxu0 0.0
      %809 = vmatpush1.xpose.msra.mxu0 0.0
      %810 = vmatprep.subr.mxu0 0.0
      %811 = vmatpush1.xpose.msra.mxu0 0.0
      %812 = vmatprep.subr.mxu0 0.0
      %813 = vmatpush1.xpose.msra.mxu0 0.0
      %814 = vmatprep.subr.mxu0 0.0
      %815 = vmatpush1.xpose.msra.mxu0 0.0
      %816 = vmatprep.subr.mxu0 0.0
      %817 = vmatpush1.xpose.msra.mxu0 0.0
      %818 = vmatprep.subr.mxu0 0.0
      %819 = vmatpush1.xpose.msra.mxu0 0.0
      %820 = vmatprep.subr.mxu0 0.0
      %821 = vmatpush1.xpose.msra.mxu0 0.0
      %822 = vmatprep.subr.mxu0 0.0
      %823 = vmatpush1.xpose.msra.mxu0 0.0
      %824 = vmatprep.subr.mxu0 0.0
      %825 = vmatpush1.xpose.msra.mxu0 0.0
      %826 = vmatprep.subr.mxu0 0.0
      %827 = vmatpush1.xpose.msra.mxu0 0.0
      %828 = vmatprep.subr.mxu0 0.0
      %829 = vmatpush1.xpose.msra.mxu0 0.0
      %830 = vmatprep.subr.mxu0 0.0
      %831 = vmatpush1.xpose.msra.mxu0 0.0
      %832 = vmatprep.subr.mxu0 0.0
      %833 = vmatpush1.xpose.msra.mxu0 0.0
      %834 = vmatprep.subr.mxu0 0.0
      %835 = vmatpush1.xpose.msra.mxu0 0.0
      %836 = vmatprep.subr.mxu0 0.0
      %837 = vmatpush1.xpose.msra.mxu0 0.0
      %838 = vmatprep.subr.mxu0 0.0
      %839 = vmatpush1.xpose.msra.mxu0 0.0
      %840 = vmatprep.subr.mxu0 0.0
      %841 = vmatpush1.xpose.msra.mxu0 0.0
      %842 = vmatprep.subr.mxu0 0.0
      %843 = vmatpush1.xpose.msra.mxu0 0.0
      %844 = vmatprep.subr.mxu0 0.0
      %845 = vmatpush1.xpose.msra.mxu0 0.0
      %846 = vmatprep.subr.mxu0 0.0
      %847 = vmatpush1.xpose.msra.mxu0 0.0
      %848 = vmatprep.subr.mxu0 0.0
      %849 = vmatpush1.xpose.msra.mxu0 0.0
      %850 = vmatprep.subr.mxu0 0.0
      %851 = vmatpush1.xpose.msra.mxu0 0.0
      %852 = vmatprep.subr.mxu0 0.0
      %853 = vmatpush1.xpose.msra.mxu0 0.0
      %854 = vmatprep.subr.mxu0 0.0
      %855 = vmatpush1.xpose.msra.mxu0 0.0
      %856 = vmatprep.subr.mxu0 0.0
      %857 = vmatpush1.xpose.msra.mxu0 0.0
      %858 = vmatprep.subr.mxu0 0.0
      %859 = vmatpush1.xpose.msra.mxu0 0.0
      %860 = vmatprep.subr.mxu0 0.0
      %861 = vmatpush1.xpose.msra.mxu0 0.0
      %862 = vmatprep.subr.mxu0 0.0
      %863 = vmatpush1.xpose.msra.mxu0 0.0
      %864 = vmatprep.subr.mxu0 0.0
      %865 = vmatpush1.xpose.msra.mxu0 0.0
      %866 = vmatprep.subr.mxu0 0.0
      %867 = vmatpush1.xpose.msra.mxu0 0.0
      %868 = vmatprep.mubr.f32.mxu0 0.0
      %869 = vmatmul.mubr.f32.gmra.mrb[0].mxu0 %v796
      %v870 = vpop.f32.mrb[0].mxu0
      %v871 = vadd.f32 0.0, %v870
      %v872 = vpop.f32.mrb[0].mxu0
      %873 = vmatprep.mubr.f32.mxu0 0.0
      %874 = vmatmul.mubr.f32.gmra.mrb[0].mxu0 %v798
      %v875 = vpop.f32.mrb[0].mxu0
      %v876 = vadd.f32 0.0, %v875
      %v877 = vpop.f32.mrb[0].mxu0
      %878 = vdwg.mxu0
      %v879 = vmul.f32 %v871, 0.35355338
      %v880 = vmul.f32 %v876, 0.35355338
      %v881 = vadd.f32 %v879, %v674
      %v882 = vadd.f32 %v880, %v674
      %v883 = vsel %vm678, %v881, -inf
      %884 = vmax.xlane.f32.xlu0 %v883
      %v885 = vpop.xlane.xlu0 %884
      %v886 = vsel %vm678, %v882, -inf
      %887 = vmax.xlane.f32.xlu0 %v886
      %v888 = vpop.xlane.xlu0 %887
      %v889 = vsub.f32 %v881, %v885
      %v890 = vsub.f32 %v882, %v888
      %v891 = vmul.f32 %v889, 1.442695
      %v892 = vpow.pop %v891
      %v893 = vmul.f32 %v890, 1.442695
      %v894 = vpow.pop %v893
      %v895 = vsel %vm678, %v892, 0.0
      %896 = vadd.xlane.f32.xlu0 %v895
      %v897 = vpop.xlane.xlu0 %896
      %v898 = vsel %vm678, %v894, 0.0
      %899 = vadd.xlane.f32.xlu0 %v898
      %v900 = vpop.xlane.xlu0 %899
      %v901 = vrcp.pop %v897
      %v902 = vmul.f32 %v892, %v901
      %v903 = vrcp.pop %v900
      %v904 = vmul.f32 %v894, %v903
      %905 = vrot.lane.b32.xlu0 %v570, 56
      %v906 = vpop.permute.xlu0 %905
      %907 = vrot.lane.b32.xlu0 %v575, 56
      %v908 = vpop.permute.xlu0 %907
      %v912 = vsel %vm678, %v902, 0
      %v915 = vsel %vm678, %v904, 0
      %917 = vmatprep.subr.mxu0 0.0
      %918 = vmatpush1.msra.mxu0 %v906
      %919 = vmatprep.subr.mxu0 0.0
      %920 = vmatpush1.msra.mxu0 %v908
      %921 = vmatprep.subr.mxu0 0.0
      %922 = vmatpush1.msra.mxu0 0.0
      %923 = vmatprep.subr.mxu0 0.0
      %924 = vmatpush1.msra.mxu0 0.0
      %925 = vmatprep.subr.mxu0 0.0
      %926 = vmatpush1.msra.mxu0 0.0
      %927 = vmatprep.subr.mxu0 0.0
      %928 = vmatpush1.msra.mxu0 0.0
      %929 = vmatprep.subr.mxu0 0.0
      %930 = vmatpush1.msra.mxu0 0.0
      %931 = vmatprep.subr.mxu0 0.0
      %932 = vmatpush1.msra.mxu0 0.0
      %933 = vmatprep.subr.mxu0 0.0
      %934 = vmatpush1.msra.mxu0 0.0
      %935 = vmatprep.subr.mxu0 0.0
      %936 = vmatpush1.msra.mxu0 0.0
      %937 = vmatprep.subr.mxu0 0.0
      %938 = vmatpush1.msra.mxu0 0.0
      %939 = vmatprep.subr.mxu0 0.0
      %940 = vmatpush1.msra.mxu0 0.0
      %941 = vmatprep.subr.mxu0 0.0
      %942 = vmatpush1.msra.mxu0 0.0
      %943 = vmatprep.subr.mxu0 0.0
      %944 = vmatpush1.msra.mxu0 0.0
      %945 = vmatprep.subr.mxu0 0.0
      %946 = vmatpush1.msra.mxu0 0.0
      %947 = vmatprep.subr.mxu0 0.0
      %948 = vmatpush1.msra.mxu0 0.0
      %949 = vmatprep.subr.mxu0 0.0
      %950 = vmatpush1.msra.mxu0 0.0
      %951 = vmatprep.subr.mxu0 0.0
      %952 = vmatpush1.msra.mxu0 0.0
      %953 = vmatprep.subr.mxu0 0.0
      %954 = vmatpush1.msra.mxu0 0.0
      %955 = vmatprep.subr.mxu0 0.0
      %956 = vmatpush1.msra.mxu0 0.0
      %957 = vmatprep.subr.mxu0 0.0
      %958 = vmatpush1.msra.mxu0 0.0
      %959 = vmatprep.subr.mxu0 0.0
      %960 = vmatpush1.msra.mxu0 0.0
      %961 = vmatprep.subr.mxu0 0.0
      %962 = vmatpush1.msra.mxu0 0.0
      %963 = vmatprep.subr.mxu0 0.0
      %964 = vmatpush1.msra.mxu0 0.0
      %965 = vmatprep.subr.mxu0 0.0
      %966 = vmatpush1.msra.mxu0 0.0
      %967 = vmatprep.subr.mxu0 0.0
      %968 = vmatpush1.msra.mxu0 0.0
      %969 = vmatprep.subr.mxu0 0.0
      %970 = vmatpush1.msra.mxu0 0.0
      %971 = vmatprep.subr.mxu0 0.0
      %972 = vmatpush1.msra.mxu0 0.0
      %973 = vmatprep.subr.mxu0 0.0
      %974 = vmatpush1.msra.mxu0 0.0
      %975 = vmatprep.subr.mxu0 0.0
      %976 = vmatpush1.msra.mxu0 0.0
      %977 = vmatprep.subr.mxu0 0.0
      %978 = vmatpush1.msra.mxu0 0.0
      %979 = vmatprep.subr.mxu0 0.0
      %980 = vmatpush1.msra.mxu0 0.0
      %981 = vmatprep.mubr.f32.mxu0 0.0
      %982 = vmatmul.mubr.f32.gmra.mrb[0].mxu0 %v912
      %v983 = vpop.f32.mrb[0].mxu0
      %v984 = vadd.f32 0.0, %v983
      %v985 = vpop.f32.mrb[0].mxu0
      %986 = vmatprep.mubr.f32.mxu0 0.0
      %987 = vmatmul.mubr.f32.gmra.mrb[0].mxu0 %v915
      %v988 = vpop.f32.mrb[0].mxu0
      %v989 = vadd.f32 0.0, %v988
      %v990 = vpop.f32.mrb[0].mxu0
      %991 = vdwg.mxu0
      %992 = vrot.lane.b32.xlu0 %v570, 112
      %v993 = vpop.permute.xlu0 %992
      %994 = vrot.lane.b32.xlu0 %v575, 112
      %v995 = vpop.permute.xlu0 %994
      %996 = vrot.lane.b32.xlu0 %v570, 80
      %v997 = vpop.permute.xlu0 %996
      %998 = vrot.lane.b32.xlu0 %v575, 80
      %v999 = vpop.permute.xlu0 %998
      %v1000 = vsel %vm584, %v993, 0
      %v1002 = vsel %vm584, %v995, 0
      %v1004 = vsel %vm584, %v997, 0
      %v1006 = vsel %vm584, %v999, 0
      %1008 = vmatprep.subr.mxu0 0.0
      %1009 = vmatpush1.xpose.msra.mxu0 %v1004
      %1010 = vmatprep.subr.mxu0 0.0
      %1011 = vmatpush1.xpose.msra.mxu0 %v1006
      %1012 = vmatprep.subr.mxu0 0.0
      %1013 = vmatpush1.xpose.msra.mxu0 0.0
      %1014 = vmatprep.subr.mxu0 0.0
      %1015 = vmatpush1.xpose.msra.mxu0 0.0
      %1016 = vmatprep.subr.mxu0 0.0
      %1017 = vmatpush1.xpose.msra.mxu0 0.0
      %1018 = vmatprep.subr.mxu0 0.0
      %1019 = vmatpush1.xpose.msra.mxu0 0.0
      %1020 = vmatprep.subr.mxu0 0.0
      %1021 = vmatpush1.xpose.msra.mxu0 0.0
      %1022 = vmatprep.subr.mxu0 0.0
      %1023 = vmatpush1.xpose.msra.mxu0 0.0
      %1024 = vmatprep.subr.mxu0 0.0
      %1025 = vmatpush1.xpose.msra.mxu0 0.0
      %1026 = vmatprep.subr.mxu0 0.0
      %1027 = vmatpush1.xpose.msra.mxu0 0.0
      %1028 = vmatprep.subr.mxu0 0.0
      %1029 = vmatpush1.xpose.msra.mxu0 0.0
      %1030 = vmatprep.subr.mxu0 0.0
      %1031 = vmatpush1.xpose.msra.mxu0 0.0
      %1032 = vmatprep.subr.mxu0 0.0
      %1033 = vmatpush1.xpose.msra.mxu0 0.0
      %1034 = vmatprep.subr.mxu0 0.0
      %1035 = vmatpush1.xpose.msra.mxu0 0.0
      %1036 = vmatprep.subr.mxu0 0.0
      %1037 = vmatpush1.xpose.msra.mxu0 0.0
      %1038 = vmatprep.subr.mxu0 0.0
      %1039 = vmatpush1.xpose.msra.mxu0 0.0
      %1040 = vmatprep.subr.mxu0 0.0
      %1041 = vmatpush1.xpose.msra.mxu0 0.0
      %1042 = vmatprep.subr.mxu0 0.0
      %1043 = vmatpush1.xpose.msra.mxu0 0.0
      %1044 = vmatprep.subr.mxu0 0.0
      %1045 = vmatpush1.xpose.msra.mxu0 0.0
      %1046 = vmatprep.subr.mxu0 0.0
      %1047 = vmatpush1.xpose.msra.mxu0 0.0
      %1048 = vmatprep.subr.mxu0 0.0
      %1049 = vmatpush1.xpose.msra.mxu0 0.0
      %1050 = vmatprep.subr.mxu0 0.0
      %1051 = vmatpush1.xpose.msra.mxu0 0.0
      %1052 = vmatprep.subr.mxu0 0.0
      %1053 = vmatpush1.xpose.msra.mxu0 0.0
      %1054 = vmatprep.subr.mxu0 0.0
      %1055 = vmatpush1.xpose.msra.mxu0 0.0
      %1056 = vmatprep.subr.mxu0 0.0
      %1057 = vmatpush1.xpose.msra.mxu0 0.0
      %1058 = vmatprep.subr.mxu0 0.0
      %1059 = vmatpush1.xpose.msra.mxu0 0.0
      %1060 = vmatprep.subr.mxu0 0.0
      %1061 = vmatpush1.xpose.msra.mxu0 0.0
      %1062 = vmatprep.subr.mxu0 0.0
      %1063 = vmatpush1.xpose.msra.mxu0 0.0
      %1064 = vmatprep.subr.mxu0 0.0
      %1065 = vmatpush1.xpose.msra.mxu0 0.0
      %1066 = vmatprep.subr.mxu0 0.0
      %1067 = vmatpush1.xpose.msra.mxu0 0.0
      %1068 = vmatprep.subr.mxu0 0.0
      %1069 = vmatpush1.xpose.msra.mxu0 0.0
      %1070 = vmatprep.subr.mxu0 0.0
      %1071 = vmatpush1.xpose.msra.mxu0 0.0
      %1072 = vmatprep.mubr.f32.mxu0 0.0
      %1073 = vmatmul.mubr.f32.gmra.mrb[0].mxu0 %v1000
      %v1074 = vpop.f32.mrb[0].mxu0
      %v1075 = vadd.f32 0.0, %v1074
      %v1076 = vpop.f32.mrb[0].mxu0
      %1077 = vmatprep.mubr.f32.mxu0 0.0
      %1078 = vmatmul.mubr.f32.gmra.mrb[0].mxu0 %v1002
      %v1079 = vpop.f32.mrb[0].mxu0
      %v1080 = vadd.f32 0.0, %v1079
      %v1081 = vpop.f32.mrb[0].mxu0
      %1082 = vdwg.mxu0
      %v1083 = vmul.f32 %v1075, 0.35355338
      %v1084 = vmul.f32 %v1080, 0.35355338
      %v1085 = vadd.f32 %v1083, %v674
      %v1086 = vadd.f32 %v1084, %v674
      %v1087 = vsel %vm678, %v1085, -inf
      %1088 = vmax.xlane.f32.xlu0 %v1087
      %v1089 = vpop.xlane.xlu0 %1088
      %v1090 = vsel %vm678, %v1086, -inf
      %1091 = vmax.xlane.f32.xlu0 %v1090
      %v1092 = vpop.xlane.xlu0 %1091
      %v1093 = vsub.f32 %v1085, %v1089
      %v1094 = vsub.f32 %v1086, %v1092
      %v1095 = vmul.f32 %v1093, 1.442695
      %v1096 = vpow.pop %v1095
      %v1097 = vmul.f32 %v1094, 1.442695
      %v1098 = vpow.pop %v1097
      %v1099 = vsel %vm678, %v1096, 0.0
      %1100 = vadd.xlane.f32.xlu0 %v1099
      %v1101 = vpop.xlane.xlu0 %1100
      %v1102 = vsel %vm678, %v1098, 0.0
      %1103 = vadd.xlane.f32.xlu0 %v1102
      %v1104 = vpop.xlane.xlu0 %1103
      %v1105 = vrcp.pop %v1101
      %v1106 = vmul.f32 %v1096, %v1105
      %v1107 = vrcp.pop %v1104
      %v1108 = vmul.f32 %v1098, %v1107
      %1109 = vrot.lane.b32.xlu0 %v570, 48
      %v1110 = vpop.permute.xlu0 %1109
      %1111 = vrot.lane.b32.xlu0 %v575, 48
      %v1112 = vpop.permute.xlu0 %1111
      %v1116 = vsel %vm678, %v1106, 0
      %v1119 = vsel %vm678, %v1108, 0
      %1121 = vmatprep.subr.mxu0 0.0
      %1122 = vmatpush1.msra.mxu0 %v1110
      %1123 = vmatprep.subr.mxu0 0.0
      %1124 = vmatpush1.msra.mxu0 %v1112
      %1125 = vmatprep.subr.mxu0 0.0
      %1126 = vmatpush1.msra.mxu0 0.0
      %1127 = vmatprep.subr.mxu0 0.0
      %1128 = vmatpush1.msra.mxu0 0.0
      %1129 = vmatprep.subr.mxu0 0.0
      %1130 = vmatpush1.msra.mxu0 0.0
      %1131 = vmatprep.subr.mxu0 0.0
      %1132 = vmatpush1.msra.mxu0 0.0
      %1133 = vmatprep.subr.mxu0 0.0
      %1134 = vmatpush1.msra.mxu0 0.0
      %1135 = vmatprep.subr.mxu0 0.0
      %1136 = vmatpush1.msra.mxu0 0.0
      %1137 = vmatprep.subr.mxu0 0.0
      %1138 = vmatpush1.msra.mxu0 0.0
      %1139 = vmatprep.subr.mxu0 0.0
      %1140 = vmatpush1.msra.mxu0 0.0
      %1141 = vmatprep.subr.mxu0 0.0
      %1142 = vmatpush1.msra.mxu0 0.0
      %1143 = vmatprep.subr.mxu0 0.0
      %1144 = vmatpush1.msra.mxu0 0.0
      %1145 = vmatprep.subr.mxu0 0.0
      %1146 = vmatpush1.msra.mxu0 0.0
      %1147 = vmatprep.subr.mxu0 0.0
      %1148 = vmatpush1.msra.mxu0 0.0
      %1149 = vmatprep.subr.mxu0 0.0
      %1150 = vmatpush1.msra.mxu0 0.0
      %1151 = vmatprep.subr.mxu0 0.0
      %1152 = vmatpush1.msra.mxu0 0.0
      %1153 = vmatprep.subr.mxu0 0.0
      %1154 = vmatpush1.msra.mxu0 0.0
      %1155 = vmatprep.subr.mxu0 0.0
      %1156 = vmatpush1.msra.mxu0 0.0
      %1157 = vmatprep.subr.mxu0 0.0
      %1158 = vmatpush1.msra.mxu0 0.0
      %1159 = vmatprep.subr.mxu0 0.0
      %1160 = vmatpush1.msra.mxu0 0.0
      %1161 = vmatprep.subr.mxu0 0.0
      %1162 = vmatpush1.msra.mxu0 0.0
      %1163 = vmatprep.subr.mxu0 0.0
      %1164 = vmatpush1.msra.mxu0 0.0
      %1165 = vmatprep.subr.mxu0 0.0
      %1166 = vmatpush1.msra.mxu0 0.0
      %1167 = vmatprep.subr.mxu0 0.0
      %1168 = vmatpush1.msra.mxu0 0.0
      %1169 = vmatprep.subr.mxu0 0.0
      %1170 = vmatpush1.msra.mxu0 0.0
      %1171 = vmatprep.subr.mxu0 0.0
      %1172 = vmatpush1.msra.mxu0 0.0
      %1173 = vmatprep.subr.mxu0 0.0
      %1174 = vmatpush1.msra.mxu0 0.0
      %1175 = vmatprep.subr.mxu0 0.0
      %1176 = vmatpush1.msra.mxu0 0.0
      %1177 = vmatprep.subr.mxu0 0.0
      %1178 = vmatpush1.msra.mxu0 0.0
      %1179 = vmatprep.subr.mxu0 0.0
      %1180 = vmatpush1.msra.mxu0 0.0
      %1181 = vmatprep.subr.mxu0 0.0
      %1182 = vmatpush1.msra.mxu0 0.0
      %1183 = vmatprep.subr.mxu0 0.0
      %1184 = vmatpush1.msra.mxu0 0.0
      %1185 = vmatprep.mubr.f32.mxu0 0.0
      %1186 = vmatmul.mubr.f32.gmra.mrb[0].mxu0 %v1116
      %v1187 = vpop.f32.mrb[0].mxu0
      %v1188 = vadd.f32 0.0, %v1187
      %v1189 = vpop.f32.mrb[0].mxu0
      %1190 = vmatprep.mubr.f32.mxu0 0.0
      %1191 = vmatmul.mubr.f32.gmra.mrb[0].mxu0 %v1119
      %v1192 = vpop.f32.mrb[0].mxu0
      %v1193 = vadd.f32 0.0, %v1192
      %v1194 = vpop.f32.mrb[0].mxu0
      %1195 = vdwg.mxu0
      %1196 = vrot.lane.b32.xlu0 %v570, 104
      %v1197 = vpop.permute.xlu0 %1196
      %1198 = vrot.lane.b32.xlu0 %v575, 104
      %v1199 = vpop.permute.xlu0 %1198
      %1200 = vrot.lane.b32.xlu0 %v570, 72
      %v1201 = vpop.permute.xlu0 %1200
      %1202 = vrot.lane.b32.xlu0 %v575, 72
      %v1203 = vpop.permute.xlu0 %1202
      %v1204 = vsel %vm584, %v1197, 0
      %v1206 = vsel %vm584, %v1199, 0
      %v1208 = vsel %vm584, %v1201, 0
      %v1210 = vsel %vm584, %v1203, 0
      %1212 = vmatprep.subr.mxu0 0.0
      %1213 = vmatpush1.xpose.msra.mxu0 %v1208
      %1214 = vmatprep.subr.mxu0 0.0
      %1215 = vmatpush1.xpose.msra.mxu0 %v1210
      %1216 = vmatprep.subr.mxu0 0.0
      %1217 = vmatpush1.xpose.msra.mxu0 0.0
      %1218 = vmatprep.subr.mxu0 0.0
      %1219 = vmatpush1.xpose.msra.mxu0 0.0
      %1220 = vmatprep.subr.mxu0 0.0
      %1221 = vmatpush1.xpose.msra.mxu0 0.0
      %1222 = vmatprep.subr.mxu0 0.0
      %1223 = vmatpush1.xpose.msra.mxu0 0.0
      %1224 = vmatprep.subr.mxu0 0.0
      %1225 = vmatpush1.xpose.msra.mxu0 0.0
      %1226 = vmatprep.subr.mxu0 0.0
      %1227 = vmatpush1.xpose.msra.mxu0 0.0
      %1228 = vmatprep.subr.mxu0 0.0
      %1229 = vmatpush1.xpose.msra.mxu0 0.0
      %1230 = vmatprep.subr.mxu0 0.0
      %1231 = vmatpush1.xpose.msra.mxu0 0.0
      %1232 = vmatprep.subr.mxu0 0.0
      %1233 = vmatpush1.xpose.msra.mxu0 0.0
      %1234 = vmatprep.subr.mxu0 0.0
      %1235 = vmatpush1.xpose.msra.mxu0 0.0
      %1236 = vmatprep.subr.mxu0 0.0
      %1237 = vmatpush1.xpose.msra.mxu0 0.0
      %1238 = vmatprep.subr.mxu0 0.0
      %1239 = vmatpush1.xpose.msra.mxu0 0.0
      %1240 = vmatprep.subr.mxu0 0.0
      %1241 = vmatpush1.xpose.msra.mxu0 0.0
      %1242 = vmatprep.subr.mxu0 0.0
      %1243 = vmatpush1.xpose.msra.mxu0 0.0
      %1244 = vmatprep.subr.mxu0 0.0
      %1245 = vmatpush1.xpose.msra.mxu0 0.0
      %1246 = vmatprep.subr.mxu0 0.0
      %1247 = vmatpush1.xpose.msra.mxu0 0.0
      %1248 = vmatprep.subr.mxu0 0.0
      %1249 = vmatpush1.xpose.msra.mxu0 0.0
      %1250 = vmatprep.subr.mxu0 0.0
      %1251 = vmatpush1.xpose.msra.mxu0 0.0
      %1252 = vmatprep.subr.mxu0 0.0
      %1253 = vmatpush1.xpose.msra.mxu0 0.0
      %1254 = vmatprep.subr.mxu0 0.0
      %1255 = vmatpush1.xpose.msra.mxu0 0.0
      %1256 = vmatprep.subr.mxu0 0.0
      %1257 = vmatpush1.xpose.msra.mxu0 0.0
      %1258 = vmatprep.subr.mxu0 0.0
      %1259 = vmatpush1.xpose.msra.mxu0 0.0
      %1260 = vmatprep.subr.mxu0 0.0
      %1261 = vmatpush1.xpose.msra.mxu0 0.0
      %1262 = vmatprep.subr.mxu0 0.0
      %1263 = vmatpush1.xpose.msra.mxu0 0.0
      %1264 = vmatprep.subr.mxu0 0.0
      %1265 = vmatpush1.xpose.msra.mxu0 0.0
      %1266 = vmatprep.subr.mxu0 0.0
      %1267 = vmatpush1.xpose.msra.mxu0 0.0
      %1268 = vmatprep.subr.mxu0 0.0
      %1269 = vmatpush1.xpose.msra.mxu0 0.0
      %1270 = vmatprep.subr.mxu0 0.0
      %1271 = vmatpush1.xpose.msra.mxu0 0.0
      %1272 = vmatprep.subr.mxu0 0.0
      %1273 = vmatpush1.xpose.msra.mxu0 0.0
      %1274 = vmatprep.subr.mxu0 0.0
      %1275 = vmatpush1.xpose.msra.mxu0 0.0
      %1276 = vmatprep.mubr.f32.mxu0 0.0
      %1277 = vmatmul.mubr.f32.gmra.mrb[0].mxu0 %v1204
      %v1278 = vpop.f32.mrb[0].mxu0
      %v1279 = vadd.f32 0.0, %v1278
      %v1280 = vpop.f32.mrb[0].mxu0
      %1281 = vmatprep.mubr.f32.mxu0 0.0
      %1282 = vmatmul.mubr.f32.gmra.mrb[0].mxu0 %v1206
      %v1283 = vpop.f32.mrb[0].mxu0
      %v1284 = vadd.f32 0.0, %v1283
      %v1285 = vpop.f32.mrb[0].mxu0
      %1286 = vdwg.mxu0
      %v1287 = vmul.f32 %v1279, 0.35355338
      %v1288 = vmul.f32 %v1284, 0.35355338
      %v1289 = vadd.f32 %v1287, %v674
      %v1290 = vadd.f32 %v1288, %v674
      %v1291 = vsel %vm678, %v1289, -inf
      %1292 = vmax.xlane.f32.xlu0 %v1291
      %v1293 = vpop.xlane.xlu0 %1292
      %v1294 = vsel %vm678, %v1290, -inf
      %1295 = vmax.xlane.f32.xlu0 %v1294
      %v1296 = vpop.xlane.xlu0 %1295
      %v1297 = vsub.f32 %v1289, %v1293
      %v1298 = vsub.f32 %v1290, %v1296
      %v1299 = vmul.f32 %v1297, 1.442695
      %v1300 = vpow.pop %v1299
      %v1301 = vmul.f32 %v1298, 1.442695
      %v1302 = vpow.pop %v1301
      %v1303 = vsel %vm678, %v1300, 0.0
      %1304 = vadd.xlane.f32.xlu0 %v1303
      %v1305 = vpop.xlane.xlu0 %1304
      %v1306 = vsel %vm678, %v1302, 0.0
      %1307 = vadd.xlane.f32.xlu0 %v1306
      %v1308 = vpop.xlane.xlu0 %1307
      %v1309 = vrcp.pop %v1305
      %v1310 = vmul.f32 %v1300, %v1309
      %v1311 = vrcp.pop %v1308
      %v1312 = vmul.f32 %v1302, %v1311
      %1313 = vrot.lane.b32.xlu0 %v570, 40
      %v1314 = vpop.permute.xlu0 %1313
      %1315 = vrot.lane.b32.xlu0 %v575, 40
      %v1316 = vpop.permute.xlu0 %1315
      %v1320 = vsel %vm678, %v1310, 0
      %v1323 = vsel %vm678, %v1312, 0
      %1325 = vmatprep.subr.mxu0 0.0
      %1326 = vmatpush1.msra.mxu0 %v1314
      %1327 = vmatprep.subr.mxu0 0.0
      %1328 = vmatpush1.msra.mxu0 %v1316
      %1329 = vmatprep.subr.mxu0 0.0
      %1330 = vmatpush1.msra.mxu0 0.0
      %1331 = vmatprep.subr.mxu0 0.0
      %1332 = vmatpush1.msra.mxu0 0.0
      %1333 = vmatprep.subr.mxu0 0.0
      %1334 = vmatpush1.msra.mxu0 0.0
      %1335 = vmatprep.subr.mxu0 0.0
      %1336 = vmatpush1.msra.mxu0 0.0
      %1337 = vmatprep.subr.mxu0 0.0
      %1338 = vmatpush1.msra.mxu0 0.0
      %1339 = vmatprep.subr.mxu0 0.0
      %1340 = vmatpush1.msra.mxu0 0.0
      %1341 = vmatprep.subr.mxu0 0.0
      %1342 = vmatpush1.msra.mxu0 0.0
      %1343 = vmatprep.subr.mxu0 0.0
      %1344 = vmatpush1.msra.mxu0 0.0
      %1345 = vmatprep.subr.mxu0 0.0
      %1346 = vmatpush1.msra.mxu0 0.0
      %1347 = vmatprep.subr.mxu0 0.0
      %1348 = vmatpush1.msra.mxu0 0.0
      %1349 = vmatprep.subr.mxu0 0.0
      %1350 = vmatpush1.msra.mxu0 0.0
      %1351 = vmatprep.subr.mxu0 0.0
      %1352 = vmatpush1.msra.mxu0 0.0
      %1353 = vmatprep.subr.mxu0 0.0
      %1354 = vmatpush1.msra.mxu0 0.0
      %1355 = vmatprep.subr.mxu0 0.0
      %1356 = vmatpush1.msra.mxu0 0.0
      %1357 = vmatprep.subr.mxu0 0.0
      %1358 = vmatpush1.msra.mxu0 0.0
      %1359 = vmatprep.subr.mxu0 0.0
      %1360 = vmatpush1.msra.mxu0 0.0
      %1361 = vmatprep.subr.mxu0 0.0
      %1362 = vmatpush1.msra.mxu0 0.0
      %1363 = vmatprep.subr.mxu0 0.0
      %1364 = vmatpush1.msra.mxu0 0.0
      %1365 = vmatprep.subr.mxu0 0.0
      %1366 = vmatpush1.msra.mxu0 0.0
      %1367 = vmatprep.subr.mxu0 0.0
      %1368 = vmatpush1.msra.mxu0 0.0
      %1369 = vmatprep.subr.mxu0 0.0
      %1370 = vmatpush1.msra.mxu0 0.0
      %1371 = vmatprep.subr.mxu0 0.0
      %1372 = vmatpush1.msra.mxu0 0.0
      %1373 = vmatprep.subr.mxu0 0.0
      %1374 = vmatpush1.msra.mxu0 0.0
      %1375 = vmatprep.subr.mxu0 0.0
      %1376 = vmatpush1.msra.mxu0 0.0
      %1377 = vmatprep.subr.mxu0 0.0
      %1378 = vmatpush1.msra.mxu0 0.0
      %1379 = vmatprep.subr.mxu0 0.0
      %1380 = vmatpush1.msra.mxu0 0.0
      %1381 = vmatprep.subr.mxu0 0.0
      %1382 = vmatpush1.msra.mxu0 0.0
      %1383 = vmatprep.subr.mxu0 0.0
      %1384 = vmatpush1.msra.mxu0 0.0
      %1385 = vmatprep.subr.mxu0 0.0
      %1386 = vmatpush1.msra.mxu0 0.0
      %1387 = vmatprep.subr.mxu0 0.0
      %1388 = vmatpush1.msra.mxu0 0.0
      %1389 = vmatprep.mubr.f32.mxu0 0.0
      %1390 = vmatmul.mubr.f32.gmra.mrb[0].mxu0 %v1320
      %v1391 = vpop.f32.mrb[0].mxu0
      %v1392 = vadd.f32 0.0, %v1391
      %v1393 = vpop.f32.mrb[0].mxu0
      %1394 = vmatprep.mubr.f32.mxu0 0.0
      %1395 = vmatmul.mubr.f32.gmra.mrb[0].mxu0 %v1323
      %v1396 = vpop.f32.mrb[0].mxu0
      %v1397 = vadd.f32 0.0, %v1396
      %v1398 = vpop.f32.mrb[0].mxu0
      %1399 = vdwg.mxu0
      %1402 = vrot.lane.b32.xlu0 %v984, 8
      %v1403 = vpop.permute.xlu0 %1402
      %1404 = vrot.lane.b32.xlu0 %v989, 8
      %v1405 = vpop.permute.xlu0 %1404
      %1410 = vrot.lane.b32.xlu0 %v1188, 16
      %v1411 = vpop.permute.xlu0 %1410
      %1412 = vrot.lane.b32.xlu0 %v1193, 16
      %v1413 = vpop.permute.xlu0 %1412
      %1418 = vrot.lane.b32.xlu0 %v1392, 24
      %v1419 = vpop.permute.xlu0 %1418
      %1420 = vrot.lane.b32.xlu0 %v1397, 24
      %v1421 = vpop.permute.xlu0 %1420
      %v1424 = vsel %vm584, %v780, %v1403
      %v1425 = vsel %vm584, %v785, %v1405
      %v1426 = vsel %vm678, %v1424, %v1411
      %v1427 = vsel %vm678, %v1425, %v1413
      %vm1428 = vcmask 195584
      %v1429 = vsel %vm1428, %v1426, %v1419
      %v1430 = vsel %vm1428, %v1427, %v1421
      %v1431 = vld [vmem:[%s4] sm:$0xff]
      %v1432 = vld [vmem:[%s4 + $0x8] sm:$0xff]
      %v1433 = vld [vmem:[%s4 + $0x10] sm:$0xff]
      %v1434 = vld [vmem:[%s4 + $0x18] sm:$0xff]
      %v1435 = vld [vmem:[%s5] sm:$0x1]
      %v1437 = vlaneseq
      %v1438 = vshrl.u32 %v1437, 7
      %v1439 = vsub.s32 0, %v1438
      %v1440 = vrot.slane %v1435, %v1439
      %v1443 = vsel %vm496, %v1429, 0
      %v1446 = vsel %vm496, %v1430, 0
      %1448 = vmatprep.subr.mxu0 0.0
      %1449 = vmatpush1.msra.mxu0 %v1431
      %1450 = vmatprep.subr.mxu0 0.0
      %1451 = vmatpush1.msra.mxu0 %v1432
      %1452 = vmatprep.subr.mxu0 0.0
      %1453 = vmatpush1.msra.mxu0 %v1433
      %1454 = vmatprep.subr.mxu0 0.0
      %1455 = vmatpush1.msra.mxu0 %v1434
      %1456 = vmatprep.subr.mxu0 0.0
      %1457 = vmatpush1.msra.mxu0 0.0
      %1458 = vmatprep.subr.mxu0 0.0
      %1459 = vmatpush1.msra.mxu0 0.0
      %1460 = vmatprep.subr.mxu0 0.0
      %1461 = vmatpush1.msra.mxu0 0.0
      %1462 = vmatprep.subr.mxu0 0.0
      %1463 = vmatpush1.msra.mxu0 0.0
      %1464 = vmatprep.subr.mxu0 0.0
      %1465 = vmatpush1.msra.mxu0 0.0
      %1466 = vmatprep.subr.mxu0 0.0
      %1467 = vmatpush1.msra.mxu0 0.0
      %1468 = vmatprep.subr.mxu0 0.0
      %1469 = vmatpush1.msra.mxu0 0.0
      %1470 = vmatprep.subr.mxu0 0.0
      %1471 = vmatpush1.msra.mxu0 0.0
      %1472 = vmatprep.subr.mxu0 0.0
      %1473 = vmatpush1.msra.mxu0 0.0
      %1474 = vmatprep.subr.mxu0 0.0
      %1475 = vmatpush1.msra.mxu0 0.0
      %1476 = vmatprep.subr.mxu0 0.0
      %1477 = vmatpush1.msra.mxu0 0.0
      %1478 = vmatprep.subr.mxu0 0.0
      %1479 = vmatpush1.msra.mxu0 0.0
      %1480 = vmatprep.subr.mxu0 0.0
      %1481 = vmatpush1.msra.mxu0 0.0
      %1482 = vmatprep.subr.mxu0 0.0
      %1483 = vmatpush1.msra.mxu0 0.0
      %1484 = vmatprep.subr.mxu0 0.0
      %1485 = vmatpush1.msra.mxu0 0.0
      %1486 = vmatprep.subr.mxu0 0.0
      %1487 = vmatpush1.msra.mxu0 0.0
      %1488 = vmatprep.subr.mxu0 0.0
      %1489 = vmatpush1.msra.mxu0 0.0
      %1490 = vmatprep.subr.mxu0 0.0
      %1491 = vmatpush1.msra.mxu0 0.0
      %1492 = vmatprep.subr.mxu0 0.0
      %1493 = vmatpush1.msra.mxu0 0.0
      %1494 = vmatprep.subr.mxu0 0.0
      %1495 = vmatpush1.msra.mxu0 0.0
      %1496 = vmatprep.subr.mxu0 0.0
      %1497 = vmatpush1.msra.mxu0 0.0
      %1498 = vmatprep.subr.mxu0 0.0
      %1499 = vmatpush1.msra.mxu0 0.0
      %1500 = vmatprep.subr.mxu0 0.0
      %1501 = vmatpush1.msra.mxu0 0.0
      %1502 = vmatprep.subr.mxu0 0.0
      %1503 = vmatpush1.msra.mxu0 0.0
      %1504 = vmatprep.subr.mxu0 0.0
      %1505 = vmatpush1.msra.mxu0 0.0
      %1506 = vmatprep.subr.mxu0 0.0
      %1507 = vmatpush1.msra.mxu0 0.0
      %1508 = vmatprep.subr.mxu0 0.0
      %1509 = vmatpush1.msra.mxu0 0.0
      %1510 = vmatprep.subr.mxu0 0.0
      %1511 = vmatpush1.msra.mxu0 0.0
      %1512 = vmatprep.mubr.f32.mxu0 0.0
      %1513 = vmatmul.mubr.f32.gmra.mrb[0].mxu0 %v1443
      %v1514 = vpop.f32.mrb[0].mxu0
      %v1515 = vadd.f32 %v1440, %v1514
      %v1516 = vpop.f32.mrb[0].mxu0
      %1517 = vmatprep.mubr.f32.mxu0 0.0
      %1518 = vmatmul.mubr.f32.gmra.mrb[0].mxu0 %v1446
      %v1519 = vpop.f32.mrb[0].mxu0
      %v1520 = vadd.f32 %v1440, %v1519
      %v1521 = vpop.f32.mrb[0].mxu0
      %1522 = vdwg.mxu0
      %v1523 = vadd.f32 %v1515, %v482
      %v1524 = vadd.f32 %v1520, %v483
      %v1525 = vld [vmem:[%s6] sm:$0x1]
      %v1526 = vld [vmem:[%s7] sm:$0x1]
      %v1527 = vsel %vm496, %v1523, 0.0
      %1528 = vadd.xlane.f32.xlu0 %v1527
      %v1529 = vpop.xlane.xlu0 %1528
      %v1530 = vsel %vm496, %v1524, 0.0
      %1531 = vadd.xlane.f32.xlu0 %v1530
      %v1532 = vpop.xlane.xlu0 %1531
      %v1533 = vrcp.pop 32.0
      %v1534 = vmul.f32 %v1529, %v1533
      %v1535 = vmul.f32 %v1532, %v1533
      %v1536 = vsub.f32 %v1523, %v1534
      %v1537 = vsub.f32 %v1524, %v1535
      %v1538 = vmul.f32 %v1536, %v1536
      %v1539 = vmul.f32 %v1537, %v1537
      %v1540 = vsel %vm496, %v1538, 0.0
      %1541 = vadd.xlane.f32.xlu0 %v1540
      %v1542 = vpop.xlane.xlu0 %1541
      %v1543 = vsel %vm496, %v1539, 0.0
      %1544 = vadd.xlane.f32.xlu0 %v1543
      %v1545 = vpop.xlane.xlu0 %1544
      %v1546 = vmul.f32 %v1542, %v1533
      %v1547 = vmul.f32 %v1545, %v1533
      %v1548 = vadd.f32 %v1546, 1e-12
      %v1549 = vadd.f32 %v1547, 1e-12
      %v1550 = vrsqrt.pop %v1548
      %v1551 = vrsqrt.pop %v1549
      %v1552 = vmul.f32 %v1536, %v1550
      %v1553 = vmul.f32 %v1537, %v1551
      %v1555 = vlaneseq
      %v1556 = vshrl.u32 %v1555, 7
      %v1557 = vsub.s32 0, %v1556
      %v1558 = vrot.slane %v1525, %v1557
      %v1560 = vmul.f32 %v1552, %v1558
      %v1561 = vmul.f32 %v1553, %v1558
      %v1563 = vlaneseq
      %v1564 = vshrl.u32 %v1563, 7
      %v1565 = vsub.s32 0, %v1564
      %v1566 = vrot.slane %v1526, %v1565
      %v1568 = vadd.f32 %v1560, %v1566
      %v1569 = vadd.f32 %v1561, %v1566
      %v1570 = vld [vmem:[%s8] sm:$0xff]
      %v1571 = vld [vmem:[%s8 + $0x8] sm:$0xff]
      %v1572 = vld [vmem:[%s8 + $0x10] sm:$0xff]
      %v1573 = vld [vmem:[%s8 + $0x18] sm:$0xff]
      %v1574 = vld [vmem:[%s9] sm:$0x1]
      %v1576 = vlaneseq
      %v1577 = vshrl.u32 %v1576, 7
      %v1578 = vsub.s32 0, %v1577
      %v1579 = vrot.slane %v1574, %v1578
      %v1582 = vsel %vm496, %v1568, 0
      %v1585 = vsel %vm496, %v1569, 0
      %1587 = vmatprep.subr.mxu0 0.0
      %1588 = vmatpush1.msra.mxu0 %v1570
      %1589 = vmatprep.subr.mxu0 0.0
      %1590 = vmatpush1.msra.mxu0 %v1571
      %1591 = vmatprep.subr.mxu0 0.0
      %1592 = vmatpush1.msra.mxu0 %v1572
      %1593 = vmatprep.subr.mxu0 0.0
      %1594 = vmatpush1.msra.mxu0 %v1573
      %1595 = vmatprep.subr.mxu0 0.0
      %1596 = vmatpush1.msra.mxu0 0.0
      %1597 = vmatprep.subr.mxu0 0.0
      %1598 = vmatpush1.msra.mxu0 0.0
      %1599 = vmatprep.subr.mxu0 0.0
      %1600 = vmatpush1.msra.mxu0 0.0
      %1601 = vmatprep.subr.mxu0 0.0
      %1602 = vmatpush1.msra.mxu0 0.0
      %1603 = vmatprep.subr.mxu0 0.0
      %1604 = vmatpush1.msra.mxu0 0.0
      %1605 = vmatprep.subr.mxu0 0.0
      %1606 = vmatpush1.msra.mxu0 0.0
      %1607 = vmatprep.subr.mxu0 0.0
      %1608 = vmatpush1.msra.mxu0 0.0
      %1609 = vmatprep.subr.mxu0 0.0
      %1610 = vmatpush1.msra.mxu0 0.0
      %1611 = vmatprep.subr.mxu0 0.0
      %1612 = vmatpush1.msra.mxu0 0.0
      %1613 = vmatprep.subr.mxu0 0.0
      %1614 = vmatpush1.msra.mxu0 0.0
      %1615 = vmatprep.subr.mxu0 0.0
      %1616 = vmatpush1.msra.mxu0 0.0
      %1617 = vmatprep.subr.mxu0 0.0
      %1618 = vmatpush1.msra.mxu0 0.0
      %1619 = vmatprep.subr.mxu0 0.0
      %1620 = vmatpush1.msra.mxu0 0.0
      %1621 = vmatprep.subr.mxu0 0.0
      %1622 = vmatpush1.msra.mxu0 0.0
      %1623 = vmatprep.subr.mxu0 0.0
      %1624 = vmatpush1.msra.mxu0 0.0
      %1625 = vmatprep.subr.mxu0 0.0
      %1626 = vmatpush1.msra.mxu0 0.0
      %1627 = vmatprep.subr.mxu0 0.0
      %1628 = vmatpush1.msra.mxu0 0.0
      %1629 = vmatprep.subr.mxu0 0.0
      %1630 = vmatpush1.msra.mxu0 0.0
      %1631 = vmatprep.subr.mxu0 0.0
      %1632 = vmatpush1.msra.mxu0 0.0
      %1633 = vmatprep.subr.mxu0 0.0
      %1634 = vmatpush1.msra.mxu0 0.0
      %1635 = vmatprep.subr.mxu0 0.0
      %1636 = vmatpush1.msra.mxu0 0.0
      %1637 = vmatprep.subr.mxu0 0.0
      %1638 = vmatpush1.msra.mxu0 0.0
      %1639 = vmatprep.subr.mxu0 0.0
      %1640 = vmatpush1.msra.mxu0 0.0
      %1641 = vmatprep.subr.mxu0 0.0
      %1642 = vmatpush1.msra.mxu0 0.0
      %1643 = vmatprep.subr.mxu0 0.0
      %1644 = vmatpush1.msra.mxu0 0.0
      %1645 = vmatprep.subr.mxu0 0.0
      %1646 = vmatpush1.msra.mxu0 0.0
      %1647 = vmatprep.subr.mxu0 0.0
      %1648 = vmatpush1.msra.mxu0 0.0
      %1649 = vmatprep.subr.mxu0 0.0
      %1650 = vmatpush1.msra.mxu0 0.0
      %1651 = vmatprep.mubr.f32.mxu0 0.0
      %1652 = vmatmul.mubr.f32.gmra.mrb[0].mxu0 %v1582
      %v1653 = vpop.f32.mrb[0].mxu0
      %v1654 = vadd.f32 %v1579, %v1653
      %v1655 = vpop.f32.mrb[0].mxu0
      %1656 = vmatprep.mubr.f32.mxu0 0.0
      %1657 = vmatmul.mubr.f32.gmra.mrb[0].mxu0 %v1585
      %v1658 = vpop.f32.mrb[0].mxu0
      %v1659 = vadd.f32 %v1579, %v1658
      %v1660 = vpop.f32.mrb[0].mxu0
      %1661 = vdwg.mxu0
      %v1662 = vmul.f32 %v1654, %v1654
      %v1663 = vmul.f32 %v1659, %v1659
      %v1664 = vmul.f32 %v1654, %v1662
      %v1665 = vmul.f32 %v1659, %v1663
      %v1666 = vmul.f32 %v1664, 0.044715
      %v1667 = vmul.f32 %v1665, 0.044715
      %v1668 = vadd.f32 %v1654, %v1666
      %v1669 = vadd.f32 %v1659, %v1667
      %v1670 = vmul.f32 %v1668, 0.7978846
      %v1671 = vmul.f32 %v1669, 0.7978846
      %v1672 = vtanh.pop %v1670
      %v1673 = vtanh.pop %v1671
      %v1674 = vadd.f32 %v1672, 1.0
      %v1675 = vadd.f32 %v1673, 1.0
      %v1676 = vmul.f32 %v1674, 0.5
      %v1677 = vmul.f32 %v1675, 0.5
      %v1678 = vmul.f32 %v1654, %v1676
      %v1679 = vmul.f32 %v1659, %v1677
      %v1680 = vld [vmem:[%s10] sm:$0xff]
      %v1681 = vld [vmem:[%s10 + $0x8] sm:$0xff]
      %v1682 = vld [vmem:[%s10 + $0x10] sm:$0xff]
      %v1683 = vld [vmem:[%s10 + $0x18] sm:$0xff]
      %v1684 = vld [vmem:[%s10 + $0x20] sm:$0xff]
      %v1685 = vld [vmem:[%s10 + $0x28] sm:$0xff]
      %v1686 = vld [vmem:[%s10 + $0x30] sm:$0xff]
      %v1687 = vld [vmem:[%s10 + $0x38] sm:$0xff]
      %v1688 = vld [vmem:[%s11] sm:$0x1]
      %v1690 = vlaneseq
      %v1691 = vshrl.u32 %v1690, 7
      %v1692 = vsub.s32 0, %v1691
      %v1693 = vrot.slane %v1688, %v1692
      %vm1695 = vcmask 523264
      %v1697 = vsel %vm1695, %v1678, 0
      %v1700 = vsel %vm1695, %v1679, 0
      %1702 = vmatprep.subr.mxu0 0.0
      %1703 = vmatpush1.msra.mxu0 %v1680
      %1704 = vmatprep.subr.mxu0 0.0
      %1705 = vmatpush1.msra.mxu0 %v1681
      %1706 = vmatprep.subr.mxu0 0.0
      %1707 = vmatpush1.msra.mxu0 %v1682
      %1708 = vmatprep.subr.mxu0 0.0
      %1709 = vmatpush1.msra.mxu0 %v1683
      %1710 = vmatprep.subr.mxu0 0.0
      %1711 = vmatpush1.msra.mxu0 %v1684
      %1712 = vmatprep.subr.mxu0 0.0
      %1713 = vmatpush1.msra.mxu0 %v1685
      %1714 = vmatprep.subr.mxu0 0.0
      %1715 = vmatpush1.msra.mxu0 %v1686
      %1716 = vmatprep.subr.mxu0 0.0
      %1717 = vmatpush1.msra.mxu0 %v1687
      %1718 = vmatprep.subr.mxu0 0.0
      %1719 = vmatpush1.msra.mxu0 0.0
      %1720 = vmatprep.subr.mxu0 0.0
      %1721 = vmatpush1.msra.mxu0 0.0
      %1722 = vmatprep.subr.mxu0 0.0
      %1723 = vmatpush1.msra.mxu0 0.0
      %1724 = vmatprep.subr.mxu0 0.0
      %1725 = vmatpush1.msra.mxu0 0.0
      %1726 = vmatprep.subr.mxu0 0.0
      %1727 = vmatpush1.msra.mxu0 0.0
      %1728 = vmatprep.subr.mxu0 0.0
      %1729 = vmatpush1.msra.mxu0 0.0
      %1730 = vmatprep.subr.mxu0 0.0
      %1731 = vmatpush1.msra.mxu0 0.0
      %1732 = vmatprep.subr.mxu0 0.0
      %1733 = vmatpush1.msra.mxu0 0.0
      %1734 = vmatprep.subr.mxu0 0.0
      %1735 = vmatpush1.msra.mxu0 0.0
      %1736 = vmatprep.subr.mxu0 0.0
      %1737 = vmatpush1.msra.mxu0 0.0
      %1738 = vmatprep.subr.mxu0 0.0
      %1739 = vmatpush1.msra.mxu0 0.0
      %1740 = vmatprep.subr.mxu0 0.0
      %1741 = vmatpush1.msra.mxu0 0.0
      %1742 = vmatprep.subr.mxu0 0.0
      %1743 = vmatpush1.msra.mxu0 0.0
      %1744 = vmatprep.subr.mxu0 0.0
      %1745 = vmatpush1.msra.mxu0 0.0
      %1746 = vmatprep.subr.mxu0 0.0
      %1747 = vmatpush1.msra.mxu0 0.0
      %1748 = vmatprep.subr.mxu0 0.0
      %1749 = vmatpush1.msra.mxu0 0.0
      %1750 = vmatprep.subr.mxu0 0.0
      %1751 = vmatpush1.msra.mxu0 0.0
      %1752 = vmatprep.subr.mxu0 0.0
      %1753 = vmatpush1.msra.mxu0 0.0
      %1754 = vmatprep.subr.mxu0 0.0
      %1755 = vmatpush1.msra.mxu0 0.0
      %1756 = vmatprep.subr.mxu0 0.0
      %1757 = vmatpush1.msra.mxu0 0.0
      %1758 = vmatprep.subr.mxu0 0.0
      %1759 = vmatpush1.msra.mxu0 0.0
      %1760 = vmatprep.subr.mxu0 0.0
      %1761 = vmatpush1.msra.mxu0 0.0
      %1762 = vmatprep.subr.mxu0 0.0
      %1763 = vmatpush1.msra.mxu0 0.0
      %1764 = vmatprep.subr.mxu0 0.0
      %1765 = vmatpush1.msra.mxu0 0.0
      %1766 = vmatprep.mubr.f32.mxu0 0.0
      %1767 = vmatmul.mubr.f32.gmra.mrb[0].mxu0 %v1697
      %v1768 = vpop.f32.mrb[0].mxu0
      %v1769 = vadd.f32 %v1693, %v1768
      %v1770 = vpop.f32.mrb[0].mxu0
      %1771 = vmatprep.mubr.f32.mxu0 0.0
      %1772 = vmatmul.mubr.f32.gmra.mrb[0].mxu0 %v1700
      %v1773 = vpop.f32.mrb[0].mxu0
      %v1774 = vadd.f32 %v1693, %v1773
      %v1775 = vpop.f32.mrb[0].mxu0
      %1776 = vdwg.mxu0
      %v1777 = vadd.f32 %v1769, %v1568
      %v1778 = vadd.f32 %v1774, %v1569
      %v1779 = vld [vmem:[%s12] sm:$0x1]
      %v1780 = vld [vmem:[%s13] sm:$0x1]
      %v1781 = vsel %vm496, %v1777, 0.0
      %1782 = vadd.xlane.f32.xlu0 %v1781
      %v1783 = vpop.xlane.xlu0 %1782
      %v1784 = vsel %vm496, %v1778, 0.0
      %1785 = vadd.xlane.f32.xlu0 %v1784
      %v1786 = vpop.xlane.xlu0 %1785
      %v1787 = vmul.f32 %v1783, %v1533
      %v1788 = vmul.f32 %v1786, %v1533
      %v1789 = vsub.f32 %v1777, %v1787
      %v1790 = vsub.f32 %v1778, %v1788
      %v1791 = vmul.f32 %v1789, %v1789
      %v1792 = vmul.f32 %v1790, %v1790
      %v1793 = vsel %vm496, %v1791, 0.0
      %1794 = vadd.xlane.f32.xlu0 %v1793
      %v1795 = vpop.xlane.xlu0 %1794
      %v1796 = vsel %vm496, %v1792, 0.0
      %1797 = vadd.xlane.f32.xlu0 %v1796
      %v1798 = vpop.xlane.xlu0 %1797
      %v1799 = vmul.f32 %v1795, %v1533
      %v1800 = vmul.f32 %v1798, %v1533
      %v1801 = vadd.f32 %v1799, 1e-12
      %v1802 = vadd.f32 %v1800, 1e-12
      %v1803 = vrsqrt.pop %v1801
      %v1804 = vrsqrt.pop %v1802
      %v1805 = vmul.f32 %v1789, %v1803
      %v1806 = vmul.f32 %v1790, %v1804
      %v1808 = vlaneseq
      %v1809 = vshrl.u32 %v1808, 7
      %v1810 = vsub.s32 0, %v1809
      %v1811 = vrot.slane %v1779, %v1810
      %v1813 = vmul.f32 %v1805, %v1811
      %v1814 = vmul.f32 %v1806, %v1811
      %v1816 = vlaneseq
      %v1817 = vshrl.u32 %v1816, 7
      %v1818 = vsub.s32 0, %v1817
      %v1819 = vrot.slane %v1780, %v1818
      %v1821 = vadd.f32 %v1813, %v1819
      %v1822 = vadd.f32 %v1814, %v1819
      %1823 = vst.msk [vmem:[%s481] sm:$0xff] %vm496, %v1821
      %1824 = vst.msk [vmem:[%s481 + $0x8] sm:$0xff] %vm496, %v1822
      %p1825 = scmp.lt.s32.totalorder %s25, 1
      %s1826 = scalar_select %p1825, %s25, 1
      %s1827 = smul.addr %s1826, 2
      %s1828 = smul.addr %s1827, 8
      %s1829 = scalar_lea.vmem %s14, %s1828
      // Predicated region
      $region77: #{custom_model_forward.11} parent=75 // pred_check
        %p1830 = pneg %p347
      $region78: #{custom_model_forward.11} parent=75 // pred_check_branch
        %1832 = sbr.rel (%p1830) target = $region80
      $region79: #{custom_model_forward.11} parent=75 // pred_region
        _
      $region80: #{custom_model_forward.11} parent=75 // pred_fallthru
        _
    $region76: #{custom_model_forward.11} parent=5 // pred_fallthru
      _
    %p1833 = scmp.le.s32.totalorder 2, %s20
    // Predicated region
    $region81: #{custom_model_forward.11} parent=5 // pred_check
      %p1834 = pneg %p1833
    $region82: #{custom_model_forward.11} parent=5 // pred_check_branch
      %1836 = sbr.rel (%p1834) target = $region84
    $region83: #{custom_model_forward.11} parent=5 // pred_region
      %s1837 = ssub.s32 %s20, 2
      // Predicated region
      $region85: #{custom_model_forward.11} parent=83 // pred_check
        %p1838 = pneg %p353
      $region86: #{custom_model_forward.11} parent=83 // pred_check_branch
        %1840 = sbr.rel (%p1838) target = $region88
      $region87: #{custom_model_forward.11} parent=83 // pred_region
        %p1841 = scmp.lt.s32.totalorder %s26, 1
        %s1842 = scalar_select %p1841, %s26, 1
        %s1843 = smul.addr %s1842, 2
        %s1844 = smul.addr %s1843, 8
        %s1845 = scalar_lea.vmem %s14, %s1844
      $region88: #{custom_model_forward.11} parent=83 // pred_fallthru
        _
    $region84: #{custom_model_forward.11} parent=5 // pred_fallthru
      _
  $region6: #{custom_model_forward.11} parent=0 // loop_footer
    %s24 = sadd.s32 1, %s20
  $region7: #{custom_model_forward.11} parent=0 // loop_footer_branch
    %19 = sbr.rel target = $region3
  $region8: #{custom_model_forward.11} parent=0 // loop_exit
    _

// kernel: custom_model_forward.13
$region0: #{custom_model_forward.13}
  #allocation0 [shape = 'u32[]', space=smem, size = 0x4, offset = 0x4, fixed_abs, tag = 'smem constant byte address 0x4 - core index']
  #allocation1 [shape = 'u32[144,128]{1,0:T(1,128)}', space=vmem, size = 0x12000, scoped, tag = 'internal scratch']
  %s0 = inlined_call_operand.vmem [shape: f32[2,32], index: 0, kind: input, shape index: {}]
  %s1 = inlined_call_operand.vmem [shape: f32[32,32], index: 1, kind: input, shape index: {}]
  %s2 = inlined_call_operand.vmem [shape: f32[1,32], index: 2, kind: input, shape index: {}]
  %s3 = inlined_call_operand.vmem [shape: f32[32,288], index: 3, kind: input, shape index: {}]
  %s4 = inlined_call_operand.vmem [shape: f32[1,288], index: 4, kind: input, shape index: {}]
  %s5 = inlined_call_operand.vmem [shape: f32[64,64], index: 5, kind: input, shape index: {}]
  %s6 = inlined_call_operand.vmem [shape: f32[1,64], index: 6, kind: input, shape index: {}]
  %s7 = inlined_call_operand.vmem [shape: f32[64,4], index: 7, kind: input, shape index: {}]
  %s8 = inlined_call_operand.vmem [shape: f32[1,4], index: 8, kind: input, shape index: {}]
  %s9 = inlined_call_operand.vmem [shape: f32[96,96], index: 9, kind: input, shape index: {}]
  %s10 = inlined_call_operand.vmem [shape: f32[1,96], index: 10, kind: input, shape index: {}]
  %s11 = inlined_call_operand.vmem [shape: f32[96,8], index: 11, kind: input, shape index: {}]
  %s12 = inlined_call_operand.vmem [shape: f32[1,8], index: 12, kind: input, shape index: {}]
  %s13 = inlined_call_operand.vmem [shape: f32[128,128], index: 13, kind: input, shape index: {}]
  %s14 = inlined_call_operand.vmem [shape: f32[1,128], index: 14, kind: input, shape index: {}]
  %s15 = inlined_call_operand.vmem [shape: f32[128,16], index: 15, kind: input, shape index: {}]
  %s16 = inlined_call_operand.vmem [shape: f32[1,16], index: 16, kind: input, shape index: {}]
  %s17 = inlined_call_operand.vmem [shape: f32[4,64], index: 17, kind: input, shape index: {}]
  %s18 = inlined_call_operand.vmem [shape: f32[1,64], index: 18, kind: input, shape index: {}]
  %s19 = inlined_call_operand.vmem [shape: f32[64,8], index: 19, kind: input, shape index: {}]
  %s20 = inlined_call_operand.vmem [shape: f32[1,8], index: 20, kind: input, shape index: {}]
  %s21 = inlined_call_operand.vmem [shape: f32[8,96], index: 21, kind: input, shape index: {}]
  %s22 = inlined_call_operand.vmem [shape: f32[1,96], index: 22, kind: input, shape index: {}]
  %s23 = inlined_call_operand.vmem [shape: f32[96,16], index: 23, kind: input, shape index: {}]
  %s24 = inlined_call_operand.vmem [shape: f32[1,16], index: 24, kind: input, shape index: {}]
  %s25 = inlined_call_operand.hbm [shape: f32[2,4], index: 25, kind: output, shape index: {0}]
  %s26 = inlined_call_operand.hbm [shape: f32[2,8], index: 26, kind: output, shape index: {1}]
  %s27 = inlined_call_operand.hbm [shape: f32[2,16], index: 27, kind: output, shape index: {2}]
  %28 = xla_tuple %s25, %s26, %s27
  %s29 = sld [smem:[#allocation0]]
  $region126: #{custom_model_forward.13} parent=0
    _
  %s31 = ssub.s32 1, %s29
  %s32 = scalar_select 0, %s31, %s29
  $region1: #{custom_model_forward.13} parent=0
    #allocation2 [shape = 'u8[1024]{0}', space=vmem, size = 0x400, scoped, tag = 'output window, operand 0, single buffered']
    #allocation3 [shape = 's32[1]{0}', space=sflag, size = 0x4, scoped, tag = 'scoped memory for custom_model_forward.13']
    #allocation4 [shape = 'u8[1024]{0}', space=vmem, size = 0x400, scoped, tag = 'output window, operand 1, single buffered']
    #allocation5 [shape = 's32[1]{0}', space=sflag, size = 0x4, scoped, tag = 'scoped memory for custom_model_forward.13']
    #allocation6 [shape = 'u8[1024]{0}', space=vmem, size = 0x400, scoped, tag = 'output window, operand 2, single buffered']
    %33 = vsyncpa [#allocation3], 0
    %34 = vsyncpa [#allocation5], 0
    // Predicated region
    $region2: #{custom_model_forward.13} parent=1 // pred_check
      _
    $region3: #{custom_model_forward.13} parent=1 // pred_check_branch
      %36 = sbr.rel (0) target = $region5
    $region4: #{custom_model_forward.13} parent=1 // pred_region
      _
    $region5: #{custom_model_forward.13} parent=1 // pred_fallthru
      _
    // Predicated region
    $region6: #{custom_model_forward.13} parent=1 // pred_check
      _
    $region7: #{custom_model_forward.13} parent=1 // pred_check_branch
      %38 = sbr.rel (0) target = $region9
    $region8: #{custom_model_forward.13} parent=1 // pred_region
      _
    $region9: #{custom_model_forward.13} parent=1 // pred_fallthru
      _
    // Predicated region
    $region10: #{custom_model_forward.13} parent=1 // pred_check
      _
    $region11: #{custom_model_forward.13} parent=1 // pred_check_branch
      %40 = sbr.rel (0) target = $region13
    $region12: #{custom_model_forward.13} parent=1 // pred_region
      _
    $region13: #{custom_model_forward.13} parent=1 // pred_fallthru
      _
    // Predicated region
    $region14: #{custom_model_forward.13} parent=1 // pred_check
      _
    $region15: #{custom_model_forward.13} parent=1 // pred_check_branch
      %42 = sbr.rel (0) target = $region17
    $region16: #{custom_model_forward.13} parent=1 // pred_region
      _
    $region17: #{custom_model_forward.13} parent=1 // pred_fallthru
      _
    // Predicated region
    $region18: #{custom_model_forward.13} parent=1 // pred_check
      _
    $region19: #{custom_model_forward.13} parent=1 // pred_check_branch
      %44 = sbr.rel (0) target = $region21
    $region20: #{custom_model_forward.13} parent=1 // pred_region
      _
    $region21: #{custom_model_forward.13} parent=1 // pred_fallthru
      _
    // Predicated region
    $region22: #{custom_model_forward.13} parent=1 // pred_check
      _
    $region23: #{custom_model_forward.13} parent=1 // pred_check_branch
      %46 = sbr.rel (0) target = $region25
    $region24: #{custom_model_forward.13} parent=1 // pred_region
      _
    $region25: #{custom_model_forward.13} parent=1 // pred_fallthru
      _
    // Predicated region
    $region26: #{custom_model_forward.13} parent=1 // pred_check
      _
    $region27: #{custom_model_forward.13} parent=1 // pred_check_branch
      %48 = sbr.rel (0) target = $region29
    $region28: #{custom_model_forward.13} parent=1 // pred_region
      _
    $region29: #{custom_model_forward.13} parent=1 // pred_fallthru
      _
    // Predicated region
    $region30: #{custom_model_forward.13} parent=1 // pred_check
      _
    $region31: #{custom_model_forward.13} parent=1 // pred_check_branch
      %50 = sbr.rel (0) target = $region33
    $region32: #{custom_model_forward.13} parent=1 // pred_region
      _
    $region33: #{custom_model_forward.13} parent=1 // pred_fallthru
      _
    // Predicated region
    $region34: #{custom_model_forward.13} parent=1 // pred_check
      _
    $region35: #{custom_model_forward.13} parent=1 // pred_check_branch
      %52 = sbr.rel (0) target = $region37
    $region36: #{custom_model_forward.13} parent=1 // pred_region
      _
    $region37: #{custom_model_forward.13} parent=1 // pred_fallthru
      _
    // Predicated region
    $region38: #{custom_model_forward.13} parent=1 // pred_check
      _
    $region39: #{custom_model_forward.13} parent=1 // pred_check_branch
      %54 = sbr.rel (0) target = $region41
    $region40: #{custom_model_forward.13} parent=1 // pred_region
      _
    $region41: #{custom_model_forward.13} parent=1 // pred_fallthru
      _
    // Predicated region
    $region42: #{custom_model_forward.13} parent=1 // pred_check
      _
    $region43: #{custom_model_forward.13} parent=1 // pred_check_branch
      %56 = sbr.rel (0) target = $region45
    $region44: #{custom_model_forward.13} parent=1 // pred_region
      _
    $region45: #{custom_model_forward.13} parent=1 // pred_fallthru
      _
    // Predicated region
    $region46: #{custom_model_forward.13} parent=1 // pred_check
      _
    $region47: #{custom_model_forward.13} parent=1 // pred_check_branch
      %58 = sbr.rel (0) target = $region49
    $region48: #{custom_model_forward.13} parent=1 // pred_region
      _
    $region49: #{custom_model_forward.13} parent=1 // pred_fallthru
      _
    // Predicated region
    $region50: #{custom_model_forward.13} parent=1 // pred_check
      _
    $region51: #{custom_model_forward.13} parent=1 // pred_check_branch
      %60 = sbr.rel (0) target = $region53
    $region52: #{custom_model_forward.13} parent=1 // pred_region
      _
    $region53: #{custom_model_forward.13} parent=1 // pred_fallthru
      _
    // Predicated region
    $region54: #{custom_model_forward.13} parent=1 // pred_check
      _
    $region55: #{custom_model_forward.13} parent=1 // pred_check_branch
      %62 = sbr.rel (0) target = $region57
    $region56: #{custom_model_forward.13} parent=1 // pred_region
      _
    $region57: #{custom_model_forward.13} parent=1 // pred_fallthru
      _
    // Predicated region
    $region58: #{custom_model_forward.13} parent=1 // pred_check
      _
    $region59: #{custom_model_forward.13} parent=1 // pred_check_branch
      %64 = sbr.rel (0) target = $region61
    $region60: #{custom_model_forward.13} parent=1 // pred_region
      _
    $region61: #{custom_model_forward.13} parent=1 // pred_fallthru
      _
    // Predicated region
    $region62: #{custom_model_forward.13} parent=1 // pred_check
      _
    $region63: #{custom_model_forward.13} parent=1 // pred_check_branch
      %66 = sbr.rel (0) target = $region65
    $region64: #{custom_model_forward.13} parent=1 // pred_region
      _
    $region65: #{custom_model_forward.13} parent=1 // pred_fallthru
      _
    // Predicated region
    $region66: #{custom_model_forward.13} parent=1 // pred_check
      _
    $region67: #{custom_model_forward.13} parent=1 // pred_check_branch
      %68 = sbr.rel (0) target = $region69
    $region68: #{custom_model_forward.13} parent=1 // pred_region
      _
    $region69: #{custom_model_forward.13} parent=1 // pred_fallthru
      _
    // Predicated region
    $region70: #{custom_model_forward.13} parent=1 // pred_check
      _
    $region71: #{custom_model_forward.13} parent=1 // pred_check_branch
      %70 = sbr.rel (0) target = $region73
    $region72: #{custom_model_forward.13} parent=1 // pred_region
      _
    $region73: #{custom_model_forward.13} parent=1 // pred_fallthru
      _
    // Predicated region
    $region74: #{custom_model_forward.13} parent=1 // pred_check
      _
    $region75: #{custom_model_forward.13} parent=1 // pred_check_branch
      %72 = sbr.rel (0) target = $region77
    $region76: #{custom_model_forward.13} parent=1 // pred_region
      _
    $region77: #{custom_model_forward.13} parent=1 // pred_fallthru
      _
    // Predicated region
    $region78: #{custom_model_forward.13} parent=1 // pred_check
      _
    $region79: #{custom_model_forward.13} parent=1 // pred_check_branch
      %74 = sbr.rel (0) target = $region81
    $region80: #{custom_model_forward.13} parent=1 // pred_region
      _
    $region81: #{custom_model_forward.13} parent=1 // pred_fallthru
      _
    // Predicated region
    $region82: #{custom_model_forward.13} parent=1 // pred_check
      _
    $region83: #{custom_model_forward.13} parent=1 // pred_check_branch
      %76 = sbr.rel (0) target = $region85
    $region84: #{custom_model_forward.13} parent=1 // pred_region
      _
    $region85: #{custom_model_forward.13} parent=1 // pred_fallthru
      _
    // Predicated region
    $region86: #{custom_model_forward.13} parent=1 // pred_check
      _
    $region87: #{custom_model_forward.13} parent=1 // pred_check_branch
      %78 = sbr.rel (0) target = $region89
    $region88: #{custom_model_forward.13} parent=1 // pred_region
      _
    $region89: #{custom_model_forward.13} parent=1 // pred_fallthru
      _
    // Predicated region
    $region90: #{custom_model_forward.13} parent=1 // pred_check
      _
    $region91: #{custom_model_forward.13} parent=1 // pred_check_branch
      %80 = sbr.rel (0) target = $region93
    $region92: #{custom_model_forward.13} parent=1 // pred_region
      _
    $region93: #{custom_model_forward.13} parent=1 // pred_fallthru
      _
    // Predicated region
    $region94: #{custom_model_forward.13} parent=1 // pred_check
      _
    $region95: #{custom_model_forward.13} parent=1 // pred_check_branch
      %82 = sbr.rel (0) target = $region97
    $region96: #{custom_model_forward.13} parent=1 // pred_region
      _
    $region97: #{custom_model_forward.13} parent=1 // pred_fallthru
      _
    // Predicated region
    $region98: #{custom_model_forward.13} parent=1 // pred_check
      _
    $region99: #{custom_model_forward.13} parent=1 // pred_check_branch
      %84 = sbr.rel (0) target = $region101
    $region100: #{custom_model_forward.13} parent=1 // pred_region
      _
    $region101: #{custom_model_forward.13} parent=1 // pred_fallthru
      _
    %v85 = vld [vmem:[%s0] sm:$0x3]
    %v86 = vld [vmem:[%s1] sm:$0xff]
    %v87 = vld [vmem:[%s1 + $0x8] sm:$0xff]
    %v88 = vld [vmem:[%s1 + $0x10] sm:$0xff]
    %v89 = vld [vmem:[%s1 + $0x18] sm:$0xff]
    %v90 = vld [vmem:[%s2] sm:$0x1]
    %v92 = vlaneseq
    %v93 = vshrl.u32 %v92, 7
    %v94 = vsub.s32 0, %v93
    %v95 = vrot.slane %v90, %v94
    %vm97 = vcmask 261120
    %v99 = vsel %vm97, %v85, 0
    %101 = vmatprep.subr.mxu0 0.0
    %102 = vmatpush1.msra.mxu0 %v86
    %103 = vmatprep.subr.mxu0 0.0
    %104 = vmatpush1.msra.mxu0 %v87
    %105 = vmatprep.subr.mxu0 0.0
    %106 = vmatpush1.msra.mxu0 %v88
    %107 = vmatprep.subr.mxu0 0.0
    %108 = vmatpush1.msra.mxu0 %v89
    %109 = vmatprep.subr.mxu0 0.0
    %110 = vmatpush1.msra.mxu0 0.0
    %111 = vmatprep.subr.mxu0 0.0
    %112 = vmatpush1.msra.mxu0 0.0
    %113 = vmatprep.subr.mxu0 0.0
    %114 = vmatpush1.msra.mxu0 0.0
    %115 = vmatprep.subr.mxu0 0.0
    %116 = vmatpush1.msra.mxu0 0.0
    %117 = vmatprep.subr.mxu0 0.0
    %118 = vmatpush1.msra.mxu0 0.0
    %119 = vmatprep.subr.mxu0 0.0
    %120 = vmatpush1.msra.mxu0 0.0
    %121 = vmatprep.subr.mxu0 0.0
    %122 = vmatpush1.msra.mxu0 0.0
    %123 = vmatprep.subr.mxu0 0.0
    %124 = vmatpush1.msra.mxu0 0.0
    %125 = vmatprep.subr.mxu0 0.0
    %126 = vmatpush1.msra.mxu0 0.0
    %127 = vmatprep.subr.mxu0 0.0
    %128 = vmatpush1.msra.mxu0 0.0
    %129 = vmatprep.subr.mxu0 0.0
    %130 = vmatpush1.msra.mxu0 0.0
    %131 = vmatprep.subr.mxu0 0.0
    %132 = vmatpush1.msra.mxu0 0.0
    %133 = vmatprep.subr.mxu0 0.0
    %134 = vmatpush1.msra.mxu0 0.0
    %135 = vmatprep.subr.mxu0 0.0
    %136 = vmatpush1.msra.mxu0 0.0
    %137 = vmatprep.subr.mxu0 0.0
    %138 = vmatpush1.msra.mxu0 0.0
    %139 = vmatprep.subr.mxu0 0.0
    %140 = vmatpush1.msra.mxu0 0.0
    %141 = vmatprep.subr.mxu0 0.0
    %142 = vmatpush1.msra.mxu0 0.0
    %143 = vmatprep.subr.mxu0 0.0
    %144 = vmatpush1.msra.mxu0 0.0
    %145 = vmatprep.subr.mxu0 0.0
    %146 = vmatpush1.msra.mxu0 0.0
    %147 = vmatprep.subr.mxu0 0.0
    %148 = vmatpush1.msra.mxu0 0.0
    %149 = vmatprep.subr.mxu0 0.0
    %150 = vmatpush1.msra.mxu0 0.0
    %151 = vmatprep.subr.mxu0 0.0
    %152 = vmatpush1.msra.mxu0 0.0
    %153 = vmatprep.subr.mxu0 0.0
    %154 = vmatpush1.msra.mxu0 0.0
    %155 = vmatprep.subr.mxu0 0.0
    %156 = vmatpush1.msra.mxu0 0.0
    %157 = vmatprep.subr.mxu0 0.0
    %158 = vmatpush1.msra.mxu0 0.0
    %159 = vmatprep.subr.mxu0 0.0
    %160 = vmatpush1.msra.mxu0 0.0
    %161 = vmatprep.subr.mxu0 0.0
    %162 = vmatpush1.msra.mxu0 0.0
    %163 = vmatprep.subr.mxu0 0.0
    %164 = vmatpush1.msra.mxu0 0.0
    %165 = vmatprep.mubr.f32.mxu0 0.0
    %166 = vmatmul.mubr.f32.gmra.mrb[0].mxu0 %v99
    %v167 = vpop.f32.mrb[0].mxu0
    %v168 = vadd.f32 %v95, %v167
    %v169 = vpop.f32.mrb[0].mxu0
    %170 = vdwg.mxu0
    %v171 = vtanh.pop %v168
    %v172 = vld [vmem:[%s3] sm:$0xff]
    %v173 = vld [vmem:[%s3 + $0x8] sm:$0xff]
    %v174 = vld [vmem:[%s3 + $0x10] sm:$0xff]
    %v175 = vld [vmem:[%s3 + $0x18] sm:$0xff]
    %v176 = vld [vmem:[%s3 + $0x20] sm:$0xff]
    %v177 = vld [vmem:[%s3 + $0x28] sm:$0xff]
    %v178 = vld [vmem:[%s3 + $0x30] sm:$0xff]
    %v179 = vld [vmem:[%s3 + $0x38] sm:$0xff]
    %v180 = vld [vmem:[%s3 + $0x40] sm:$0xff]
    %v181 = vld [vmem:[%s3 + $0x48] sm:$0xff]
    %v182 = vld [vmem:[%s3 + $0x50] sm:$0xff]
    %v183 = vld [vmem:[%s3 + $0x58] sm:$0xff]
    %v184 = vld [vmem:[%s4] sm:$0x7]
    %v186 = vlaneseq
    %v187 = vshrl.u32 %v186, 7
    %v188 = vsub.s32 0, %v187
    %v189 = vrot.slane %v184, %v188
    %v190 = vlaneseq
    %v191 = vshrl.u32 %v190, 7
    %v192 = vsub.s32 1, %v191
    %v193 = vrot.slane %v184, %v192
    %v194 = vlaneseq
    %v195 = vshrl.u32 %v194, 7
    %v196 = vsub.s32 2, %v195
    %v197 = vrot.slane %v184, %v196
    %v202 = vsel %vm97, %v171, 0
    %204 = vmatprep.subr.mxu0 %v173
    %205 = vmatpush1.msra.mxu0 %v172
    %206 = vmatprep.subr.mxu0 %v176
    %207 = vmatpush1.msra.mxu0 %v175
    %208 = vmatprep.subr.mxu0 %v179
    %209 = vmatpush1.msra.mxu0 %v178
    %210 = vmatprep.subr.mxu0 %v182
    %211 = vmatpush1.msra.mxu0 %v181
    %212 = vmatprep.subr.mxu0 0.0
    %213 = vmatpush1.msra.mxu0 0.0
    %214 = vmatprep.subr.mxu0 0.0
    %215 = vmatpush1.msra.mxu0 0.0
    %216 = vmatprep.subr.mxu0 0.0
    %217 = vmatpush1.msra.mxu0 0.0
    %218 = vmatprep.subr.mxu0 0.0
    %219 = vmatpush1.msra.mxu0 0.0
    %220 = vmatprep.subr.mxu0 0.0
    %221 = vmatpush1.msra.mxu0 0.0
    %222 = vmatprep.subr.mxu0 0.0
    %223 = vmatpush1.msra.mxu0 0.0
    %224 = vmatprep.subr.mxu0 0.0
    %225 = vmatpush1.msra.mxu0 0.0
    %226 = vmatprep.subr.mxu0 0.0
    %227 = vmatpush1.msra.mxu0 0.0
    %228 = vmatprep.subr.mxu0 0.0
    %229 = vmatpush1.msra.mxu0 0.0
    %230 = vmatprep.subr.mxu0 0.0
    %231 = vmatpush1.msra.mxu0 0.0
    %232 = vmatprep.subr.mxu0 0.0
    %233 = vmatpush1.msra.mxu0 0.0
    %234 = vmatprep.subr.mxu0 0.0
    %235 = vmatpush1.msra.mxu0 0.0
    %236 = vmatprep.subr.mxu0 0.0
    %237 = vmatpush1.msra.mxu0 0.0
    %238 = vmatprep.subr.mxu0 0.0
    %239 = vmatpush1.msra.mxu0 0.0
    %240 = vmatprep.subr.mxu0 0.0
    %241 = vmatpush1.msra.mxu0 0.0
    %242 = vmatprep.subr.mxu0 0.0
    %243 = vmatpush1.msra.mxu0 0.0
    %244 = vmatprep.subr.mxu0 0.0
    %245 = vmatpush1.msra.mxu0 0.0
    %246 = vmatprep.subr.mxu0 0.0
    %247 = vmatpush1.msra.mxu0 0.0
    %248 = vmatprep.subr.mxu0 0.0
    %249 = vmatpush1.msra.mxu0 0.0
    %250 = vmatprep.subr.mxu0 0.0
    %251 = vmatpush1.msra.mxu0 0.0
    %252 = vmatprep.subr.mxu0 0.0
    %253 = vmatpush1.msra.mxu0 0.0
    %254 = vmatprep.subr.mxu0 0.0
    %255 = vmatpush1.msra.mxu0 0.0
    %256 = vmatprep.subr.mxu0 0.0
    %257 = vmatpush1.msra.mxu0 0.0
    %258 = vmatprep.subr.mxu0 0.0
    %259 = vmatpush1.msra.mxu0 0.0
    %260 = vmatprep.subr.mxu0 0.0
    %261 = vmatpush1.msra.mxu0 0.0
    %262 = vmatprep.subr.mxu0 0.0
    %263 = vmatpush1.msra.mxu0 0.0
    %264 = vmatprep.subr.mxu0 0.0
    %265 = vmatpush1.msra.mxu0 0.0
    %266 = vmatprep.subr.mxu0 0.0
    %267 = vmatpush1.msra.mxu0 0.0
    %268 = vmatprep.mubr.f32.mxu0 0.0
    %269 = vmatmul.mubr.f32.gmra.mrb[0].mxu0 %v202
    %v270 = vpop.f32.mrb[0].mxu0
    %v271 = vadd.f32 %v189, %v270
    %v272 = vpop.f32.mrb[0].mxu0
    %v273 = vadd.f32 %v193, %v272
    %274 = vdwg.mxu0
    %275 = vmatprep.subr.mxu0 0.0
    %276 = vmatpush1.msra.mxu0 %v174
    %277 = vmatprep.subr.mxu0 0.0
    %278 = vmatpush1.msra.mxu0 %v177
    %279 = vmatprep.subr.mxu0 0.0
    %280 = vmatpush1.msra.mxu0 %v180
    %281 = vmatprep.subr.mxu0 0.0
    %282 = vmatpush1.msra.mxu0 %v183
    %283 = vmatprep.subr.mxu0 0.0
    %284 = vmatpush1.msra.mxu0 0.0
    %285 = vmatprep.subr.mxu0 0.0
    %286 = vmatpush1.msra.mxu0 0.0
    %287 = vmatprep.subr.mxu0 0.0
    %288 = vmatpush1.msra.mxu0 0.0
    %289 = vmatprep.subr.mxu0 0.0
    %290 = vmatpush1.msra.mxu0 0.0
    %291 = vmatprep.subr.mxu0 0.0
    %292 = vmatpush1.msra.mxu0 0.0
    %293 = vmatprep.subr.mxu0 0.0
    %294 = vmatpush1.msra.mxu0 0.0
    %295 = vmatprep.subr.mxu0 0.0
    %296 = vmatpush1.msra.mxu0 0.0
    %297 = vmatprep.subr.mxu0 0.0
    %298 = vmatpush1.msra.mxu0 0.0
    %299 = vmatprep.subr.mxu0 0.0
    %300 = vmatpush1.msra.mxu0 0.0
    %301 = vmatprep.subr.mxu0 0.0
    %302 = vmatpush1.msra.mxu0 0.0
    %303 = vmatprep.subr.mxu0 0.0
    %304 = vmatpush1.msra.mxu0 0.0
    %305 = vmatprep.subr.mxu0 0.0
    %306 = vmatpush1.msra.mxu0 0.0
    %307 = vmatprep.subr.mxu0 0.0
    %308 = vmatpush1.msra.mxu0 0.0
    %309 = vmatprep.subr.mxu0 0.0
    %310 = vmatpush1.msra.mxu0 0.0
    %311 = vmatprep.subr.mxu0 0.0
    %312 = vmatpush1.msra.mxu0 0.0
    %313 = vmatprep.subr.mxu0 0.0
    %314 = vmatpush1.msra.mxu0 0.0
    %315 = vmatprep.subr.mxu0 0.0
    %316 = vmatpush1.msra.mxu0 0.0
    %317 = vmatprep.subr.mxu0 0.0
    %318 = vmatpush1.msra.mxu0 0.0
    %319 = vmatprep.subr.mxu0 0.0
    %320 = vmatpush1.msra.mxu0 0.0
    %321 = vmatprep.subr.mxu0 0.0
    %322 = vmatpush1.msra.mxu0 0.0
    %323 = vmatprep.subr.mxu0 0.0
    %324 = vmatpush1.msra.mxu0 0.0
    %325 = vmatprep.subr.mxu0 0.0
    %326 = vmatpush1.msra.mxu0 0.0
    %327 = vmatprep.subr.mxu0 0.0
    %328 = vmatpush1.msra.mxu0 0.0
    %329 = vmatprep.subr.mxu0 0.0
    %330 = vmatpush1.msra.mxu0 0.0
    %331 = vmatprep.subr.mxu0 0.0
    %332 = vmatpush1.msra.mxu0 0.0
    %333 = vmatprep.subr.mxu0 0.0
    %334 = vmatpush1.msra.mxu0 0.0
    %335 = vmatprep.subr.mxu0 0.0
    %336 = vmatpush1.msra.mxu0 0.0
    %337 = vmatprep.subr.mxu0 0.0
    %338 = vmatpush1.msra.mxu0 0.0
    %339 = vmatprep.mubr.f32.mxu0 0.0
    %340 = vmatmul.mubr.f32.gmra.mrb[0].mxu0 %v202
    %v341 = vpop.f32.mrb[0].mxu0
    %v342 = vadd.f32 %v197, %v341
    %v343 = vpop.f32.mrb[0].mxu0
    %344 = vdwg.mxu0
    %v345 = vld [vmem:[%s5] sm:$0xff]
    %v346 = vld [vmem:[%s5 + $0x8] sm:$0xff]
    %v347 = vld [vmem:[%s5 + $0x10] sm:$0xff]
    %v348 = vld [vmem:[%s5 + $0x18] sm:$0xff]
    %v349 = vld [vmem:[%s5 + $0x20] sm:$0xff]
    %v350 = vld [vmem:[%s5 + $0x28] sm:$0xff]
    %v351 = vld [vmem:[%s5 + $0x30] sm:$0xff]
    %v352 = vld [vmem:[%s5 + $0x38] sm:$0xff]
    %v353 = vld [vmem:[%s6] sm:$0x1]
    %v355 = vlaneseq
    %v356 = vshrl.u32 %v355, 7
    %v357 = vsub.s32 0, %v356
    %v358 = vrot.slane %v353, %v357
    %vm360 = vcmask 523264
    %v362 = vsel %vm360, %v271, 0
    %364 = vmatprep.subr.mxu0 0.0
    %365 = vmatpush1.msra.mxu0 %v345
    %366 = vmatprep.subr.mxu0 0.0
    %367 = vmatpush1.msra.mxu0 %v346
    %368 = vmatprep.subr.mxu0 0.0
    %369 = vmatpush1.msra.mxu0 %v347
    %370 = vmatprep.subr.mxu0 0.0
    %371 = vmatpush1.msra.mxu0 %v348
    %372 = vmatprep.subr.mxu0 0.0
    %373 = vmatpush1.msra.mxu0 %v349
    %374 = vmatprep.subr.mxu0 0.0
    %375 = vmatpush1.msra.mxu0 %v350
    %376 = vmatprep.subr.mxu0 0.0
    %377 = vmatpush1.msra.mxu0 %v351
    %378 = vmatprep.subr.mxu0 0.0
    %379 = vmatpush1.msra.mxu0 %v352
    %380 = vmatprep.subr.mxu0 0.0
    %381 = vmatpush1.msra.mxu0 0.0
    %382 = vmatprep.subr.mxu0 0.0
    %383 = vmatpush1.msra.mxu0 0.0
    %384 = vmatprep.subr.mxu0 0.0
    %385 = vmatpush1.msra.mxu0 0.0
    %386 = vmatprep.subr.mxu0 0.0
    %387 = vmatpush1.msra.mxu0 0.0
    %388 = vmatprep.subr.mxu0 0.0
    %389 = vmatpush1.msra.mxu0 0.0
    %390 = vmatprep.subr.mxu0 0.0
    %391 = vmatpush1.msra.mxu0 0.0
    %392 = vmatprep.subr.mxu0 0.0
    %393 = vmatpush1.msra.mxu0 0.0
    %394 = vmatprep.subr.mxu0 0.0
    %395 = vmatpush1.msra.mxu0 0.0
    %396 = vmatprep.subr.mxu0 0.0
    %397 = vmatpush1.msra.mxu0 0.0
    %398 = vmatprep.subr.mxu0 0.0
    %399 = vmatpush1.msra.mxu0 0.0
    %400 = vmatprep.subr.mxu0 0.0
    %401 = vmatpush1.msra.mxu0 0.0
    %402 = vmatprep.subr.mxu0 0.0
    %403 = vmatpush1.msra.mxu0 0.0
    %404 = vmatprep.subr.mxu0 0.0
    %405 = vmatpush1.msra.mxu0 0.0
    %406 = vmatprep.subr.mxu0 0.0
    %407 = vmatpush1.msra.mxu0 0.0
    %408 = vmatprep.subr.mxu0 0.0
    %409 = vmatpush1.msra.mxu0 0.0
    %410 = vmatprep.subr.mxu0 0.0
    %411 = vmatpush1.msra.mxu0 0.0
    %412 = vmatprep.subr.mxu0 0.0
    %413 = vmatpush1.msra.mxu0 0.0
    %414 = vmatprep.subr.mxu0 0.0
    %415 = vmatpush1.msra.mxu0 0.0
    %416 = vmatprep.subr.mxu0 0.0
    %417 = vmatpush1.msra.mxu0 0.0
    %418 = vmatprep.subr.mxu0 0.0
    %419 = vmatpush1.msra.mxu0 0.0
    %420 = vmatprep.subr.mxu0 0.0
    %421 = vmatpush1.msra.mxu0 0.0
    %422 = vmatprep.subr.mxu0 0.0
    %423 = vmatpush1.msra.mxu0 0.0
    %424 = vmatprep.subr.mxu0 0.0
    %425 = vmatpush1.msra.mxu0 0.0
    %426 = vmatprep.subr.mxu0 0.0
    %427 = vmatpush1.msra.mxu0 0.0
    %428 = vmatprep.mubr.f32.mxu0 0.0
    %429 = vmatmul.mubr.f32.gmra.mrb[0].mxu0 %v362
    %v430 = vpop.f32.mrb[0].mxu0
    %v431 = vadd.f32 %v358, %v430
    %v432 = vpop.f32.mrb[0].mxu0
    %433 = vdwg.mxu0
    %v434 = vld [vmem:[%s7] sm:$0xff]
    %v435 = vld [vmem:[%s7 + $0x8] sm:$0xff]
    %v436 = vld [vmem:[%s7 + $0x10] sm:$0xff]
    %v437 = vld [vmem:[%s7 + $0x18] sm:$0xff]
    %v438 = vld [vmem:[%s7 + $0x20] sm:$0xff]
    %v439 = vld [vmem:[%s7 + $0x28] sm:$0xff]
    %v440 = vld [vmem:[%s7 + $0x30] sm:$0xff]
    %v441 = vld [vmem:[%s7 + $0x38] sm:$0xff]
    %v442 = vld [vmem:[%s8] sm:$0x1]
    %v444 = vlaneseq
    %v445 = vshrl.u32 %v444, 7
    %v446 = vsub.s32 0, %v445
    %v447 = vrot.slane %v442, %v446
    %v450 = vsel %vm360, %v431, 0
    %452 = vmatprep.subr.mxu0 0.0
    %453 = vmatpush1.msra.mxu0 %v434
    %454 = vmatprep.subr.mxu0 0.0
    %455 = vmatpush1.msra.mxu0 %v435
    %456 = vmatprep.subr.mxu0 0.0
    %457 = vmatpush1.msra.mxu0 %v436
    %458 = vmatprep.subr.mxu0 0.0
    %459 = vmatpush1.msra.mxu0 %v437
    %460 = vmatprep.subr.mxu0 0.0
    %461 = vmatpush1.msra.mxu0 %v438
    %462 = vmatprep.subr.mxu0 0.0
    %463 = vmatpush1.msra.mxu0 %v439
    %464 = vmatprep.subr.mxu0 0.0
    %465 = vmatpush1.msra.mxu0 %v440
    %466 = vmatprep.subr.mxu0 0.0
    %467 = vmatpush1.msra.mxu0 %v441
    %468 = vmatprep.subr.mxu0 0.0
    %469 = vmatpush1.msra.mxu0 0.0
    %470 = vmatprep.subr.mxu0 0.0
    %471 = vmatpush1.msra.mxu0 0.0
    %472 = vmatprep.subr.mxu0 0.0
    %473 = vmatpush1.msra.mxu0 0.0
    %474 = vmatprep.subr.mxu0 0.0
    %475 = vmatpush1.msra.mxu0 0.0
    %476 = vmatprep.subr.mxu0 0.0
    %477 = vmatpush1.msra.mxu0 0.0
    %478 = vmatprep.subr.mxu0 0.0
    %479 = vmatpush1.msra.mxu0 0.0
    %480 = vmatprep.subr.mxu0 0.0
    %481 = vmatpush1.msra.mxu0 0.0
    %482 = vmatprep.subr.mxu0 0.0
    %483 = vmatpush1.msra.mxu0 0.0
    %484 = vmatprep.subr.mxu0 0.0
    %485 = vmatpush1.msra.mxu0 0.0
    %486 = vmatprep.subr.mxu0 0.0
    %487 = vmatpush1.msra.mxu0 0.0
    %488 = vmatprep.subr.mxu0 0.0
    %489 = vmatpush1.msra.mxu0 0.0
    %490 = vmatprep.subr.mxu0 0.0
    %491 = vmatpush1.msra.mxu0 0.0
    %492 = vmatprep.subr.mxu0 0.0
    %493 = vmatpush1.msra.mxu0 0.0
    %494 = vmatprep.subr.mxu0 0.0
    %495 = vmatpush1.msra.mxu0 0.0
    %496 = vmatprep.subr.mxu0 0.0
    %497 = vmatpush1.msra.mxu0 0.0
    %498 = vmatprep.subr.mxu0 0.0
    %499 = vmatpush1.msra.mxu0 0.0
    %500 = vmatprep.subr.mxu0 0.0
    %501 = vmatpush1.msra.mxu0 0.0
    %502 = vmatprep.subr.mxu0 0.0
    %503 = vmatpush1.msra.mxu0 0.0
    %504 = vmatprep.subr.mxu0 0.0
    %505 = vmatpush1.msra.mxu0 0.0
    %506 = vmatprep.subr.mxu0 0.0
    %507 = vmatpush1.msra.mxu0 0.0
    %508 = vmatprep.subr.mxu0 0.0
    %509 = vmatpush1.msra.mxu0 0.0
    %510 = vmatprep.subr.mxu0 0.0
    %511 = vmatpush1.msra.mxu0 0.0
    %512 = vmatprep.subr.mxu0 0.0
    %513 = vmatpush1.msra.mxu0 0.0
    %514 = vmatprep.subr.mxu0 0.0
    %515 = vmatpush1.msra.mxu0 0.0
    %516 = vmatprep.mubr.f32.mxu0 0.0
    %517 = vmatmul.mubr.f32.gmra.mrb[0].mxu0 %v450
    %v518 = vpop.f32.mrb[0].mxu0
    %v519 = vadd.f32 %v447, %v518
    %v520 = vpop.f32.mrb[0].mxu0
    %521 = vdwg.mxu0
    %v522 = vld [vmem:[%s17] sm:$0xf]
    %v523 = vld [vmem:[%s18] sm:$0x1]
    %v525 = vlaneseq
    %v526 = vshrl.u32 %v525, 7
    %v527 = vsub.s32 0, %v526
    %v528 = vrot.slane %v523, %v527
    %vm530 = vcmask 31744
    %v532 = vsel %vm530, %v519, 0
    %vm534 = vcmask 1043456
    %v536 = vsel %vm534, %v522, 0
    %538 = vmatprep.subr.mxu0 0.0
    %539 = vmatpush1.msra.mxu0 %v536
    %540 = vmatprep.subr.mxu0 0.0
    %541 = vmatpush1.msra.mxu0 0.0
    %542 = vmatprep.subr.mxu0 0.0
    %543 = vmatpush1.msra.mxu0 0.0
    %544 = vmatprep.subr.mxu0 0.0
    %545 = vmatpush1.msra.mxu0 0.0
    %546 = vmatprep.subr.mxu0 0.0
    %547 = vmatpush1.msra.mxu0 0.0
    %548 = vmatprep.subr.mxu0 0.0
    %549 = vmatpush1.msra.mxu0 0.0
    %550 = vmatprep.subr.mxu0 0.0
    %551 = vmatpush1.msra.mxu0 0.0
    %552 = vmatprep.subr.mxu0 0.0
    %553 = vmatpush1.msra.mxu0 0.0
    %554 = vmatprep.subr.mxu0 0.0
    %555 = vmatpush1.msra.mxu0 0.0
    %556 = vmatprep.subr.mxu0 0.0
    %557 = vmatpush1.msra.mxu0 0.0
    %558 = vmatprep.subr.mxu0 0.0
    %559 = vmatpush1.msra.mxu0 0.0
    %560 = vmatprep.subr.mxu0 0.0
    %561 = vmatpush1.msra.mxu0 0.0
    %562 = vmatprep.subr.mxu0 0.0
    %563 = vmatpush1.msra.mxu0 0.0
    %564 = vmatprep.subr.mxu0 0.0
    %565 = vmatpush1.msra.mxu0 0.0
    %566 = vmatprep.subr.mxu0 0.0
    %567 = vmatpush1.msra.mxu0 0.0
    %568 = vmatprep.subr.mxu0 0.0
    %569 = vmatpush1.msra.mxu0 0.0
    %570 = vmatprep.subr.mxu0 0.0
    %571 = vmatpush1.msra.mxu0 0.0
    %572 = vmatprep.subr.mxu0 0.0
    %573 = vmatpush1.msra.mxu0 0.0
    %574 = vmatprep.subr.mxu0 0.0
    %575 = vmatpush1.msra.mxu0 0.0
    %576 = vmatprep.subr.mxu0 0.0
    %577 = vmatpush1.msra.mxu0 0.0
    %578 = vmatprep.subr.mxu0 0.0
    %579 = vmatpush1.msra.mxu0 0.0
    %580 = vmatprep.subr.mxu0 0.0
    %581 = vmatpush1.msra.mxu0 0.0
    %582 = vmatprep.subr.mxu0 0.0
    %583 = vmatpush1.msra.mxu0 0.0
    %584 = vmatprep.subr.mxu0 0.0
    %585 = vmatpush1.msra.mxu0 0.0
    %586 = vmatprep.subr.mxu0 0.0
    %587 = vmatpush1.msra.mxu0 0.0
    %588 = vmatprep.subr.mxu0 0.0
    %589 = vmatpush1.msra.mxu0 0.0
    %590 = vmatprep.subr.mxu0 0.0
    %591 = vmatpush1.msra.mxu0 0.0
    %592 = vmatprep.subr.mxu0 0.0
    %593 = vmatpush1.msra.mxu0 0.0
    %594 = vmatprep.subr.mxu0 0.0
    %595 = vmatpush1.msra.mxu0 0.0
    %596 = vmatprep.subr.mxu0 0.0
    %597 = vmatpush1.msra.mxu0 0.0
    %598 = vmatprep.subr.mxu0 0.0
    %599 = vmatpush1.msra.mxu0 0.0
    %600 = vmatprep.subr.mxu0 0.0
    %601 = vmatpush1.msra.mxu0 0.0
    %602 = vmatprep.mubr.f32.mxu0 0.0
    %603 = vmatmul.mubr.f32.gmra.mrb[0].mxu0 %v532
    %v604 = vpop.f32.mrb[0].mxu0
    %v605 = vadd.f32 %v528, %v604
    %v606 = vpop.f32.mrb[0].mxu0
    %607 = vdwg.mxu0
    %v608 = vmax.f32 %v605, 0.0
    %v609 = vld [vmem:[%s19] sm:$0xff]
    %v610 = vld [vmem:[%s19 + $0x8] sm:$0xff]
    %v611 = vld [vmem:[%s19 + $0x10] sm:$0xff]
    %v612 = vld [vmem:[%s19 + $0x18] sm:$0xff]
    %v613 = vld [vmem:[%s19 + $0x20] sm:$0xff]
    %v614 = vld [vmem:[%s19 + $0x28] sm:$0xff]
    %v615 = vld [vmem:[%s19 + $0x30] sm:$0xff]
    %v616 = vld [vmem:[%s19 + $0x38] sm:$0xff]
    %v617 = vld [vmem:[%s20] sm:$0x1]
    %v619 = vlaneseq
    %v620 = vshrl.u32 %v619, 7
    %v621 = vsub.s32 0, %v620
    %v622 = vrot.slane %v617, %v621
    %v625 = vsel %vm360, %v608, 0
    %627 = vmatprep.subr.mxu0 0.0
    %628 = vmatpush1.msra.mxu0 %v609
    %629 = vmatprep.subr.mxu0 0.0
    %630 = vmatpush1.msra.mxu0 %v610
    %631 = vmatprep.subr.mxu0 0.0
    %632 = vmatpush1.msra.mxu0 %v611
    %633 = vmatprep.subr.mxu0 0.0
    %634 = vmatpush1.msra.mxu0 %v612
    %635 = vmatprep.subr.mxu0 0.0
    %636 = vmatpush1.msra.mxu0 %v613
    %637 = vmatprep.subr.mxu0 0.0
    %638 = vmatpush1.msra.mxu0 %v614
    %639 = vmatprep.subr.mxu0 0.0
    %640 = vmatpush1.msra.mxu0 %v615
    %641 = vmatprep.subr.mxu0 0.0
    %642 = vmatpush1.msra.mxu0 %v616
    %643 = vmatprep.subr.mxu0 0.0
    %644 = vmatpush1.msra.mxu0 0.0
    %645 = vmatprep.subr.mxu0 0.0
    %646 = vmatpush1.msra.mxu0 0.0
    %647 = vmatprep.subr.mxu0 0.0
    %648 = vmatpush1.msra.mxu0 0.0
    %649 = vmatprep.subr.mxu0 0.0
    %650 = vmatpush1.msra.mxu0 0.0
    %651 = vmatprep.subr.mxu0 0.0
    %652 = vmatpush1.msra.mxu0 0.0
    %653 = vmatprep.subr.mxu0 0.0
    %654 = vmatpush1.msra.mxu0 0.0
    %655 = vmatprep.subr.mxu0 0.0
    %656 = vmatpush1.msra.mxu0 0.0
    %657 = vmatprep.subr.mxu0 0.0
    %658 = vmatpush1.msra.mxu0 0.0
    %659 = vmatprep.subr.mxu0 0.0
    %660 = vmatpush1.msra.mxu0 0.0
    %661 = vmatprep.subr.mxu0 0.0
    %662 = vmatpush1.msra.mxu0 0.0
    %663 = vmatprep.subr.mxu0 0.0
    %664 = vmatpush1.msra.mxu0 0.0
    %665 = vmatprep.subr.mxu0 0.0
    %666 = vmatpush1.msra.mxu0 0.0
    %667 = vmatprep.subr.mxu0 0.0
    %668 = vmatpush1.msra.mxu0 0.0
    %669 = vmatprep.subr.mxu0 0.0
    %670 = vmatpush1.msra.mxu0 0.0
    %671 = vmatprep.subr.mxu0 0.0
    %672 = vmatpush1.msra.mxu0 0.0
    %673 = vmatprep.subr.mxu0 0.0
    %674 = vmatpush1.msra.mxu0 0.0
    %675 = vmatprep.subr.mxu0 0.0
    %676 = vmatpush1.msra.mxu0 0.0
    %677 = vmatprep.subr.mxu0 0.0
    %678 = vmatpush1.msra.mxu0 0.0
    %679 = vmatprep.subr.mxu0 0.0
    %680 = vmatpush1.msra.mxu0 0.0
    %681 = vmatprep.subr.mxu0 0.0
    %682 = vmatpush1.msra.mxu0 0.0
    %683 = vmatprep.subr.mxu0 0.0
    %684 = vmatpush1.msra.mxu0 0.0
    %685 = vmatprep.subr.mxu0 0.0
    %686 = vmatpush1.msra.mxu0 0.0
    %687 = vmatprep.subr.mxu0 0.0
    %688 = vmatpush1.msra.mxu0 0.0
    %689 = vmatprep.subr.mxu0 0.0
    %690 = vmatpush1.msra.mxu0 0.0
    %691 = vmatprep.mubr.f32.mxu0 0.0
    %692 = vmatmul.mubr.f32.gmra.mrb[0].mxu0 %v625
    %v693 = vpop.f32.mrb[0].mxu0
    %v694 = vadd.f32 %v622, %v693
    %v695 = vpop.f32.mrb[0].mxu0
    %696 = vdwg.mxu0
    %v697 = vmax.f32 %v694, 0.0
    %v698 = vld [vmem:[%s9] sm:$0xff]
    %v699 = vld [vmem:[%s9 + $0x8] sm:$0xff]
    %v700 = vld [vmem:[%s9 + $0x10] sm:$0xff]
    %v701 = vld [vmem:[%s9 + $0x18] sm:$0xff]
    %v702 = vld [vmem:[%s9 + $0x20] sm:$0xff]
    %v703 = vld [vmem:[%s9 + $0x28] sm:$0xff]
    %v704 = vld [vmem:[%s9 + $0x30] sm:$0xff]
    %v705 = vld [vmem:[%s9 + $0x38] sm:$0xff]
    %v706 = vld [vmem:[%s9 + $0x40] sm:$0xff]
    %v707 = vld [vmem:[%s9 + $0x48] sm:$0xff]
    %v708 = vld [vmem:[%s9 + $0x50] sm:$0xff]
    %v709 = vld [vmem:[%s9 + $0x58] sm:$0xff]
    %v710 = vld [vmem:[%s10] sm:$0x1]
    %v712 = vlaneseq
    %v713 = vshrl.u32 %v712, 7
    %v714 = vsub.s32 0, %v713
    %v715 = vrot.slane %v710, %v714
    %718 = vrot.lane.b32.xlu0 %v271, 64
    %v719 = vpop.permute.xlu0 %718
    %720 = vrot.lane.b32.xlu0 %v273, 64
    %v721 = vpop.permute.xlu0 %720
    %v722 = vsel %vm360, %v719, %v721
    %vm723 = vcmask 785408
    %v724 = vsel %vm723, %v722, 0
    %726 = vmatprep.subr.mxu0 0.0
    %727 = vmatpush1.msra.mxu0 %v698
    %728 = vmatprep.subr.mxu0 0.0
    %729 = vmatpush1.msra.mxu0 %v699
    %730 = vmatprep.subr.mxu0 0.0
    %731 = vmatpush1.msra.mxu0 %v700
    %732 = vmatprep.subr.mxu0 0.0
    %733 = vmatpush1.msra.mxu0 %v701
    %734 = vmatprep.subr.mxu0 0.0
    %735 = vmatpush1.msra.mxu0 %v702
    %736 = vmatprep.subr.mxu0 0.0
    %737 = vmatpush1.msra.mxu0 %v703
    %738 = vmatprep.subr.mxu0 0.0
    %739 = vmatpush1.msra.mxu0 %v704
    %740 = vmatprep.subr.mxu0 0.0
    %741 = vmatpush1.msra.mxu0 %v705
    %742 = vmatprep.subr.mxu0 0.0
    %743 = vmatpush1.msra.mxu0 %v706
    %744 = vmatprep.subr.mxu0 0.0
    %745 = vmatpush1.msra.mxu0 %v707
    %746 = vmatprep.subr.mxu0 0.0
    %747 = vmatpush1.msra.mxu0 %v708
    %748 = vmatprep.subr.mxu0 0.0
    %749 = vmatpush1.msra.mxu0 %v709
    %750 = vmatprep.subr.mxu0 0.0
    %751 = vmatpush1.msra.mxu0 0.0
    %752 = vmatprep.subr.mxu0 0.0
    %753 = vmatpush1.msra.mxu0 0.0
    %754 = vmatprep.subr.mxu0 0.0
    %755 = vmatpush1.msra.mxu0 0.0
    %756 = vmatprep.subr.mxu0 0.0
    %757 = vmatpush1.msra.mxu0 0.0
    %758 = vmatprep.subr.mxu0 0.0
    %759 = vmatpush1.msra.mxu0 0.0
    %760 = vmatprep.subr.mxu0 0.0
    %761 = vmatpush1.msra.mxu0 0.0
    %762 = vmatprep.subr.mxu0 0.0
    %763 = vmatpush1.msra.mxu0 0.0
    %764 = vmatprep.subr.mxu0 0.0
    %765 = vmatpush1.msra.mxu0 0.0
    %766 = vmatprep.subr.mxu0 0.0
    %767 = vmatpush1.msra.mxu0 0.0
    %768 = vmatprep.subr.mxu0 0.0
    %769 = vmatpush1.msra.mxu0 0.0
    %770 = vmatprep.subr.mxu0 0.0
    %771 = vmatpush1.msra.mxu0 0.0
    %772 = vmatprep.subr.mxu0 0.0
    %773 = vmatpush1.msra.mxu0 0.0
    %774 = vmatprep.subr.mxu0 0.0
    %775 = vmatpush1.msra.mxu0 0.0
    %776 = vmatprep.subr.mxu0 0.0
    %777 = vmatpush1.msra.mxu0 0.0
    %778 = vmatprep.subr.mxu0 0.0
    %779 = vmatpush1.msra.mxu0 0.0
    %780 = vmatprep.subr.mxu0 0.0
    %781 = vmatpush1.msra.mxu0 0.0
    %782 = vmatprep.subr.mxu0 0.0
    %783 = vmatpush1.msra.mxu0 0.0
    %784 = vmatprep.subr.mxu0 0.0
    %785 = vmatpush1.msra.mxu0 0.0
    %786 = vmatprep.subr.mxu0 0.0
    %787 = vmatpush1.msra.mxu0 0.0
    %788 = vmatprep.subr.mxu0 0.0
    %789 = vmatpush1.msra.mxu0 0.0
    %790 = vmatprep.mubr.f32.mxu0 0.0
    %791 = vmatmul.mubr.f32.gmra.mrb[0].mxu0 %v724
    %v792 = vpop.f32.mrb[0].mxu0
    %v793 = vadd.f32 %v715, %v792
    %v794 = vpop.f32.mrb[0].mxu0
    %795 = vdwg.mxu0
    %v796 = vld [vmem:[%s11] sm:$0xff]
    %v797 = vld [vmem:[%s11 + $0x8] sm:$0xff]
    %v798 = vld [vmem:[%s11 + $0x10] sm:$0xff]
    %v799 = vld [vmem:[%s11 + $0x18] sm:$0xff]
    %v800 = vld [vmem:[%s11 + $0x20] sm:$0xff]
    %v801 = vld [vmem:[%s11 + $0x28] sm:$0xff]
    %v802 = vld [vmem:[%s11 + $0x30] sm:$0xff]
    %v803 = vld [vmem:[%s11 + $0x38] sm:$0xff]
    %v804 = vld [vmem:[%s11 + $0x40] sm:$0xff]
    %v805 = vld [vmem:[%s11 + $0x48] sm:$0xff]
    %v806 = vld [vmem:[%s11 + $0x50] sm:$0xff]
    %v807 = vld [vmem:[%s11 + $0x58] sm:$0xff]
    %v808 = vld [vmem:[%s12] sm:$0x1]
    %v810 = vlaneseq
    %v811 = vshrl.u32 %v810, 7
    %v812 = vsub.s32 0, %v811
    %v813 = vrot.slane %v808, %v812
    %v816 = vsel %vm723, %v793, 0
    %818 = vmatprep.subr.mxu0 0.0
    %819 = vmatpush1.msra.mxu0 %v796
    %820 = vmatprep.subr.mxu0 0.0
    %821 = vmatpush1.msra.mxu0 %v797
    %822 = vmatprep.subr.mxu0 0.0
    %823 = vmatpush1.msra.mxu0 %v798
    %824 = vmatprep.subr.mxu0 0.0
    %825 = vmatpush1.msra.mxu0 %v799
    %826 = vmatprep.subr.mxu0 0.0
    %827 = vmatpush1.msra.mxu0 %v800
    %828 = vmatprep.subr.mxu0 0.0
    %829 = vmatpush1.msra.mxu0 %v801
    %830 = vmatprep.subr.mxu0 0.0
    %831 = vmatpush1.msra.mxu0 %v802
    %832 = vmatprep.subr.mxu0 0.0
    %833 = vmatpush1.msra.mxu0 %v803
    %834 = vmatprep.subr.mxu0 0.0
    %835 = vmatpush1.msra.mxu0 %v804
    %836 = vmatprep.subr.mxu0 0.0
    %837 = vmatpush1.msra.mxu0 %v805
    %838 = vmatprep.subr.mxu0 0.0
    %839 = vmatpush1.msra.mxu0 %v806
    %840 = vmatprep.subr.mxu0 0.0
    %841 = vmatpush1.msra.mxu0 %v807
    %842 = vmatprep.subr.mxu0 0.0
    %843 = vmatpush1.msra.mxu0 0.0
    %844 = vmatprep.subr.mxu0 0.0
    %845 = vmatpush1.msra.mxu0 0.0
    %846 = vmatprep.subr.mxu0 0.0
    %847 = vmatpush1.msra.mxu0 0.0
    %848 = vmatprep.subr.mxu0 0.0
    %849 = vmatpush1.msra.mxu0 0.0
    %850 = vmatprep.subr.mxu0 0.0
    %851 = vmatpush1.msra.mxu0 0.0
    %852 = vmatprep.subr.mxu0 0.0
    %853 = vmatpush1.msra.mxu0 0.0
    %854 = vmatprep.subr.mxu0 0.0
    %855 = vmatpush1.msra.mxu0 0.0
    %856 = vmatprep.subr.mxu0 0.0
    %857 = vmatpush1.msra.mxu0 0.0
    %858 = vmatprep.subr.mxu0 0.0
    %859 = vmatpush1.msra.mxu0 0.0
    %860 = vmatprep.subr.mxu0 0.0
    %861 = vmatpush1.msra.mxu0 0.0
    %862 = vmatprep.subr.mxu0 0.0
    %863 = vmatpush1.msra.mxu0 0.0
    %864 = vmatprep.subr.mxu0 0.0
    %865 = vmatpush1.msra.mxu0 0.0
    %866 = vmatprep.subr.mxu0 0.0
    %867 = vmatpush1.msra.mxu0 0.0
    %868 = vmatprep.subr.mxu0 0.0
    %869 = vmatpush1.msra.mxu0 0.0
    %870 = vmatprep.subr.mxu0 0.0
    %871 = vmatpush1.msra.mxu0 0.0
    %872 = vmatprep.subr.mxu0 0.0
    %873 = vmatpush1.msra.mxu0 0.0
    %874 = vmatprep.subr.mxu0 0.0
    %875 = vmatpush1.msra.mxu0 0.0
    %876 = vmatprep.subr.mxu0 0.0
    %877 = vmatpush1.msra.mxu0 0.0
    %878 = vmatprep.subr.mxu0 0.0
    %879 = vmatpush1.msra.mxu0 0.0
    %880 = vmatprep.subr.mxu0 0.0
    %881 = vmatpush1.msra.mxu0 0.0
    %882 = vmatprep.mubr.f32.mxu0 0.0
    %883 = vmatmul.mubr.f32.gmra.mrb[0].mxu0 %v816
    %v884 = vpop.f32.mrb[0].mxu0
    %v885 = vadd.f32 %v813, %v884
    %v886 = vpop.f32.mrb[0].mxu0
    %887 = vdwg.mxu0
    %v888 = vmul.f32 %v885, %v697
    %v889 = vld [vmem:[%s21] sm:$0xff]
    %v890 = vld [vmem:[%s22] sm:$0x1]
    %v892 = vlaneseq
    %v893 = vshrl.u32 %v892, 7
    %v894 = vsub.s32 0, %v893
    %v895 = vrot.slane %v890, %v894
    %vm897 = vcmask 64512
    %v899 = vsel %vm897, %v888, 0
    %901 = vmatprep.subr.mxu0 0.0
    %902 = vmatpush1.msra.mxu0 %v889
    %903 = vmatprep.subr.mxu0 0.0
    %904 = vmatpush1.msra.mxu0 0.0
    %905 = vmatprep.subr.mxu0 0.0
    %906 = vmatpush1.msra.mxu0 0.0
    %907 = vmatprep.subr.mxu0 0.0
    %908 = vmatpush1.msra.mxu0 0.0
    %909 = vmatprep.subr.mxu0 0.0
    %910 = vmatpush1.msra.mxu0 0.0
    %911 = vmatprep.subr.mxu0 0.0
    %912 = vmatpush1.msra.mxu0 0.0
    %913 = vmatprep.subr.mxu0 0.0
    %914 = vmatpush1.msra.mxu0 0.0
    %915 = vmatprep.subr.mxu0 0.0
    %916 = vmatpush1.msra.mxu0 0.0
    %917 = vmatprep.subr.mxu0 0.0
    %918 = vmatpush1.msra.mxu0 0.0
    %919 = vmatprep.subr.mxu0 0.0
    %920 = vmatpush1.msra.mxu0 0.0
    %921 = vmatprep.subr.mxu0 0.0
    %922 = vmatpush1.msra.mxu0 0.0
    %923 = vmatprep.subr.mxu0 0.0
    %924 = vmatpush1.msra.mxu0 0.0
    %925 = vmatprep.subr.mxu0 0.0
    %926 = vmatpush1.msra.mxu0 0.0
    %927 = vmatprep.subr.mxu0 0.0
    %928 = vmatpush1.msra.mxu0 0.0
    %929 = vmatprep.subr.mxu0 0.0
    %930 = vmatpush1.msra.mxu0 0.0
    %931 = vmatprep.subr.mxu0 0.0
    %932 = vmatpush1.msra.mxu0 0.0
    %933 = vmatprep.subr.mxu0 0.0
    %934 = vmatpush1.msra.mxu0 0.0
    %935 = vmatprep.subr.mxu0 0.0
    %936 = vmatpush1.msra.mxu0 0.0
    %937 = vmatprep.subr.mxu0 0.0
    %938 = vmatpush1.msra.mxu0 0.0
    %939 = vmatprep.subr.mxu0 0.0
    %940 = vmatpush1.msra.mxu0 0.0
    %941 = vmatprep.subr.mxu0 0.0
    %942 = vmatpush1.msra.mxu0 0.0
    %943 = vmatprep.subr.mxu0 0.0
    %944 = vmatpush1.msra.mxu0 0.0
    %945 = vmatprep.subr.mxu0 0.0
    %946 = vmatpush1.msra.mxu0 0.0
    %947 = vmatprep.subr.mxu0 0.0
    %948 = vmatpush1.msra.mxu0 0.0
    %949 = vmatprep.subr.mxu0 0.0
    %950 = vmatpush1.msra.mxu0 0.0
    %951 = vmatprep.subr.mxu0 0.0
    %952 = vmatpush1.msra.mxu0 0.0
    %953 = vmatprep.subr.mxu0 0.0
    %954 = vmatpush1.msra.mxu0 0.0
    %955 = vmatprep.subr.mxu0 0.0
    %956 = vmatpush1.msra.mxu0 0.0
    %957 = vmatprep.subr.mxu0 0.0
    %958 = vmatpush1.msra.mxu0 0.0
    %959 = vmatprep.subr.mxu0 0.0
    %960 = vmatpush1.msra.mxu0 0.0
    %961 = vmatprep.subr.mxu0 0.0
    %962 = vmatpush1.msra.mxu0 0.0
    %963 = vmatprep.subr.mxu0 0.0
    %964 = vmatpush1.msra.mxu0 0.0
    %965 = vmatprep.mubr.f32.mxu0 0.0
    %966 = vmatmul.mubr.f32.gmra.mrb[0].mxu0 %v899
    %v967 = vpop.f32.mrb[0].mxu0
    %v968 = vadd.f32 %v895, %v967
    %v969 = vpop.f32.mrb[0].mxu0
    %970 = vdwg.mxu0
    %v971 = vmax.f32 %v968, 0.0
    %v972 = vld [vmem:[%s23] sm:$0xff]
    %v973 = vld [vmem:[%s23 + $0x8] sm:$0xff]
    %v974 = vld [vmem:[%s23 + $0x10] sm:$0xff]
    %v975 = vld [vmem:[%s23 + $0x18] sm:$0xff]
    %v976 = vld [vmem:[%s23 + $0x20] sm:$0xff]
    %v977 = vld [vmem:[%s23 + $0x28] sm:$0xff]
    %v978 = vld [vmem:[%s23 + $0x30] sm:$0xff]
    %v979 = vld [vmem:[%s23 + $0x38] sm:$0xff]
    %v980 = vld [vmem:[%s23 + $0x40] sm:$0xff]
    %v981 = vld [vmem:[%s23 + $0x48] sm:$0xff]
    %v982 = vld [vmem:[%s23 + $0x50] sm:$0xff]
    %v983 = vld [vmem:[%s23 + $0x58] sm:$0xff]
    %v984 = vld [vmem:[%s24] sm:$0x1]
    %v986 = vlaneseq
    %v987 = vshrl.u32 %v986, 7
    %v988 = vsub.s32 0, %v987
    %v989 = vrot.slane %v984, %v988
    %v992 = vsel %vm723, %v971, 0
    %994 = vmatprep.subr.mxu0 0.0
    %995 = vmatpush1.msra.mxu0 %v972
    %996 = vmatprep.subr.mxu0 0.0
    %997 = vmatpush1.msra.mxu0 %v973
    %998 = vmatprep.subr.mxu0 0.0
    %999 = vmatpush1.msra.mxu0 %v974
    %1000 = vmatprep.subr.mxu0 0.0
    %1001 = vmatpush1.msra.mxu0 %v975
    %1002 = vmatprep.subr.mxu0 0.0
    %1003 = vmatpush1.msra.mxu0 %v976
    %1004 = vmatprep.subr.mxu0 0.0
    %1005 = vmatpush1.msra.mxu0 %v977
    %1006 = vmatprep.subr.mxu0 0.0
    %1007 = vmatpush1.msra.mxu0 %v978
    %1008 = vmatprep.subr.mxu0 0.0
    %1009 = vmatpush1.msra.mxu0 %v979
    %1010 = vmatprep.subr.mxu0 0.0
    %1011 = vmatpush1.msra.mxu0 %v980
    %1012 = vmatprep.subr.mxu0 0.0
    %1013 = vmatpush1.msra.mxu0 %v981
    %1014 = vmatprep.subr.mxu0 0.0
    %1015 = vmatpush1.msra.mxu0 %v982
    %1016 = vmatprep.subr.mxu0 0.0
    %1017 = vmatpush1.msra.mxu0 %v983
    %1018 = vmatprep.subr.mxu0 0.0
    %1019 = vmatpush1.msra.mxu0 0.0
    %1020 = vmatprep.subr.mxu0 0.0
    %1021 = vmatpush1.msra.mxu0 0.0
    %1022 = vmatprep.subr.mxu0 0.0
    %1023 = vmatpush1.msra.mxu0 0.0
    %1024 = vmatprep.subr.mxu0 0.0
    %1025 = vmatpush1.msra.mxu0 0.0
    %1026 = vmatprep.subr.mxu0 0.0
    %1027 = vmatpush1.msra.mxu0 0.0
    %1028 = vmatprep.subr.mxu0 0.0
    %1029 = vmatpush1.msra.mxu0 0.0
    %1030 = vmatprep.subr.mxu0 0.0
    %1031 = vmatpush1.msra.mxu0 0.0
    %1032 = vmatprep.subr.mxu0 0.0
    %1033 = vmatpush1.msra.mxu0 0.0
    %1034 = vmatprep.subr.mxu0 0.0
    %1035 = vmatpush1.msra.mxu0 0.0
    %1036 = vmatprep.subr.mxu0 0.0
    %1037 = vmatpush1.msra.mxu0 0.0
    %1038 = vmatprep.subr.mxu0 0.0
    %1039 = vmatpush1.msra.mxu0 0.0
    %1040 = vmatprep.subr.mxu0 0.0
    %1041 = vmatpush1.msra.mxu0 0.0
    %1042 = vmatprep.subr.mxu0 0.0
    %1043 = vmatpush1.msra.mxu0 0.0
    %1044 = vmatprep.subr.mxu0 0.0
    %1045 = vmatpush1.msra.mxu0 0.0
    %1046 = vmatprep.subr.mxu0 0.0
    %1047 = vmatpush1.msra.mxu0 0.0
    %1048 = vmatprep.subr.mxu0 0.0
    %1049 = vmatpush1.msra.mxu0 0.0
    %1050 = vmatprep.subr.mxu0 0.0
    %1051 = vmatpush1.msra.mxu0 0.0
    %1052 = vmatprep.subr.mxu0 0.0
    %1053 = vmatpush1.msra.mxu0 0.0
    %1054 = vmatprep.subr.mxu0 0.0
    %1055 = vmatpush1.msra.mxu0 0.0
    %1056 = vmatprep.subr.mxu0 0.0
    %1057 = vmatpush1.msra.mxu0 0.0
    %1058 = vmatprep.mubr.f32.mxu0 0.0
    %1059 = vmatmul.mubr.f32.gmra.mrb[0].mxu0 %v992
    %v1060 = vpop.f32.mrb[0].mxu0
    %v1061 = vadd.f32 %v989, %v1060
    %v1062 = vpop.f32.mrb[0].mxu0
    %1063 = vdwg.mxu0
    %v1064 = vmax.f32 %v1061, 0.0
    %v1065 = vld [vmem:[%s13] sm:$0xff]
    %v1066 = vld [vmem:[%s13 + $0x8] sm:$0xff]
    %v1067 = vld [vmem:[%s13 + $0x10] sm:$0xff]
    %v1068 = vld [vmem:[%s13 + $0x18] sm:$0xff]
    %v1069 = vld [vmem:[%s13 + $0x20] sm:$0xff]
    %v1070 = vld [vmem:[%s13 + $0x28] sm:$0xff]
    %v1071 = vld [vmem:[%s13 + $0x30] sm:$0xff]
    %v1072 = vld [vmem:[%s13 + $0x38] sm:$0xff]
    %v1073 = vld [vmem:[%s13 + $0x40] sm:$0xff]
    %v1074 = vld [vmem:[%s13 + $0x48] sm:$0xff]
    %v1075 = vld [vmem:[%s13 + $0x50] sm:$0xff]
    %v1076 = vld [vmem:[%s13 + $0x58] sm:$0xff]
    %v1077 = vld [vmem:[%s13 + $0x60] sm:$0xff]
    %v1078 = vld [vmem:[%s13 + $0x68] sm:$0xff]
    %v1079 = vld [vmem:[%s13 + $0x70] sm:$0xff]
    %v1080 = vld [vmem:[%s13 + $0x78] sm:$0xff]
    %v1081 = vld [vmem:[%s14] sm:$0x1]
    %v1083 = vlaneseq
    %v1084 = vshrl.u32 %v1083, 7
    %v1085 = vsub.s32 0, %v1084
    %v1086 = vrot.slane %v1081, %v1085
    %1089 = vrot.lane.b32.xlu0 %v273, 96
    %v1090 = vpop.permute.xlu0 %1089
    %1091 = vrot.lane.b32.xlu0 %v342, 96
    %v1092 = vpop.permute.xlu0 %1091
    %v1093 = vsel %vm723, %v1090, %v1092
    %1095 = vmatprep.subr.mxu0 0.0
    %1096 = vmatpush1.msra.mxu0 %v1065
    %1097 = vmatprep.subr.mxu0 0.0
    %1098 = vmatpush1.msra.mxu0 %v1066
    %1099 = vmatprep.subr.mxu0 0.0
    %1100 = vmatpush1.msra.mxu0 %v1067
    %1101 = vmatprep.subr.mxu0 0.0
    %1102 = vmatpush1.msra.mxu0 %v1068
    %1103 = vmatprep.subr.mxu0 0.0
    %1104 = vmatpush1.msra.mxu0 %v1069
    %1105 = vmatprep.subr.mxu0 0.0
    %1106 = vmatpush1.msra.mxu0 %v1070
    %1107 = vmatprep.subr.mxu0 0.0
    %1108 = vmatpush1.msra.mxu0 %v1071
    %1109 = vmatprep.subr.mxu0 0.0
    %1110 = vmatpush1.msra.mxu0 %v1072
    %1111 = vmatprep.subr.mxu0 0.0
    %1112 = vmatpush1.msra.mxu0 %v1073
    %1113 = vmatprep.subr.mxu0 0.0
    %1114 = vmatpush1.msra.mxu0 %v1074
    %1115 = vmatprep.subr.mxu0 0.0
    %1116 = vmatpush1.msra.mxu0 %v1075
    %1117 = vmatprep.subr.mxu0 0.0
    %1118 = vmatpush1.msra.mxu0 %v1076
    %1119 = vmatprep.subr.mxu0 0.0
    %1120 = vmatpush1.msra.mxu0 %v1077
    %1121 = vmatprep.subr.mxu0 0.0
    %1122 = vmatpush1.msra.mxu0 %v1078
    %1123 = vmatprep.subr.mxu0 0.0
    %1124 = vmatpush1.msra.mxu0 %v1079
    %1125 = vmatprep.subr.mxu0 0.0
    %1126 = vmatpush1.msra.mxu0 %v1080
    %1127 = vmatprep.subr.mxu0 0.0
    %1128 = vmatpush1.msra.mxu0 0.0
    %1129 = vmatprep.subr.mxu0 0.0
    %1130 = vmatpush1.msra.mxu0 0.0
    %1131 = vmatprep.subr.mxu0 0.0
    %1132 = vmatpush1.msra.mxu0 0.0
    %1133 = vmatprep.subr.mxu0 0.0
    %1134 = vmatpush1.msra.mxu0 0.0
    %1135 = vmatprep.subr.mxu0 0.0
    %1136 = vmatpush1.msra.mxu0 0.0
    %1137 = vmatprep.subr.mxu0 0.0
    %1138 = vmatpush1.msra.mxu0 0.0
    %1139 = vmatprep.subr.mxu0 0.0
    %1140 = vmatpush1.msra.mxu0 0.0
    %1141 = vmatprep.subr.mxu0 0.0
    %1142 = vmatpush1.msra.mxu0 0.0
    %1143 = vmatprep.subr.mxu0 0.0
    %1144 = vmatpush1.msra.mxu0 0.0
    %1145 = vmatprep.subr.mxu0 0.0
    %1146 = vmatpush1.msra.mxu0 0.0
    %1147 = vmatprep.subr.mxu0 0.0
    %1148 = vmatpush1.msra.mxu0 0.0
    %1149 = vmatprep.subr.mxu0 0.0
    %1150 = vmatpush1.msra.mxu0 0.0
    %1151 = vmatprep.subr.mxu0 0.0
    %1152 = vmatpush1.msra.mxu0 0.0
    %1153 = vmatprep.subr.mxu0 0.0
    %1154 = vmatpush1.msra.mxu0 0.0
    %1155 = vmatprep.subr.mxu0 0.0
    %1156 = vmatpush1.msra.mxu0 0.0
    %1157 = vmatprep.subr.mxu0 0.0
    %1158 = vmatpush1.msra.mxu0 0.0
    %1159 = vmatprep.mubr.f32.mxu0 0.0
    %1160 = vmatmul.mubr.f32.gmra.mrb[0].mxu0 %v1093
    %v1161 = vpop.f32.mrb[0].mxu0
    %v1162 = vadd.f32 %v1086, %v1161
    %v1163 = vpop.f32.mrb[0].mxu0
    %1164 = vdwg.mxu0
    %v1165 = vld [vmem:[%s15] sm:$0xff]
    %v1166 = vld [vmem:[%s15 + $0x8] sm:$0xff]
    %v1167 = vld [vmem:[%s15 + $0x10] sm:$0xff]
    %v1168 = vld [vmem:[%s15 + $0x18] sm:$0xff]
    %v1169 = vld [vmem:[%s15 + $0x20] sm:$0xff]
    %v1170 = vld [vmem:[%s15 + $0x28] sm:$0xff]
    %v1171 = vld [vmem:[%s15 + $0x30] sm:$0xff]
    %v1172 = vld [vmem:[%s15 + $0x38] sm:$0xff]
    %v1173 = vld [vmem:[%s15 + $0x40] sm:$0xff]
    %v1174 = vld [vmem:[%s15 + $0x48] sm:$0xff]
    %v1175 = vld [vmem:[%s15 + $0x50] sm:$0xff]
    %v1176 = vld [vmem:[%s15 + $0x58] sm:$0xff]
    %v1177 = vld [vmem:[%s15 + $0x60] sm:$0xff]
    %v1178 = vld [vmem:[%s15 + $0x68] sm:$0xff]
    %v1179 = vld [vmem:[%s15 + $0x70] sm:$0xff]
    %v1180 = vld [vmem:[%s15 + $0x78] sm:$0xff]
    %v1181 = vld [vmem:[%s16] sm:$0x1]
    %v1183 = vlaneseq
    %v1184 = vshrl.u32 %v1183, 7
    %v1185 = vsub.s32 0, %v1184
    %v1186 = vrot.slane %v1181, %v1185
    %1188 = vmatprep.subr.mxu0 0.0
    %1189 = vmatpush1.msra.mxu0 %v1165
    %1190 = vmatprep.subr.mxu0 0.0
    %1191 = vmatpush1.msra.mxu0 %v1166
    %1192 = vmatprep.subr.mxu0 0.0
    %1193 = vmatpush1.msra.mxu0 %v1167
    %1194 = vmatprep.subr.mxu0 0.0
    %1195 = vmatpush1.msra.mxu0 %v1168
    %1196 = vmatprep.subr.mxu0 0.0
    %1197 = vmatpush1.msra.mxu0 %v1169
    %1198 = vmatprep.subr.mxu0 0.0
    %1199 = vmatpush1.msra.mxu0 %v1170
    %1200 = vmatprep.subr.mxu0 0.0
    %1201 = vmatpush1.msra.mxu0 %v1171
    %1202 = vmatprep.subr.mxu0 0.0
    %1203 = vmatpush1.msra.mxu0 %v1172
    %1204 = vmatprep.subr.mxu0 0.0
    %1205 = vmatpush1.msra.mxu0 %v1173
    %1206 = vmatprep.subr.mxu0 0.0
    %1207 = vmatpush1.msra.mxu0 %v1174
    %1208 = vmatprep.subr.mxu0 0.0
    %1209 = vmatpush1.msra.mxu0 %v1175
    %1210 = vmatprep.subr.mxu0 0.0
    %1211 = vmatpush1.msra.mxu0 %v1176
    %1212 = vmatprep.subr.mxu0 0.0
    %1213 = vmatpush1.msra.mxu0 %v1177
    %1214 = vmatprep.subr.mxu0 0.0
    %1215 = vmatpush1.msra.mxu0 %v1178
    %1216 = vmatprep.subr.mxu0 0.0
    %1217 = vmatpush1.msra.mxu0 %v1179
    %1218 = vmatprep.subr.mxu0 0.0
    %1219 = vmatpush1.msra.mxu0 %v1180
    %1220 = vmatprep.subr.mxu0 0.0
    %1221 = vmatpush1.msra.mxu0 0.0
    %1222 = vmatprep.subr.mxu0 0.0
    %1223 = vmatpush1.msra.mxu0 0.0
    %1224 = vmatprep.subr.mxu0 0.0
    %1225 = vmatpush1.msra.mxu0 0.0
    %1226 = vmatprep.subr.mxu0 0.0
    %1227 = vmatpush1.msra.mxu0 0.0
    %1228 = vmatprep.subr.mxu0 0.0
    %1229 = vmatpush1.msra.mxu0 0.0
    %1230 = vmatprep.subr.mxu0 0.0
    %1231 = vmatpush1.msra.mxu0 0.0
    %1232 = vmatprep.subr.mxu0 0.0
    %1233 = vmatpush1.msra.mxu0 0.0
    %1234 = vmatprep.subr.mxu0 0.0
    %1235 = vmatpush1.msra.mxu0 0.0
    %1236 = vmatprep.subr.mxu0 0.0
    %1237 = vmatpush1.msra.mxu0 0.0
    %1238 = vmatprep.subr.mxu0 0.0
    %1239 = vmatpush1.msra.mxu0 0.0
    %1240 = vmatprep.subr.mxu0 0.0
    %1241 = vmatpush1.msra.mxu0 0.0
    %1242 = vmatprep.subr.mxu0 0.0
    %1243 = vmatpush1.msra.mxu0 0.0
    %1244 = vmatprep.subr.mxu0 0.0
    %1245 = vmatpush1.msra.mxu0 0.0
    %1246 = vmatprep.subr.mxu0 0.0
    %1247 = vmatpush1.msra.mxu0 0.0
    %1248 = vmatprep.subr.mxu0 0.0
    %1249 = vmatpush1.msra.mxu0 0.0
    %1250 = vmatprep.subr.mxu0 0.0
    %1251 = vmatpush1.msra.mxu0 0.0
    %1252 = vmatprep.mubr.f32.mxu0 0.0
    %1253 = vmatmul.mubr.f32.gmra.mrb[0].mxu0 %v1162
    %v1254 = vpop.f32.mrb[0].mxu0
    %v1255 = vadd.f32 %v1186, %v1254
    %v1256 = vpop.f32.mrb[0].mxu0
    %1257 = vdwg.mxu0
    %v1258 = vmul.f32 %v1255, %v1064
    %vm1259 = vcmask 25600
    %1260 = vst.msk [vmem:[#allocation2] sm:$0x3] %vm1259, %v519
    %vm1261 = vcmask 58368
    %1262 = vst.msk [vmem:[#allocation4] sm:$0x3] %vm1261, %v885
    %vm1263 = vcmask 123904
    %1264 = vst.msk [vmem:[#allocation6] sm:$0x3] %vm1263, %v1258
    // Predicated region
    $region102: #{custom_model_forward.13} parent=1 // pred_check
      _
    $region103: #{custom_model_forward.13} parent=1 // pred_check_branch
      %1266 = sbr.rel (0) target = $region105
    $region104: #{custom_model_forward.13} parent=1 // pred_region
      %s1268 = ssub.s32 32, 32
      %1269 = vsyncadd [#allocation3], %s1268
      %s1271 = sshll.u32 [#allocation2], 4
      %s1272 = int_to_ptr.vmem [resolvable:$true] %s1271
      %1274 = dma.vmem_to_hbm [thread:$0]  %s1272, 32, %s25, [#allocation3]
    $region105: #{custom_model_forward.13} parent=1 // pred_fallthru
      _
    // Predicated region
    $region106: #{custom_model_forward.13} parent=1 // pred_check
      _
    $region107: #{custom_model_forward.13} parent=1 // pred_check_branch
      %1276 = sbr.rel (0) target = $region109
    $region108: #{custom_model_forward.13} parent=1 // pred_region
      %s1278 = ssub.s32 32, 32
      %1279 = vsyncadd [#allocation5], %s1278
      %s1281 = sshll.u32 [#allocation4], 4
      %s1282 = int_to_ptr.vmem [resolvable:$true] %s1281
      %1284 = dma.vmem_to_hbm [thread:$0]  %s1282, 32, %s26, [#allocation5]
    $region109: #{custom_model_forward.13} parent=1 // pred_fallthru
      _
    // Predicated region
    $region110: #{custom_model_forward.13} parent=1 // pred_check
      _
    $region111: #{custom_model_forward.13} parent=1 // pred_check_branch
      %1286 = sbr.rel (0) target = $region113
    $region112: #{custom_model_forward.13} parent=1 // pred_region
      %s1288 = ssub.s32 32, 32
      %1289 = vsyncadd [#allocation5], %s1288
      %s1291 = sshll.u32 [#allocation6], 4
      %s1292 = int_to_ptr.vmem [resolvable:$true] %s1291
      %1294 = dma.vmem_to_hbm [thread:$0]  %s1292, 32, %s27, [#allocation5]
    $region113: #{custom_model_forward.13} parent=1 // pred_fallthru
      _
    // Predicated region
    $region114: #{custom_model_forward.13} parent=1 // pred_check
      _
    $region115: #{custom_model_forward.13} parent=1 // pred_check_branch
      %1296 = sbr.rel (0) target = $region117
    $region116: #{custom_model_forward.13} parent=1 // pred_region
      %1297 = dma.done [#allocation3], 32
    $region117: #{custom_model_forward.13} parent=1 // pred_fallthru
      _
    // Predicated region
    $region118: #{custom_model_forward.13} parent=1 // pred_check
      _
    $region119: #{custom_model_forward.13} parent=1 // pred_check_branch
      %1299 = sbr.rel (0) target = $region121
    $region120: #{custom_model_forward.13} parent=1 // pred_region
      %1300 = dma.done [#allocation5], 32
    $region121: #{custom_model_forward.13} parent=1 // pred_fallthru
      _
    // Predicated region
    $region122: #{custom_model_forward.13} parent=1 // pred_check
      _
    $region123: #{custom_model_forward.13} parent=1 // pred_check_branch
      %1302 = sbr.rel (0) target = $region125
    $region124: #{custom_model_forward.13} parent=1 // pred_region
      %1303 = dma.done [#allocation5], 32
    $region125: #{custom_model_forward.13} parent=1 // pred_fallthru
      _
    %1304 = vsyncpa [#allocation3], 1
    %1305 = vsyncpa [#allocation5], 1

</llo_original>
